<compile_context>
chip_gen: v7x
topology: tpu7x:2x2x1
jax: 0.10.0
libtpu: 0.0.40
codegen_flags: <defaults>
</compile_context>

<pallas_src>
import functools

import numpy as np
import jax
import jax.numpy as jnp
from jax import lax
from jax.experimental import pallas as pl
from jax.experimental.pallas import tpu as pltpu

EPS = 1e-8
LANE = 128


# ----------------------------- kernel helpers ------------------------------

def _prelu(x, alpha):
    return jnp.where(x > 0, x, alpha * x)


def _globln(x, gamma, beta, seg_m, seg_mt, inv_n):
    """Per-sample global LayerNorm on a lane-packed [C, L] tile.

    seg_m  [L, G]: 0/1 lane->sample membership (zero on padded lanes).
    seg_mt [G, L]: its transpose (precomputed in the wrapper).
    Fused one-pass stats: sum & sum-of-squares via two small MXU matmuls,
    var = E[x^2] - mean^2, one matmul to broadcast (rstd, -mean*rstd) back.
    """
    s1 = jnp.dot(x, seg_m, preferred_element_type=jnp.float32)          # [C, G]
    s2 = jnp.dot(x * x, seg_m, preferred_element_type=jnp.float32)      # [C, G]
    tot1 = jnp.sum(s1, axis=0, keepdims=True)                           # [1, G]
    tot2 = jnp.sum(s2, axis=0, keepdims=True)                           # [1, G]
    mean = tot1 * inv_n
    var = jnp.maximum(tot2 * inv_n - mean * mean, 0.0)
    rstd = lax.rsqrt(var + EPS)
    stats = jnp.concatenate([rstd, -mean * rstd], axis=0)               # [2, G]
    b = jnp.dot(stats, seg_mt, preferred_element_type=jnp.float32)      # [2, L]
    return gamma * (x * b[0:1, :] + b[1:2, :]) + beta


# ------------------------------- fused kernel -------------------------------

def _tcn_kernel(alphas_ref,            # SMEM [2*nblk + 1] PReLU slopes (flat)
                x_ref,                 # [Cin, L]   lane-packed samples
                segm_ref,              # [L, G]     lane -> sample one-hot
                segmt_ref,             # [G, L]
                tapm_ref,              # [n_udil*K, L] precomputed tap masks
                bn_gb_ref,             # [Cin, 2]   (gamma | beta)
                bn_w_ref, bn_b_ref,    # [Cbn, Cin], [Cbn, 1]
                w1_ref,                # [nblk, Chid, Cbn]
                hv_ref,                # [nblk, Chid, 6] (b1|g1|be1|db|g2|be2)
                dw_ref,                # [nblk, Chid, K]
                wr_ref,                # [nblk, Cbn, Chid]
                br_ref,                # [nblk, Cbn, 1]
                ow_ref, ob_ref,        # [Cbn, n_out_pad], [1, n_out_pad]
                out_ref,               # [G, n_out_pad]
                *, T, dilations, mask_rows):
    Cin, L = x_ref.shape
    hid = w1_ref.shape[1]
    K = dw_ref.shape[2]
    nblk = len(dilations)

    seg_m = segm_ref[...]
    seg_mt = segmt_ref[...]
    tapm = tapm_ref[...]
    inv_in = 1.0 / (Cin * T)
    inv_hid = 1.0 / (hid * T)

    # ---- bottleneck: GlobLN(in_chan) -> 1x1 conv (in_chan -> bn_chan) ----
    # TODO(synk): nn.Dropout is treated as identity (eval-mode semantics).
    x = x_ref[...]
    xn = _globln(x, bn_gb_ref[:, 0:1], bn_gb_ref[:, 1:2], seg_m, seg_mt, inv_in)
    bn_w = bn_w_ref[...]
    o = jnp.dot(bn_w, xn.astype(bn_w.dtype),
                preferred_element_type=jnp.float32) + bn_b_ref[...]      # [Cbn, L]

    # ---- Conv1DBlocks with residual add (all weights resident in VMEM) ----
    # TODO(synk): at production nblk (24+) switch this static unroll to a
    # lax.fori_loop over repeats with dynamic first-axis ref indexing.
    for blk, dil in enumerate(dilations):
        pad = (K - 1) * dil // 2
        mrow = mask_rows[blk]
        hv = hv_ref[blk]                                                # [Chid, 6]
        dw = dw_ref[blk]                                                # [Chid, K]
        w1 = w1_ref[blk]
        wr = wr_ref[blk]
        a1 = alphas_ref[2 * blk]
        a2 = alphas_ref[2 * blk + 1]

        h = jnp.dot(w1, o.astype(w1.dtype),
                    preferred_element_type=jnp.float32) + hv[:, 0:1]
        h = _prelu(h, a1)
        h = _globln(h, hv[:, 1:2], hv[:, 2:3], seg_m, seg_mt, inv_hid)

        # depthwise dilated conv: per-tap lane roll (XLU) + precomputed
        # validity mask + VPU FMA; s==0 tap initializes the accumulator.
        acc = None
        for k in range(K):
            s = k * dil - pad                       # static per-tap shift
            shifted = h if s == 0 else pltpu.roll(h, (-s) % L, axis=1)
            if s != 0:
                shifted = shifted * tapm[mrow + k:mrow + k + 1, :]
            term = dw[:, k:k + 1] * shifted
            acc = term if acc is None else acc + term
        h = acc + hv[:, 3:4]

        h = _prelu(h, a2)
        h = _globln(h, hv[:, 4:5], hv[:, 5:6], seg_m, seg_mt, inv_hid)
        o = o + jnp.dot(wr, h.astype(wr.dtype),
                        preferred_element_type=jnp.float32) + br_ref[blk]

    # ---- head: per-sample mean over time -> PReLU -> Linear (lane-dense) ----
    pooled = jnp.dot(o, seg_m, preferred_element_type=jnp.float32) * (1.0 / T)
    pooled = _prelu(pooled, alphas_ref[2 * nblk])                       # [Cbn, G]
    ow = ow_ref[...]
    logits = lax.dot_general(pooled.astype(ow.dtype), ow,
                             dimension_numbers=(((0,), (0,)), ((), ())),
                             preferred_element_type=jnp.float32) + ob_ref[...]
    out_ref[...] = logits                                               # [G, n_out_pad]


# ------------------------------ call wrapper --------------------------------

def tcn_forward(x, params, cfg):
    """Fused Pallas forward.  x: [B, in_chan, T] -> logits [B, n_src*out_chan]."""
    B, Cin, T = x.shape
    K = cfg['kernel_size']
    bn, hid = cfg['bn_chan'], cfg['hid_chan']
    n_out = cfg['n_src'] * cfg['out_chan']
    nblk = cfg['n_repeats'] * cfg['n_blocks']
    dilations = tuple(2 ** xb for _ in range(cfg['n_repeats'])
                      for xb in range(cfg['n_blocks']))
    # Set cfg['matmul_dtype']=jnp.bfloat16 on v6e/v7x at production sizes:
    # halves resident weight VMEM + DMA bytes, f32 accumulation is kept.
    mm_dtype = cfg.get('matmul_dtype', jnp.float32)

    # ---- lane-pack G samples per 128-lane tile ----
    G = max(1, min(LANE // T, B)) if T > 0 else 1
    n_groups = (B + G - 1) // G
    Bp = n_groups * G
    L = max(LANE, ((G * T + LANE - 1) // LANE) * LANE)

    xp = jnp.pad(x, ((0, Bp - B), (0, 0), (0, 0)))
    xp = xp.reshape(n_groups, G, Cin, T).transpose(0, 2, 1, 3)
    xp = xp.reshape(n_groups, Cin, G * T)
    xp = jnp.pad(xp, ((0, 0), (0, 0), (0, L - G * T)))                  # [ng, Cin, L]

    # lane -> sample membership matrix (also encodes the validity mask)
    lane = np.arange(L)
    m_np = (((lane[:, None] // T) == np.arange(G)[None, :])
            & (lane[:, None] < G * T)).astype(np.float32)               # [L, G]
    seg_m = jnp.asarray(m_np)
    seg_mt = jnp.asarray(np.ascontiguousarray(m_np.T))                  # [G, L]

    # precomputed per-tap validity masks: one row per distinct (dilation, tap)
    udils = sorted(set(dilations))
    tap_rows = []
    for dil in udils:
        pad = (K - 1) * dil // 2
        for k in range(K):
            s = k * dil - pad
            src = lane % T + s
            tap_rows.append(((src >= 0) & (src < T)).astype(np.float32))
    tapm = jnp.asarray(np.stack(tap_rows))                              # [n_udil*K, L]
    mask_rows = tuple(udils.index(d) * K for d in dilations)

    # ---- pack / stack parameters ----
    blocks = params['blocks']
    w1_all = jnp.stack([b['w1'] for b in blocks]).astype(mm_dtype)      # [nblk, hid, bn]
    hv_all = jnp.stack([jnp.concatenate(
        [b['b1'], b['g1'], b['be1'], b['db'], b['g2'], b['be2']], axis=1)
        for b in blocks])                                               # [nblk, hid, 6]
    dw_all = jnp.stack([b['dw'] for b in blocks])                       # [nblk, hid, K]
    wr_all = jnp.stack([b['wr'] for b in blocks]).astype(mm_dtype)      # [nblk, bn, hid]
    br_all = jnp.stack([b['br'] for b in blocks])                       # [nblk, bn, 1]

    alpha_list = []
    for b in blocks:
        alpha_list += [b['a1'].reshape(1), b['a2'].reshape(1)]
    alpha_list.append(params['out_alpha'].reshape(1))
    alphas = jnp.concatenate(alpha_list)                                # [2*nblk+1]

    bn_gb = jnp.concatenate([params['bn_gamma'], params['bn_beta']], axis=1)
    bn_w = params['bn_w'].astype(mm_dtype)

    n_out_pad = ((n_out + LANE - 1) // LANE) * LANE                     # lane-dense head
    ow = jnp.pad(params['out_w'].T, ((0, 0), (0, n_out_pad - n_out))).astype(mm_dtype)
    ob = jnp.pad(params['out_b'].reshape(1, -1), ((0, 0), (0, n_out_pad - n_out)))

    kernel = functools.partial(_tcn_kernel, T=T, dilations=dilations,
                               mask_rows=mask_rows)

    def full(shape):
        return pl.BlockSpec(shape, lambda g, _s=len(shape): (0,) * _s)

    out = pl.pallas_call(
        kernel,
        out_shape=jax.ShapeDtypeStruct((n_groups, G, n_out_pad), jnp.float32),
        grid=(n_groups,),
        in_specs=[
            pl.BlockSpec(memory_space=pltpu.MemorySpace.SMEM),          # alphas (flat)
            pl.BlockSpec((None, Cin, L), lambda g: (g, 0, 0)),           # packed x
            full(seg_m.shape), full(seg_mt.shape), full(tapm.shape),
            full(bn_gb.shape), full(bn_w.shape), full(params['bn_b'].shape),
            full(w1_all.shape), full(hv_all.shape), full(dw_all.shape),
            full(wr_all.shape), full(br_all.shape),
            full(ow.shape), full(ob.shape),
        ],
        out_specs=pl.BlockSpec((None, G, n_out_pad), lambda g: (g, 0, 0)),
        # NOTE: at production sizes raise vmem_limit_bytes (~96-110 MiB on
        # v5e/v6e, keep <= ~56 MiB on v7x) so the resident-activation design
        # still fits; the defaults are plenty for these shapes.
        compiler_params=pltpu.CompilerParams(
            dimension_semantics=("parallel",)),
    )(alphas, xp, seg_m, seg_mt, tapm, bn_gb, bn_w, params['bn_b'],
      w1_all, hv_all, dw_all, wr_all, br_all, ow, ob)

    return out.reshape(Bp, n_out_pad)[:B, :n_out]


# --------------------------------- params -----------------------------------

def init_params(key, cfg):
    in_chan, bn, hid, K = cfg['in_chan'], cfg['bn_chan'], cfg['hid_chan'], cfg['kernel_size']
    n_out = cfg['n_src'] * cfg['out_chan']
    nblk = cfg['n_repeats'] * cfg['n_blocks']

    keys = jax.random.split(key, 4 + 6 * nblk)
    ki = iter(keys)

    def w(shape, scale=0.1):
        return (scale * jax.random.normal(next(ki), shape)).astype(jnp.float32)

    params = {
        'bn_gamma': jnp.ones((in_chan, 1), jnp.float32),
        'bn_beta': jnp.zeros((in_chan, 1), jnp.float32),
        'bn_w': w((bn, in_chan)),
        'bn_b': w((bn, 1)),
        'blocks': [],
        'out_alpha': jnp.full((1, 1), 0.25, jnp.float32),
        'out_w': w((n_out, bn)),
        'out_b': w((n_out, 1)),
    }
    for _ in range(nblk):
        params['blocks'].append({
            'w1': w((hid, bn)), 'b1': w((hid, 1)),
            'a1': jnp.full((1, 1), 0.25, jnp.float32),
            'g1': jnp.ones((hid, 1), jnp.float32), 'be1': jnp.zeros((hid, 1), jnp.float32),
            'dw': w((hid, K)), 'db': w((hid, 1)),
            'a2': jnp.full((1, 1), 0.25, jnp.float32),
            'g2': jnp.ones((hid, 1), jnp.float32), 'be2': jnp.zeros((hid, 1), jnp.float32),
            'wr': w((bn, hid)), 'br': w((bn, 1)),
        })
    return params


# ----------------------- pure-JAX reference (sanity) ------------------------

def tcn_forward_ref(x, params, cfg):
    def globln(x, g, b):
        m = jnp.mean(x, axis=(1, 2), keepdims=True)
        v = jnp.mean((x - m) ** 2, axis=(1, 2), keepdims=True)
        return g.reshape(1, -1, 1) * ((x - m) / jnp.sqrt(v + EPS)) + b.reshape(1, -1, 1)

    def pw(x, w, b):
        return jnp.einsum('oc,bct->bot', w, x) + b.reshape(1, -1, 1)

    def prelu(x, a):
        a = a.reshape(())
        return jnp.where(x > 0, x, a * x)

    def dwconv(x, w, b, dilation, padding):
        B, C, T = x.shape
        xp = jnp.pad(x, ((0, 0), (0, 0), (padding, padding)))
        out = jnp.zeros_like(x)
        for k in range(w.shape[1]):
            out = out + w[None, :, k:k + 1] * xp[:, :, k * dilation:k * dilation + T]
        return out + b.reshape(1, -1, 1)

    o = pw(globln(x, params['bn_gamma'], params['bn_beta']), params['bn_w'], params['bn_b'])
    idx = 0
    for _ in range(cfg['n_repeats']):
        for xb in range(cfg['n_blocks']):
            dil = 2 ** xb
            pad = (cfg['kernel_size'] - 1) * dil // 2
            p = params['blocks'][idx]
            idx += 1
            h = pw(o, p['w1'], p['b1'])
            h = prelu(h, p['a1'])
            h = globln(h, p['g1'], p['be1'])
            h = dwconv(h, p['dw'], p['db'], dil, pad)
            h = prelu(h, p['a2'])
            h = globln(h, p['g2'], p['be2'])
            o = o + pw(h, p['wr'], p['br'])
    pooled = prelu(jnp.mean(o, axis=-1), params['out_alpha'])
    return pooled @ params['out_w'].T + params['out_b'].reshape(1, -1)


# ---------------------------------- main ------------------------------------

if __name__ == "__main__":
    cfg = dict(in_chan=8, n_src=1, out_chan=24, n_blocks=2, n_repeats=2,
               bn_chan=16, hid_chan=32, kernel_size=3)
    B, T = 5, 32      # B=5, T=32 -> 4 samples lane-packed per tile, 2 groups

    key = jax.random.PRNGKey(0)
    kx, kp = jax.random.split(key)
    mixture_w = jax.random.normal(kx, (B, cfg['in_chan'], T), jnp.float32)
    params = init_params(kp, cfg)

    logits = tcn_forward(mixture_w, params, cfg)
    logits = jax.block_until_ready(logits)
    assert logits.shape == (B, cfg['n_src'] * cfg['out_chan'])

    with jax.default_matmul_precision("highest"):
        ref = jax.block_until_ready(tcn_forward_ref(mixture_w, params, cfg))
    np.testing.assert_allclose(np.asarray(logits), np.asarray(ref),
                               rtol=1e-2, atol=1e-2)

    print("KERNEL_OK")
</pallas_src>

<mosaic_0001>
module attributes {stable_mosaic.version = 11 : i64} {
  func.func @_tcn_kernel(%arg0: i32, %arg1: memref<9xf32, #tpu.memory_space<smem>>, %arg2: memref<1x8x128xf32, #tpu.memory_space<vmem>>, %arg3: memref<128x4xf32, #tpu.memory_space<vmem>>, %arg4: memref<4x128xf32, #tpu.memory_space<vmem>>, %arg5: memref<6x128xf32, #tpu.memory_space<vmem>>, %arg6: memref<8x2xf32, #tpu.memory_space<vmem>>, %arg7: memref<16x8xf32, #tpu.memory_space<vmem>>, %arg8: memref<16x1xf32, #tpu.memory_space<vmem>>, %arg9: memref<4x32x16xf32, #tpu.memory_space<vmem>>, %arg10: memref<4x32x6xf32, #tpu.memory_space<vmem>>, %arg11: memref<4x32x3xf32, #tpu.memory_space<vmem>>, %arg12: memref<4x16x32xf32, #tpu.memory_space<vmem>>, %arg13: memref<4x16x1xf32, #tpu.memory_space<vmem>>, %arg14: memref<16x128xf32, #tpu.memory_space<vmem>>, %arg15: memref<1x128xf32, #tpu.memory_space<vmem>>, %arg16: memref<1x4x128xf32, #tpu.memory_space<vmem>>) attributes {dimension_semantics = [#tpu.dimension_semantics<parallel>], iteration_bounds = array<i64: 2>, scalar_prefetch = 0 : i64, scratch_operands = 0 : i64, tpu.core_type = #tpu.core_type<tc>, window_params = [{transform_indices = @transform_0, window_bounds = array<i64: 9>}, {transform_indices = @transform_1, window_bounds = array<i64: 1, 8, 128>}, {pipeline_mode = #tpu.pipeline_mode<synchronous>, transform_indices = @transform_2, window_bounds = array<i64: 128, 4>}, {pipeline_mode = #tpu.pipeline_mode<synchronous>, transform_indices = @transform_3, window_bounds = array<i64: 4, 128>}, {pipeline_mode = #tpu.pipeline_mode<synchronous>, transform_indices = @transform_4, window_bounds = array<i64: 6, 128>}, {pipeline_mode = #tpu.pipeline_mode<synchronous>, transform_indices = @transform_5, window_bounds = array<i64: 8, 2>}, {pipeline_mode = #tpu.pipeline_mode<synchronous>, transform_indices = @transform_6, window_bounds = array<i64: 16, 8>}, {pipeline_mode = #tpu.pipeline_mode<synchronous>, transform_indices = @transform_7, window_bounds = array<i64: 16, 1>}, {pipeline_mode = #tpu.pipeline_mode<synchronous>, transform_indices = @transform_8, window_bounds = array<i64: 4, 32, 16>}, {pipeline_mode = #tpu.pipeline_mode<synchronous>, transform_indices = @transform_9, window_bounds = array<i64: 4, 32, 6>}, {pipeline_mode = #tpu.pipeline_mode<synchronous>, transform_indices = @transform_10, window_bounds = array<i64: 4, 32, 3>}, {pipeline_mode = #tpu.pipeline_mode<synchronous>, transform_indices = @transform_11, window_bounds = array<i64: 4, 16, 32>}, {pipeline_mode = #tpu.pipeline_mode<synchronous>, transform_indices = @transform_12, window_bounds = array<i64: 4, 16, 1>}, {pipeline_mode = #tpu.pipeline_mode<synchronous>, transform_indices = @transform_13, window_bounds = array<i64: 16, 128>}, {pipeline_mode = #tpu.pipeline_mode<synchronous>, transform_indices = @transform_14, window_bounds = array<i64: 1, 128>}, {transform_indices = @transform_15, window_bounds = array<i64: 1, 4, 128>}]} {
    %c0 = arith.constant 0 : index
    %c0_0 = arith.constant 0 : index
    %0 = vector.load %arg3[%c0, %c0_0] : memref<128x4xf32, #tpu.memory_space<vmem>>, vector<128x4xf32>
    %c0_1 = arith.constant 0 : index
    %c0_2 = arith.constant 0 : index
    %1 = vector.load %arg4[%c0_1, %c0_2] : memref<4x128xf32, #tpu.memory_space<vmem>>, vector<4x128xf32>
    %c0_3 = arith.constant 0 : index
    %c0_4 = arith.constant 0 : index
    %2 = vector.load %arg5[%c0_3, %c0_4] : memref<6x128xf32, #tpu.memory_space<vmem>>, vector<6x128xf32>
    %c0_5 = arith.constant 0 : index
    %c0_6 = arith.constant 0 : index
    %c0_7 = arith.constant 0 : index
    %3 = vector.load %arg2[%c0_5, %c0_6, %c0_7] : memref<1x8x128xf32, #tpu.memory_space<vmem>>, vector<1x8x128xf32>
    %4 = vector.shape_cast %3 : vector<1x8x128xf32> to vector<8x128xf32>
    %c0_8 = arith.constant 0 : index
    %c0_9 = arith.constant 0 : index
    %5 = vector.load %arg6[%c0_8, %c0_9] : memref<8x2xf32, #tpu.memory_space<vmem>>, vector<8x1xf32>
    %c0_10 = arith.constant 0 : index
    %c1 = arith.constant 1 : index
    %6 = vector.load %arg6[%c0_10, %c1] : memref<8x2xf32, #tpu.memory_space<vmem>>, vector<8x1xf32>
    %cst = arith.constant dense<0.000000e+00> : vector<8x4xf32>
    %7 = tpu.matmul %4, %0, %cst {dimension_numbers = #tpu.dot_dimension_numbers<[1], [0], [0], [1], [0, 0, 1, 1], [], []>} : vector<8x128xf32>, vector<128x4xf32>, vector<8x4xf32> -> vector<8x4xf32>
    %8 = arith.mulf %4, %4 : vector<8x128xf32>
    %cst_11 = arith.constant dense<0.000000e+00> : vector<8x4xf32>
    %9 = tpu.matmul %8, %0, %cst_11 {dimension_numbers = #tpu.dot_dimension_numbers<[1], [0], [0], [1], [0, 0, 1, 1], [], []>} : vector<8x128xf32>, vector<128x4xf32>, vector<8x4xf32> -> vector<8x4xf32>
    %cst_12 = arith.constant dense<0.000000e+00> : vector<4xf32>
    %10 = vector.multi_reduction <add>, %7, %cst_12 [0] : vector<8x4xf32> to vector<4xf32>
    %11 = vector.shape_cast %10 : vector<4xf32> to vector<1x4xf32>
    %cst_13 = arith.constant dense<0.000000e+00> : vector<4xf32>
    %12 = vector.multi_reduction <add>, %9, %cst_13 [0] : vector<8x4xf32> to vector<4xf32>
    %13 = vector.shape_cast %12 : vector<4xf32> to vector<1x4xf32>
    %cst_14 = arith.constant 3.906250e-03 : f32
    %14 = vector.broadcast %cst_14 : f32 to vector<1x4xf32>
    %15 = arith.mulf %11, %14 : vector<1x4xf32>
    %cst_15 = arith.constant 3.906250e-03 : f32
    %16 = vector.broadcast %cst_15 : f32 to vector<1x4xf32>
    %17 = arith.mulf %13, %16 : vector<1x4xf32>
    %18 = arith.mulf %15, %15 : vector<1x4xf32>
    %19 = arith.subf %17, %18 : vector<1x4xf32>
    %cst_16 = arith.constant 0.000000e+00 : f32
    %20 = vector.broadcast %cst_16 : f32 to vector<1x4xf32>
    %21 = arith.maximumf %19, %20 : vector<1x4xf32>
    %cst_17 = arith.constant 9.99999993E-9 : f32
    %22 = vector.broadcast %cst_17 : f32 to vector<1x4xf32>
    %23 = arith.addf %21, %22 : vector<1x4xf32>
    %24 = math.rsqrt %23 : vector<1x4xf32>
    %cst_18 = arith.constant 0.000000e+00 : f32
    %25 = vector.broadcast %cst_18 : f32 to vector<1x4xf32>
    %26 = arith.subf %25, %15 : vector<1x4xf32>
    %27 = arith.mulf %26, %24 : vector<1x4xf32>
    %28 = tpu.concatenate %24, %27 in 0 : vector<1x4xf32>, vector<1x4xf32> -> vector<2x4xf32>
    %cst_19 = arith.constant dense<0.000000e+00> : vector<2x128xf32>
    %29 = tpu.matmul %28, %1, %cst_19 {dimension_numbers = #tpu.dot_dimension_numbers<[1], [0], [0], [1], [0, 0, 1, 1], [], []>} : vector<2x4xf32>, vector<4x128xf32>, vector<2x128xf32> -> vector<2x128xf32>
    %30 = vector.extract_strided_slice %29 {offsets = [0, 0], sizes = [1, 128], strides = [1, 1]} : vector<2x128xf32> to vector<1x128xf32>
    %31 = vector.broadcast %30 : vector<1x128xf32> to vector<8x128xf32>
    %32 = arith.mulf %4, %31 : vector<8x128xf32>
    %33 = vector.extract_strided_slice %29 {offsets = [1, 0], sizes = [1, 128], strides = [1, 1]} : vector<2x128xf32> to vector<1x128xf32>
    %34 = vector.broadcast %33 : vector<1x128xf32> to vector<8x128xf32>
    %35 = arith.addf %32, %34 : vector<8x128xf32>
    %36 = vector.broadcast %5 : vector<8x1xf32> to vector<8x128xf32>
    %37 = arith.mulf %36, %35 : vector<8x128xf32>
    %38 = vector.broadcast %6 : vector<8x1xf32> to vector<8x128xf32>
    %39 = arith.addf %37, %38 : vector<8x128xf32>
    %c0_20 = arith.constant 0 : index
    %c0_21 = arith.constant 0 : index
    %40 = vector.load %arg7[%c0_20, %c0_21] : memref<16x8xf32, #tpu.memory_space<vmem>>, vector<16x8xf32>
    %cst_22 = arith.constant dense<0.000000e+00> : vector<16x128xf32>
    %41 = tpu.matmul %40, %39, %cst_22 {dimension_numbers = #tpu.dot_dimension_numbers<[1], [0], [0], [1], [0, 0, 1, 1], [], []>} : vector<16x8xf32>, vector<8x128xf32>, vector<16x128xf32> -> vector<16x128xf32>
    %c0_23 = arith.constant 0 : index
    %c0_24 = arith.constant 0 : index
    %42 = vector.load %arg8[%c0_23, %c0_24] : memref<16x1xf32, #tpu.memory_space<vmem>>, vector<16x1xf32>
    %43 = vector.broadcast %42 : vector<16x1xf32> to vector<16x128xf32>
    %44 = arith.addf %41, %43 : vector<16x128xf32>
    %c0_25 = arith.constant 0 : index
    %c0_26 = arith.constant 0 : index
    %c0_27 = arith.constant 0 : index
    %45 = vector.load %arg10[%c0_25, %c0_26, %c0_27] : memref<4x32x6xf32, #tpu.memory_space<vmem>>, vector<1x32x6xf32>
    %46 = vector.shape_cast %45 : vector<1x32x6xf32> to vector<32x6xf32>
    %c0_28 = arith.constant 0 : index
    %c0_29 = arith.constant 0 : index
    %c0_30 = arith.constant 0 : index
    %47 = vector.load %arg11[%c0_28, %c0_29, %c0_30] : memref<4x32x3xf32, #tpu.memory_space<vmem>>, vector<1x32x3xf32>
    %48 = vector.shape_cast %47 : vector<1x32x3xf32> to vector<32x3xf32>
    %c0_31 = arith.constant 0 : index
    %c0_32 = arith.constant 0 : index
    %c0_33 = arith.constant 0 : index
    %49 = vector.load %arg9[%c0_31, %c0_32, %c0_33] : memref<4x32x16xf32, #tpu.memory_space<vmem>>, vector<1x32x16xf32>
    %50 = vector.shape_cast %49 : vector<1x32x16xf32> to vector<32x16xf32>
    %c0_34 = arith.constant 0 : index
    %c0_35 = arith.constant 0 : index
    %c0_36 = arith.constant 0 : index
    %51 = vector.load %arg12[%c0_34, %c0_35, %c0_36] : memref<4x16x32xf32, #tpu.memory_space<vmem>>, vector<1x16x32xf32>
    %52 = vector.shape_cast %51 : vector<1x16x32xf32> to vector<16x32xf32>
    %c0_37 = arith.constant 0 : index
    %53 = memref.load %arg1[%c0_37] : memref<9xf32, #tpu.memory_space<smem>>
    %c1_38 = arith.constant 1 : index
    %54 = memref.load %arg1[%c1_38] : memref<9xf32, #tpu.memory_space<smem>>
    %cst_39 = arith.constant dense<0.000000e+00> : vector<32x128xf32>
    %55 = tpu.matmul %50, %44, %cst_39 {dimension_numbers = #tpu.dot_dimension_numbers<[1], [0], [0], [1], [0, 0, 1, 1], [], []>} : vector<32x16xf32>, vector<16x128xf32>, vector<32x128xf32> -> vector<32x128xf32>
    %56 = vector.extract_strided_slice %46 {offsets = [0, 0], sizes = [32, 1], strides = [1, 1]} : vector<32x6xf32> to vector<32x1xf32>
    %57 = vector.broadcast %56 : vector<32x1xf32> to vector<32x128xf32>
    %58 = arith.addf %55, %57 : vector<32x128xf32>
    %cst_40 = arith.constant 0.000000e+00 : f32
    %59 = vector.broadcast %cst_40 : f32 to vector<32x128xf32>
    %60 = arith.cmpf ogt, %58, %59 : vector<32x128xf32>
    %61 = vector.broadcast %53 : f32 to vector<32x128xf32>
    %62 = arith.mulf %61, %58 : vector<32x128xf32>
    %63 = arith.select %60, %58, %62 : vector<32x128xi1>, vector<32x128xf32>
    %64 = vector.extract_strided_slice %46 {offsets = [0, 1], sizes = [32, 1], strides = [1, 1]} : vector<32x6xf32> to vector<32x1xf32>
    %65 = vector.extract_strided_slice %46 {offsets = [0, 2], sizes = [32, 1], strides = [1, 1]} : vector<32x6xf32> to vector<32x1xf32>
    %cst_41 = arith.constant dense<0.000000e+00> : vector<32x4xf32>
    %66 = tpu.matmul %63, %0, %cst_41 {dimension_numbers = #tpu.dot_dimension_numbers<[1], [0], [0], [1], [0, 0, 1, 1], [], []>} : vector<32x128xf32>, vector<128x4xf32>, vector<32x4xf32> -> vector<32x4xf32>
    %67 = arith.mulf %63, %63 : vector<32x128xf32>
    %cst_42 = arith.constant dense<0.000000e+00> : vector<32x4xf32>
    %68 = tpu.matmul %67, %0, %cst_42 {dimension_numbers = #tpu.dot_dimension_numbers<[1], [0], [0], [1], [0, 0, 1, 1], [], []>} : vector<32x128xf32>, vector<128x4xf32>, vector<32x4xf32> -> vector<32x4xf32>
    %cst_43 = arith.constant dense<0.000000e+00> : vector<4xf32>
    %69 = vector.multi_reduction <add>, %66, %cst_43 [0] : vector<32x4xf32> to vector<4xf32>
    %70 = vector.shape_cast %69 : vector<4xf32> to vector<1x4xf32>
    %cst_44 = arith.constant dense<0.000000e+00> : vector<4xf32>
    %71 = vector.multi_reduction <add>, %68, %cst_44 [0] : vector<32x4xf32> to vector<4xf32>
    %72 = vector.shape_cast %71 : vector<4xf32> to vector<1x4xf32>
    %cst_45 = arith.constant 9.765625E-4 : f32
    %73 = vector.broadcast %cst_45 : f32 to vector<1x4xf32>
    %74 = arith.mulf %70, %73 : vector<1x4xf32>
    %cst_46 = arith.constant 9.765625E-4 : f32
    %75 = vector.broadcast %cst_46 : f32 to vector<1x4xf32>
    %76 = arith.mulf %72, %75 : vector<1x4xf32>
    %77 = arith.mulf %74, %74 : vector<1x4xf32>
    %78 = arith.subf %76, %77 : vector<1x4xf32>
    %cst_47 = arith.constant 0.000000e+00 : f32
    %79 = vector.broadcast %cst_47 : f32 to vector<1x4xf32>
    %80 = arith.maximumf %78, %79 : vector<1x4xf32>
    %cst_48 = arith.constant 9.99999993E-9 : f32
    %81 = vector.broadcast %cst_48 : f32 to vector<1x4xf32>
    %82 = arith.addf %80, %81 : vector<1x4xf32>
    %83 = math.rsqrt %82 : vector<1x4xf32>
    %cst_49 = arith.constant 0.000000e+00 : f32
    %84 = vector.broadcast %cst_49 : f32 to vector<1x4xf32>
    %85 = arith.subf %84, %74 : vector<1x4xf32>
    %86 = arith.mulf %85, %83 : vector<1x4xf32>
    %87 = tpu.concatenate %83, %86 in 0 : vector<1x4xf32>, vector<1x4xf32> -> vector<2x4xf32>
    %cst_50 = arith.constant dense<0.000000e+00> : vector<2x128xf32>
    %88 = tpu.matmul %87, %1, %cst_50 {dimension_numbers = #tpu.dot_dimension_numbers<[1], [0], [0], [1], [0, 0, 1, 1], [], []>} : vector<2x4xf32>, vector<4x128xf32>, vector<2x128xf32> -> vector<2x128xf32>
    %89 = vector.extract_strided_slice %88 {offsets = [0, 0], sizes = [1, 128], strides = [1, 1]} : vector<2x128xf32> to vector<1x128xf32>
    %90 = vector.broadcast %89 : vector<1x128xf32> to vector<32x128xf32>
    %91 = arith.mulf %63, %90 : vector<32x128xf32>
    %92 = vector.extract_strided_slice %88 {offsets = [1, 0], sizes = [1, 128], strides = [1, 1]} : vector<2x128xf32> to vector<1x128xf32>
    %93 = vector.broadcast %92 : vector<1x128xf32> to vector<32x128xf32>
    %94 = arith.addf %91, %93 : vector<32x128xf32>
    %95 = vector.broadcast %64 : vector<32x1xf32> to vector<32x128xf32>
    %96 = arith.mulf %95, %94 : vector<32x128xf32>
    %97 = vector.broadcast %65 : vector<32x1xf32> to vector<32x128xf32>
    %98 = arith.addf %96, %97 : vector<32x128xf32>
    %c1_i32 = arith.constant 1 : i32
    %99 = tpu.dynamic_rotate %98 by %c1_i32 dim 1 : vector<32x128xf32>, i32 -> vector<32x128xf32>
    %100 = vector.extract_strided_slice %2 {offsets = [0, 0], sizes = [1, 128], strides = [1, 1]} : vector<6x128xf32> to vector<1x128xf32>
    %101 = vector.broadcast %100 : vector<1x128xf32> to vector<32x128xf32>
    %102 = arith.mulf %99, %101 : vector<32x128xf32>
    %103 = vector.extract_strided_slice %48 {offsets = [0, 0], sizes = [32, 1], strides = [1, 1]} : vector<32x3xf32> to vector<32x1xf32>
    %104 = vector.broadcast %103 : vector<32x1xf32> to vector<32x128xf32>
    %105 = arith.mulf %104, %102 : vector<32x128xf32>
    %106 = vector.extract_strided_slice %48 {offsets = [0, 1], sizes = [32, 1], strides = [1, 1]} : vector<32x3xf32> to vector<32x1xf32>
    %107 = vector.broadcast %106 : vector<32x1xf32> to vector<32x128xf32>
    %108 = arith.mulf %107, %98 : vector<32x128xf32>
    %109 = arith.addf %105, %108 : vector<32x128xf32>
    %c127_i32 = arith.constant 127 : i32
    %110 = tpu.dynamic_rotate %98 by %c127_i32 dim 1 : vector<32x128xf32>, i32 -> vector<32x128xf32>
    %111 = vector.extract_strided_slice %2 {offsets = [2, 0], sizes = [1, 128], strides = [1, 1]} : vector<6x128xf32> to vector<1x128xf32>
    %112 = vector.broadcast %111 : vector<1x128xf32> to vector<32x128xf32>
    %113 = arith.mulf %110, %112 : vector<32x128xf32>
    %114 = vector.extract_strided_slice %48 {offsets = [0, 2], sizes = [32, 1], strides = [1, 1]} : vector<32x3xf32> to vector<32x1xf32>
    %115 = vector.broadcast %114 : vector<32x1xf32> to vector<32x128xf32>
    %116 = arith.mulf %115, %113 : vector<32x128xf32>
    %117 = arith.addf %109, %116 : vector<32x128xf32>
    %118 = vector.extract_strided_slice %46 {offsets = [0, 3], sizes = [32, 1], strides = [1, 1]} : vector<32x6xf32> to vector<32x1xf32>
    %119 = vector.broadcast %118 : vector<32x1xf32> to vector<32x128xf32>
    %120 = arith.addf %117, %119 : vector<32x128xf32>
    %cst_51 = arith.constant 0.000000e+00 : f32
    %121 = vector.broadcast %cst_51 : f32 to vector<32x128xf32>
    %122 = arith.cmpf ogt, %120, %121 : vector<32x128xf32>
    %123 = vector.broadcast %54 : f32 to vector<32x128xf32>
    %124 = arith.mulf %123, %120 : vector<32x128xf32>
    %125 = arith.select %122, %120, %124 : vector<32x128xi1>, vector<32x128xf32>
    %126 = vector.extract_strided_slice %46 {offsets = [0, 4], sizes = [32, 1], strides = [1, 1]} : vector<32x6xf32> to vector<32x1xf32>
    %127 = vector.extract_strided_slice %46 {offsets = [0, 5], sizes = [32, 1], strides = [1, 1]} : vector<32x6xf32> to vector<32x1xf32>
    %cst_52 = arith.constant dense<0.000000e+00> : vector<32x4xf32>
    %128 = tpu.matmul %125, %0, %cst_52 {dimension_numbers = #tpu.dot_dimension_numbers<[1], [0], [0], [1], [0, 0, 1, 1], [], []>} : vector<32x128xf32>, vector<128x4xf32>, vector<32x4xf32> -> vector<32x4xf32>
    %129 = arith.mulf %125, %125 : vector<32x128xf32>
    %cst_53 = arith.constant dense<0.000000e+00> : vector<32x4xf32>
    %130 = tpu.matmul %129, %0, %cst_53 {dimension_numbers = #tpu.dot_dimension_numbers<[1], [0], [0], [1], [0, 0, 1, 1], [], []>} : vector<32x128xf32>, vector<128x4xf32>, vector<32x4xf32> -> vector<32x4xf32>
    %cst_54 = arith.constant dense<0.000000e+00> : vector<4xf32>
    %131 = vector.multi_reduction <add>, %128, %cst_54 [0] : vector<32x4xf32> to vector<4xf32>
    %132 = vector.shape_cast %131 : vector<4xf32> to vector<1x4xf32>
    %cst_55 = arith.constant dense<0.000000e+00> : vector<4xf32>
    %133 = vector.multi_reduction <add>, %130, %cst_55 [0] : vector<32x4xf32> to vector<4xf32>
    %134 = vector.shape_cast %133 : vector<4xf32> to vector<1x4xf32>
    %cst_56 = arith.constant 9.765625E-4 : f32
    %135 = vector.broadcast %cst_56 : f32 to vector<1x4xf32>
    %136 = arith.mulf %132, %135 : vector<1x4xf32>
    %cst_57 = arith.constant 9.765625E-4 : f32
    %137 = vector.broadcast %cst_57 : f32 to vector<1x4xf32>
    %138 = arith.mulf %134, %137 : vector<1x4xf32>
    %139 = arith.mulf %136, %136 : vector<1x4xf32>
    %140 = arith.subf %138, %139 : vector<1x4xf32>
    %cst_58 = arith.constant 0.000000e+00 : f32
    %141 = vector.broadcast %cst_58 : f32 to vector<1x4xf32>
    %142 = arith.maximumf %140, %141 : vector<1x4xf32>
    %cst_59 = arith.constant 9.99999993E-9 : f32
    %143 = vector.broadcast %cst_59 : f32 to vector<1x4xf32>
    %144 = arith.addf %142, %143 : vector<1x4xf32>
    %145 = math.rsqrt %144 : vector<1x4xf32>
    %cst_60 = arith.constant 0.000000e+00 : f32
    %146 = vector.broadcast %cst_60 : f32 to vector<1x4xf32>
    %147 = arith.subf %146, %136 : vector<1x4xf32>
    %148 = arith.mulf %147, %145 : vector<1x4xf32>
    %149 = tpu.concatenate %145, %148 in 0 : vector<1x4xf32>, vector<1x4xf32> -> vector<2x4xf32>
    %cst_61 = arith.constant dense<0.000000e+00> : vector<2x128xf32>
    %150 = tpu.matmul %149, %1, %cst_61 {dimension_numbers = #tpu.dot_dimension_numbers<[1], [0], [0], [1], [0, 0, 1, 1], [], []>} : vector<2x4xf32>, vector<4x128xf32>, vector<2x128xf32> -> vector<2x128xf32>
    %151 = vector.extract_strided_slice %150 {offsets = [0, 0], sizes = [1, 128], strides = [1, 1]} : vector<2x128xf32> to vector<1x128xf32>
    %152 = vector.broadcast %151 : vector<1x128xf32> to vector<32x128xf32>
    %153 = arith.mulf %125, %152 : vector<32x128xf32>
    %154 = vector.extract_strided_slice %150 {offsets = [1, 0], sizes = [1, 128], strides = [1, 1]} : vector<2x128xf32> to vector<1x128xf32>
    %155 = vector.broadcast %154 : vector<1x128xf32> to vector<32x128xf32>
    %156 = arith.addf %153, %155 : vector<32x128xf32>
    %157 = vector.broadcast %126 : vector<32x1xf32> to vector<32x128xf32>
    %158 = arith.mulf %157, %156 : vector<32x128xf32>
    %159 = vector.broadcast %127 : vector<32x1xf32> to vector<32x128xf32>
    %160 = arith.addf %158, %159 : vector<32x128xf32>
    %cst_62 = arith.constant dense<0.000000e+00> : vector<16x128xf32>
    %161 = tpu.matmul %52, %160, %cst_62 {dimension_numbers = #tpu.dot_dimension_numbers<[1], [0], [0], [1], [0, 0, 1, 1], [], []>} : vector<16x32xf32>, vector<32x128xf32>, vector<16x128xf32> -> vector<16x128xf32>
    %162 = arith.addf %44, %161 : vector<16x128xf32>
    %c0_63 = arith.constant 0 : index
    %c0_64 = arith.constant 0 : index
    %c0_65 = arith.constant 0 : index
    %163 = vector.load %arg13[%c0_63, %c0_64, %c0_65] : memref<4x16x1xf32, #tpu.memory_space<vmem>>, vector<1x16x1xf32>
    %164 = vector.shape_cast %163 : vector<1x16x1xf32> to vector<16x1xf32>
    %165 = vector.broadcast %164 : vector<16x1xf32> to vector<16x128xf32>
    %166 = arith.addf %162, %165 : vector<16x128xf32>
    %c1_66 = arith.constant 1 : index
    %c0_67 = arith.constant 0 : index
    %c0_68 = arith.constant 0 : index
    %167 = vector.load %arg10[%c1_66, %c0_67, %c0_68] : memref<4x32x6xf32, #tpu.memory_space<vmem>>, vector<1x32x6xf32>
    %168 = vector.shape_cast %167 : vector<1x32x6xf32> to vector<32x6xf32>
    %c1_69 = arith.constant 1 : index
    %c0_70 = arith.constant 0 : index
    %c0_71 = arith.constant 0 : index
    %169 = vector.load %arg11[%c1_69, %c0_70, %c0_71] : memref<4x32x3xf32, #tpu.memory_space<vmem>>, vector<1x32x3xf32>
    %170 = vector.shape_cast %169 : vector<1x32x3xf32> to vector<32x3xf32>
    %c1_72 = arith.constant 1 : index
    %c0_73 = arith.constant 0 : index
    %c0_74 = arith.constant 0 : index
    %171 = vector.load %arg9[%c1_72, %c0_73, %c0_74] : memref<4x32x16xf32, #tpu.memory_space<vmem>>, vector<1x32x16xf32>
    %172 = vector.shape_cast %171 : vector<1x32x16xf32> to vector<32x16xf32>
    %c1_75 = arith.constant 1 : index
    %c0_76 = arith.constant 0 : index
    %c0_77 = arith.constant 0 : index
    %173 = vector.load %arg12[%c1_75, %c0_76, %c0_77] : memref<4x16x32xf32, #tpu.memory_space<vmem>>, vector<1x16x32xf32>
    %174 = vector.shape_cast %173 : vector<1x16x32xf32> to vector<16x32xf32>
    %c2 = arith.constant 2 : index
    %175 = memref.load %arg1[%c2] : memref<9xf32, #tpu.memory_space<smem>>
    %c3 = arith.constant 3 : index
    %176 = memref.load %arg1[%c3] : memref<9xf32, #tpu.memory_space<smem>>
    %cst_78 = arith.constant dense<0.000000e+00> : vector<32x128xf32>
    %177 = tpu.matmul %172, %166, %cst_78 {dimension_numbers = #tpu.dot_dimension_numbers<[1], [0], [0], [1], [0, 0, 1, 1], [], []>} : vector<32x16xf32>, vector<16x128xf32>, vector<32x128xf32> -> vector<32x128xf32>
    %178 = vector.extract_strided_slice %168 {offsets = [0, 0], sizes = [32, 1], strides = [1, 1]} : vector<32x6xf32> to vector<32x1xf32>
    %179 = vector.broadcast %178 : vector<32x1xf32> to vector<32x128xf32>
    %180 = arith.addf %177, %179 : vector<32x128xf32>
    %cst_79 = arith.constant 0.000000e+00 : f32
    %181 = vector.broadcast %cst_79 : f32 to vector<32x128xf32>
    %182 = arith.cmpf ogt, %180, %181 : vector<32x128xf32>
    %183 = vector.broadcast %175 : f32 to vector<32x128xf32>
    %184 = arith.mulf %183, %180 : vector<32x128xf32>
    %185 = arith.select %182, %180, %184 : vector<32x128xi1>, vector<32x128xf32>
    %186 = vector.extract_strided_slice %168 {offsets = [0, 1], sizes = [32, 1], strides = [1, 1]} : vector<32x6xf32> to vector<32x1xf32>
    %187 = vector.extract_strided_slice %168 {offsets = [0, 2], sizes = [32, 1], strides = [1, 1]} : vector<32x6xf32> to vector<32x1xf32>
    %cst_80 = arith.constant dense<0.000000e+00> : vector<32x4xf32>
    %188 = tpu.matmul %185, %0, %cst_80 {dimension_numbers = #tpu.dot_dimension_numbers<[1], [0], [0], [1], [0, 0, 1, 1], [], []>} : vector<32x128xf32>, vector<128x4xf32>, vector<32x4xf32> -> vector<32x4xf32>
    %189 = arith.mulf %185, %185 : vector<32x128xf32>
    %cst_81 = arith.constant dense<0.000000e+00> : vector<32x4xf32>
    %190 = tpu.matmul %189, %0, %cst_81 {dimension_numbers = #tpu.dot_dimension_numbers<[1], [0], [0], [1], [0, 0, 1, 1], [], []>} : vector<32x128xf32>, vector<128x4xf32>, vector<32x4xf32> -> vector<32x4xf32>
    %cst_82 = arith.constant dense<0.000000e+00> : vector<4xf32>
    %191 = vector.multi_reduction <add>, %188, %cst_82 [0] : vector<32x4xf32> to vector<4xf32>
    %192 = vector.shape_cast %191 : vector<4xf32> to vector<1x4xf32>
    %cst_83 = arith.constant dense<0.000000e+00> : vector<4xf32>
    %193 = vector.multi_reduction <add>, %190, %cst_83 [0] : vector<32x4xf32> to vector<4xf32>
    %194 = vector.shape_cast %193 : vector<4xf32> to vector<1x4xf32>
    %cst_84 = arith.constant 9.765625E-4 : f32
    %195 = vector.broadcast %cst_84 : f32 to vector<1x4xf32>
    %196 = arith.mulf %192, %195 : vector<1x4xf32>
    %cst_85 = arith.constant 9.765625E-4 : f32
    %197 = vector.broadcast %cst_85 : f32 to vector<1x4xf32>
    %198 = arith.mulf %194, %197 : vector<1x4xf32>
    %199 = arith.mulf %196, %196 : vector<1x4xf32>
    %200 = arith.subf %198, %199 : vector<1x4xf32>
    %cst_86 = arith.constant 0.000000e+00 : f32
    %201 = vector.broadcast %cst_86 : f32 to vector<1x4xf32>
    %202 = arith.maximumf %200, %201 : vector<1x4xf32>
    %cst_87 = arith.constant 9.99999993E-9 : f32
    %203 = vector.broadcast %cst_87 : f32 to vector<1x4xf32>
    %204 = arith.addf %202, %203 : vector<1x4xf32>
    %205 = math.rsqrt %204 : vector<1x4xf32>
    %cst_88 = arith.constant 0.000000e+00 : f32
    %206 = vector.broadcast %cst_88 : f32 to vector<1x4xf32>
    %207 = arith.subf %206, %196 : vector<1x4xf32>
    %208 = arith.mulf %207, %205 : vector<1x4xf32>
    %209 = tpu.concatenate %205, %208 in 0 : vector<1x4xf32>, vector<1x4xf32> -> vector<2x4xf32>
    %cst_89 = arith.constant dense<0.000000e+00> : vector<2x128xf32>
    %210 = tpu.matmul %209, %1, %cst_89 {dimension_numbers = #tpu.dot_dimension_numbers<[1], [0], [0], [1], [0, 0, 1, 1], [], []>} : vector<2x4xf32>, vector<4x128xf32>, vector<2x128xf32> -> vector<2x128xf32>
    %211 = vector.extract_strided_slice %210 {offsets = [0, 0], sizes = [1, 128], strides = [1, 1]} : vector<2x128xf32> to vector<1x128xf32>
    %212 = vector.broadcast %211 : vector<1x128xf32> to vector<32x128xf32>
    %213 = arith.mulf %185, %212 : vector<32x128xf32>
    %214 = vector.extract_strided_slice %210 {offsets = [1, 0], sizes = [1, 128], strides = [1, 1]} : vector<2x128xf32> to vector<1x128xf32>
    %215 = vector.broadcast %214 : vector<1x128xf32> to vector<32x128xf32>
    %216 = arith.addf %213, %215 : vector<32x128xf32>
    %217 = vector.broadcast %186 : vector<32x1xf32> to vector<32x128xf32>
    %218 = arith.mulf %217, %216 : vector<32x128xf32>
    %219 = vector.broadcast %187 : vector<32x1xf32> to vector<32x128xf32>
    %220 = arith.addf %218, %219 : vector<32x128xf32>
    %c2_i32 = arith.constant 2 : i32
    %221 = tpu.dynamic_rotate %220 by %c2_i32 dim 1 : vector<32x128xf32>, i32 -> vector<32x128xf32>
    %222 = vector.extract_strided_slice %2 {offsets = [3, 0], sizes = [1, 128], strides = [1, 1]} : vector<6x128xf32> to vector<1x128xf32>
    %223 = vector.broadcast %222 : vector<1x128xf32> to vector<32x128xf32>
    %224 = arith.mulf %221, %223 : vector<32x128xf32>
    %225 = vector.extract_strided_slice %170 {offsets = [0, 0], sizes = [32, 1], strides = [1, 1]} : vector<32x3xf32> to vector<32x1xf32>
    %226 = vector.broadcast %225 : vector<32x1xf32> to vector<32x128xf32>
    %227 = arith.mulf %226, %224 : vector<32x128xf32>
    %228 = vector.extract_strided_slice %170 {offsets = [0, 1], sizes = [32, 1], strides = [1, 1]} : vector<32x3xf32> to vector<32x1xf32>
    %229 = vector.broadcast %228 : vector<32x1xf32> to vector<32x128xf32>
    %230 = arith.mulf %229, %220 : vector<32x128xf32>
    %231 = arith.addf %227, %230 : vector<32x128xf32>
    %c126_i32 = arith.constant 126 : i32
    %232 = tpu.dynamic_rotate %220 by %c126_i32 dim 1 : vector<32x128xf32>, i32 -> vector<32x128xf32>
    %233 = vector.extract_strided_slice %2 {offsets = [5, 0], sizes = [1, 128], strides = [1, 1]} : vector<6x128xf32> to vector<1x128xf32>
    %234 = vector.broadcast %233 : vector<1x128xf32> to vector<32x128xf32>
    %235 = arith.mulf %232, %234 : vector<32x128xf32>
    %236 = vector.extract_strided_slice %170 {offsets = [0, 2], sizes = [32, 1], strides = [1, 1]} : vector<32x3xf32> to vector<32x1xf32>
    %237 = vector.broadcast %236 : vector<32x1xf32> to vector<32x128xf32>
    %238 = arith.mulf %237, %235 : vector<32x128xf32>
    %239 = arith.addf %231, %238 : vector<32x128xf32>
    %240 = vector.extract_strided_slice %168 {offsets = [0, 3], sizes = [32, 1], strides = [1, 1]} : vector<32x6xf32> to vector<32x1xf32>
    %241 = vector.broadcast %240 : vector<32x1xf32> to vector<32x128xf32>
    %242 = arith.addf %239, %241 : vector<32x128xf32>
    %cst_90 = arith.constant 0.000000e+00 : f32
    %243 = vector.broadcast %cst_90 : f32 to vector<32x128xf32>
    %244 = arith.cmpf ogt, %242, %243 : vector<32x128xf32>
    %245 = vector.broadcast %176 : f32 to vector<32x128xf32>
    %246 = arith.mulf %245, %242 : vector<32x128xf32>
    %247 = arith.select %244, %242, %246 : vector<32x128xi1>, vector<32x128xf32>
    %248 = vector.extract_strided_slice %168 {offsets = [0, 4], sizes = [32, 1], strides = [1, 1]} : vector<32x6xf32> to vector<32x1xf32>
    %249 = vector.extract_strided_slice %168 {offsets = [0, 5], sizes = [32, 1], strides = [1, 1]} : vector<32x6xf32> to vector<32x1xf32>
    %cst_91 = arith.constant dense<0.000000e+00> : vector<32x4xf32>
    %250 = tpu.matmul %247, %0, %cst_91 {dimension_numbers = #tpu.dot_dimension_numbers<[1], [0], [0], [1], [0, 0, 1, 1], [], []>} : vector<32x128xf32>, vector<128x4xf32>, vector<32x4xf32> -> vector<32x4xf32>
    %251 = arith.mulf %247, %247 : vector<32x128xf32>
    %cst_92 = arith.constant dense<0.000000e+00> : vector<32x4xf32>
    %252 = tpu.matmul %251, %0, %cst_92 {dimension_numbers = #tpu.dot_dimension_numbers<[1], [0], [0], [1], [0, 0, 1, 1], [], []>} : vector<32x128xf32>, vector<128x4xf32>, vector<32x4xf32> -> vector<32x4xf32>
    %cst_93 = arith.constant dense<0.000000e+00> : vector<4xf32>
    %253 = vector.multi_reduction <add>, %250, %cst_93 [0] : vector<32x4xf32> to vector<4xf32>
    %254 = vector.shape_cast %253 : vector<4xf32> to vector<1x4xf32>
    %cst_94 = arith.constant dense<0.000000e+00> : vector<4xf32>
    %255 = vector.multi_reduction <add>, %252, %cst_94 [0] : vector<32x4xf32> to vector<4xf32>
    %256 = vector.shape_cast %255 : vector<4xf32> to vector<1x4xf32>
    %cst_95 = arith.constant 9.765625E-4 : f32
    %257 = vector.broadcast %cst_95 : f32 to vector<1x4xf32>
    %258 = arith.mulf %254, %257 : vector<1x4xf32>
    %cst_96 = arith.constant 9.765625E-4 : f32
    %259 = vector.broadcast %cst_96 : f32 to vector<1x4xf32>
    %260 = arith.mulf %256, %259 : vector<1x4xf32>
    %261 = arith.mulf %258, %258 : vector<1x4xf32>
    %262 = arith.subf %260, %261 : vector<1x4xf32>
    %cst_97 = arith.constant 0.000000e+00 : f32
    %263 = vector.broadcast %cst_97 : f32 to vector<1x4xf32>
    %264 = arith.maximumf %262, %263 : vector<1x4xf32>
    %cst_98 = arith.constant 9.99999993E-9 : f32
    %265 = vector.broadcast %cst_98 : f32 to vector<1x4xf32>
    %266 = arith.addf %264, %265 : vector<1x4xf32>
    %267 = math.rsqrt %266 : vector<1x4xf32>
    %cst_99 = arith.constant 0.000000e+00 : f32
    %268 = vector.broadcast %cst_99 : f32 to vector<1x4xf32>
    %269 = arith.subf %268, %258 : vector<1x4xf32>
    %270 = arith.mulf %269, %267 : vector<1x4xf32>
    %271 = tpu.concatenate %267, %270 in 0 : vector<1x4xf32>, vector<1x4xf32> -> vector<2x4xf32>
    %cst_100 = arith.constant dense<0.000000e+00> : vector<2x128xf32>
    %272 = tpu.matmul %271, %1, %cst_100 {dimension_numbers = #tpu.dot_dimension_numbers<[1], [0], [0], [1], [0, 0, 1, 1], [], []>} : vector<2x4xf32>, vector<4x128xf32>, vector<2x128xf32> -> vector<2x128xf32>
    %273 = vector.extract_strided_slice %272 {offsets = [0, 0], sizes = [1, 128], strides = [1, 1]} : vector<2x128xf32> to vector<1x128xf32>
    %274 = vector.broadcast %273 : vector<1x128xf32> to vector<32x128xf32>
    %275 = arith.mulf %247, %274 : vector<32x128xf32>
    %276 = vector.extract_strided_slice %272 {offsets = [1, 0], sizes = [1, 128], strides = [1, 1]} : vector<2x128xf32> to vector<1x128xf32>
    %277 = vector.broadcast %276 : vector<1x128xf32> to vector<32x128xf32>
    %278 = arith.addf %275, %277 : vector<32x128xf32>
    %279 = vector.broadcast %248 : vector<32x1xf32> to vector<32x128xf32>
    %280 = arith.mulf %279, %278 : vector<32x128xf32>
    %281 = vector.broadcast %249 : vector<32x1xf32> to vector<32x128xf32>
    %282 = arith.addf %280, %281 : vector<32x128xf32>
    %cst_101 = arith.constant dense<0.000000e+00> : vector<16x128xf32>
    %283 = tpu.matmul %174, %282, %cst_101 {dimension_numbers = #tpu.dot_dimension_numbers<[1], [0], [0], [1], [0, 0, 1, 1], [], []>} : vector<16x32xf32>, vector<32x128xf32>, vector<16x128xf32> -> vector<16x128xf32>
    %284 = arith.addf %166, %283 : vector<16x128xf32>
    %c1_102 = arith.constant 1 : index
    %c0_103 = arith.constant 0 : index
    %c0_104 = arith.constant 0 : index
    %285 = vector.load %arg13[%c1_102, %c0_103, %c0_104] : memref<4x16x1xf32, #tpu.memory_space<vmem>>, vector<1x16x1xf32>
    %286 = vector.shape_cast %285 : vector<1x16x1xf32> to vector<16x1xf32>
    %287 = vector.broadcast %286 : vector<16x1xf32> to vector<16x128xf32>
    %288 = arith.addf %284, %287 : vector<16x128xf32>
    %c2_105 = arith.constant 2 : index
    %c0_106 = arith.constant 0 : index
    %c0_107 = arith.constant 0 : index
    %289 = vector.load %arg10[%c2_105, %c0_106, %c0_107] : memref<4x32x6xf32, #tpu.memory_space<vmem>>, vector<1x32x6xf32>
    %290 = vector.shape_cast %289 : vector<1x32x6xf32> to vector<32x6xf32>
    %c2_108 = arith.constant 2 : index
    %c0_109 = arith.constant 0 : index
    %c0_110 = arith.constant 0 : index
    %291 = vector.load %arg11[%c2_108, %c0_109, %c0_110] : memref<4x32x3xf32, #tpu.memory_space<vmem>>, vector<1x32x3xf32>
    %292 = vector.shape_cast %291 : vector<1x32x3xf32> to vector<32x3xf32>
    %c2_111 = arith.constant 2 : index
    %c0_112 = arith.constant 0 : index
    %c0_113 = arith.constant 0 : index
    %293 = vector.load %arg9[%c2_111, %c0_112, %c0_113] : memref<4x32x16xf32, #tpu.memory_space<vmem>>, vector<1x32x16xf32>
    %294 = vector.shape_cast %293 : vector<1x32x16xf32> to vector<32x16xf32>
    %c2_114 = arith.constant 2 : index
    %c0_115 = arith.constant 0 : index
    %c0_116 = arith.constant 0 : index
    %295 = vector.load %arg12[%c2_114, %c0_115, %c0_116] : memref<4x16x32xf32, #tpu.memory_space<vmem>>, vector<1x16x32xf32>
    %296 = vector.shape_cast %295 : vector<1x16x32xf32> to vector<16x32xf32>
    %c4 = arith.constant 4 : index
    %297 = memref.load %arg1[%c4] : memref<9xf32, #tpu.memory_space<smem>>
    %c5 = arith.constant 5 : index
    %298 = memref.load %arg1[%c5] : memref<9xf32, #tpu.memory_space<smem>>
    %cst_117 = arith.constant dense<0.000000e+00> : vector<32x128xf32>
    %299 = tpu.matmul %294, %288, %cst_117 {dimension_numbers = #tpu.dot_dimension_numbers<[1], [0], [0], [1], [0, 0, 1, 1], [], []>} : vector<32x16xf32>, vector<16x128xf32>, vector<32x128xf32> -> vector<32x128xf32>
    %300 = vector.extract_strided_slice %290 {offsets = [0, 0], sizes = [32, 1], strides = [1, 1]} : vector<32x6xf32> to vector<32x1xf32>
    %301 = vector.broadcast %300 : vector<32x1xf32> to vector<32x128xf32>
    %302 = arith.addf %299, %301 : vector<32x128xf32>
    %cst_118 = arith.constant 0.000000e+00 : f32
    %303 = vector.broadcast %cst_118 : f32 to vector<32x128xf32>
    %304 = arith.cmpf ogt, %302, %303 : vector<32x128xf32>
    %305 = vector.broadcast %297 : f32 to vector<32x128xf32>
    %306 = arith.mulf %305, %302 : vector<32x128xf32>
    %307 = arith.select %304, %302, %306 : vector<32x128xi1>, vector<32x128xf32>
    %308 = vector.extract_strided_slice %290 {offsets = [0, 1], sizes = [32, 1], strides = [1, 1]} : vector<32x6xf32> to vector<32x1xf32>
    %309 = vector.extract_strided_slice %290 {offsets = [0, 2], sizes = [32, 1], strides = [1, 1]} : vector<32x6xf32> to vector<32x1xf32>
    %cst_119 = arith.constant dense<0.000000e+00> : vector<32x4xf32>
    %310 = tpu.matmul %307, %0, %cst_119 {dimension_numbers = #tpu.dot_dimension_numbers<[1], [0], [0], [1], [0, 0, 1, 1], [], []>} : vector<32x128xf32>, vector<128x4xf32>, vector<32x4xf32> -> vector<32x4xf32>
    %311 = arith.mulf %307, %307 : vector<32x128xf32>
    %cst_120 = arith.constant dense<0.000000e+00> : vector<32x4xf32>
    %312 = tpu.matmul %311, %0, %cst_120 {dimension_numbers = #tpu.dot_dimension_numbers<[1], [0], [0], [1], [0, 0, 1, 1], [], []>} : vector<32x128xf32>, vector<128x4xf32>, vector<32x4xf32> -> vector<32x4xf32>
    %cst_121 = arith.constant dense<0.000000e+00> : vector<4xf32>
    %313 = vector.multi_reduction <add>, %310, %cst_121 [0] : vector<32x4xf32> to vector<4xf32>
    %314 = vector.shape_cast %313 : vector<4xf32> to vector<1x4xf32>
    %cst_122 = arith.constant dense<0.000000e+00> : vector<4xf32>
    %315 = vector.multi_reduction <add>, %312, %cst_122 [0] : vector<32x4xf32> to vector<4xf32>
    %316 = vector.shape_cast %315 : vector<4xf32> to vector<1x4xf32>
    %cst_123 = arith.constant 9.765625E-4 : f32
    %317 = vector.broadcast %cst_123 : f32 to vector<1x4xf32>
    %318 = arith.mulf %314, %317 : vector<1x4xf32>
    %cst_124 = arith.constant 9.765625E-4 : f32
    %319 = vector.broadcast %cst_124 : f32 to vector<1x4xf32>
    %320 = arith.mulf %316, %319 : vector<1x4xf32>
    %321 = arith.mulf %318, %318 : vector<1x4xf32>
    %322 = arith.subf %320, %321 : vector<1x4xf32>
    %cst_125 = arith.constant 0.000000e+00 : f32
    %323 = vector.broadcast %cst_125 : f32 to vector<1x4xf32>
    %324 = arith.maximumf %322, %323 : vector<1x4xf32>
    %cst_126 = arith.constant 9.99999993E-9 : f32
    %325 = vector.broadcast %cst_126 : f32 to vector<1x4xf32>
    %326 = arith.addf %324, %325 : vector<1x4xf32>
    %327 = math.rsqrt %326 : vector<1x4xf32>
    %cst_127 = arith.constant 0.000000e+00 : f32
    %328 = vector.broadcast %cst_127 : f32 to vector<1x4xf32>
    %329 = arith.subf %328, %318 : vector<1x4xf32>
    %330 = arith.mulf %329, %327 : vector<1x4xf32>
    %331 = tpu.concatenate %327, %330 in 0 : vector<1x4xf32>, vector<1x4xf32> -> vector<2x4xf32>
    %cst_128 = arith.constant dense<0.000000e+00> : vector<2x128xf32>
    %332 = tpu.matmul %331, %1, %cst_128 {dimension_numbers = #tpu.dot_dimension_numbers<[1], [0], [0], [1], [0, 0, 1, 1], [], []>} : vector<2x4xf32>, vector<4x128xf32>, vector<2x128xf32> -> vector<2x128xf32>
    %333 = vector.extract_strided_slice %332 {offsets = [0, 0], sizes = [1, 128], strides = [1, 1]} : vector<2x128xf32> to vector<1x128xf32>
    %334 = vector.broadcast %333 : vector<1x128xf32> to vector<32x128xf32>
    %335 = arith.mulf %307, %334 : vector<32x128xf32>
    %336 = vector.extract_strided_slice %332 {offsets = [1, 0], sizes = [1, 128], strides = [1, 1]} : vector<2x128xf32> to vector<1x128xf32>
    %337 = vector.broadcast %336 : vector<1x128xf32> to vector<32x128xf32>
    %338 = arith.addf %335, %337 : vector<32x128xf32>
    %339 = vector.broadcast %308 : vector<32x1xf32> to vector<32x128xf32>
    %340 = arith.mulf %339, %338 : vector<32x128xf32>
    %341 = vector.broadcast %309 : vector<32x1xf32> to vector<32x128xf32>
    %342 = arith.addf %340, %341 : vector<32x128xf32>
    %c1_i32_129 = arith.constant 1 : i32
    %343 = tpu.dynamic_rotate %342 by %c1_i32_129 dim 1 : vector<32x128xf32>, i32 -> vector<32x128xf32>
    %344 = vector.extract_strided_slice %2 {offsets = [0, 0], sizes = [1, 128], strides = [1, 1]} : vector<6x128xf32> to vector<1x128xf32>
    %345 = vector.broadcast %344 : vector<1x128xf32> to vector<32x128xf32>
    %346 = arith.mulf %343, %345 : vector<32x128xf32>
    %347 = vector.extract_strided_slice %292 {offsets = [0, 0], sizes = [32, 1], strides = [1, 1]} : vector<32x3xf32> to vector<32x1xf32>
    %348 = vector.broadcast %347 : vector<32x1xf32> to vector<32x128xf32>
    %349 = arith.mulf %348, %346 : vector<32x128xf32>
    %350 = vector.extract_strided_slice %292 {offsets = [0, 1], sizes = [32, 1], strides = [1, 1]} : vector<32x3xf32> to vector<32x1xf32>
    %351 = vector.broadcast %350 : vector<32x1xf32> to vector<32x128xf32>
    %352 = arith.mulf %351, %342 : vector<32x128xf32>
    %353 = arith.addf %349, %352 : vector<32x128xf32>
    %c127_i32_130 = arith.constant 127 : i32
    %354 = tpu.dynamic_rotate %342 by %c127_i32_130 dim 1 : vector<32x128xf32>, i32 -> vector<32x128xf32>
    %355 = vector.extract_strided_slice %2 {offsets = [2, 0], sizes = [1, 128], strides = [1, 1]} : vector<6x128xf32> to vector<1x128xf32>
    %356 = vector.broadcast %355 : vector<1x128xf32> to vector<32x128xf32>
    %357 = arith.mulf %354, %356 : vector<32x128xf32>
    %358 = vector.extract_strided_slice %292 {offsets = [0, 2], sizes = [32, 1], strides = [1, 1]} : vector<32x3xf32> to vector<32x1xf32>
    %359 = vector.broadcast %358 : vector<32x1xf32> to vector<32x128xf32>
    %360 = arith.mulf %359, %357 : vector<32x128xf32>
    %361 = arith.addf %353, %360 : vector<32x128xf32>
    %362 = vector.extract_strided_slice %290 {offsets = [0, 3], sizes = [32, 1], strides = [1, 1]} : vector<32x6xf32> to vector<32x1xf32>
    %363 = vector.broadcast %362 : vector<32x1xf32> to vector<32x128xf32>
    %364 = arith.addf %361, %363 : vector<32x128xf32>
    %cst_131 = arith.constant 0.000000e+00 : f32
    %365 = vector.broadcast %cst_131 : f32 to vector<32x128xf32>
    %366 = arith.cmpf ogt, %364, %365 : vector<32x128xf32>
    %367 = vector.broadcast %298 : f32 to vector<32x128xf32>
    %368 = arith.mulf %367, %364 : vector<32x128xf32>
    %369 = arith.select %366, %364, %368 : vector<32x128xi1>, vector<32x128xf32>
    %370 = vector.extract_strided_slice %290 {offsets = [0, 4], sizes = [32, 1], strides = [1, 1]} : vector<32x6xf32> to vector<32x1xf32>
    %371 = vector.extract_strided_slice %290 {offsets = [0, 5], sizes = [32, 1], strides = [1, 1]} : vector<32x6xf32> to vector<32x1xf32>
    %cst_132 = arith.constant dense<0.000000e+00> : vector<32x4xf32>
    %372 = tpu.matmul %369, %0, %cst_132 {dimension_numbers = #tpu.dot_dimension_numbers<[1], [0], [0], [1], [0, 0, 1, 1], [], []>} : vector<32x128xf32>, vector<128x4xf32>, vector<32x4xf32> -> vector<32x4xf32>
    %373 = arith.mulf %369, %369 : vector<32x128xf32>
    %cst_133 = arith.constant dense<0.000000e+00> : vector<32x4xf32>
    %374 = tpu.matmul %373, %0, %cst_133 {dimension_numbers = #tpu.dot_dimension_numbers<[1], [0], [0], [1], [0, 0, 1, 1], [], []>} : vector<32x128xf32>, vector<128x4xf32>, vector<32x4xf32> -> vector<32x4xf32>
    %cst_134 = arith.constant dense<0.000000e+00> : vector<4xf32>
    %375 = vector.multi_reduction <add>, %372, %cst_134 [0] : vector<32x4xf32> to vector<4xf32>
    %376 = vector.shape_cast %375 : vector<4xf32> to vector<1x4xf32>
    %cst_135 = arith.constant dense<0.000000e+00> : vector<4xf32>
    %377 = vector.multi_reduction <add>, %374, %cst_135 [0] : vector<32x4xf32> to vector<4xf32>
    %378 = vector.shape_cast %377 : vector<4xf32> to vector<1x4xf32>
    %cst_136 = arith.constant 9.765625E-4 : f32
    %379 = vector.broadcast %cst_136 : f32 to vector<1x4xf32>
    %380 = arith.mulf %376, %379 : vector<1x4xf32>
    %cst_137 = arith.constant 9.765625E-4 : f32
    %381 = vector.broadcast %cst_137 : f32 to vector<1x4xf32>
    %382 = arith.mulf %378, %381 : vector<1x4xf32>
    %383 = arith.mulf %380, %380 : vector<1x4xf32>
    %384 = arith.subf %382, %383 : vector<1x4xf32>
    %cst_138 = arith.constant 0.000000e+00 : f32
    %385 = vector.broadcast %cst_138 : f32 to vector<1x4xf32>
    %386 = arith.maximumf %384, %385 : vector<1x4xf32>
    %cst_139 = arith.constant 9.99999993E-9 : f32
    %387 = vector.broadcast %cst_139 : f32 to vector<1x4xf32>
    %388 = arith.addf %386, %387 : vector<1x4xf32>
    %389 = math.rsqrt %388 : vector<1x4xf32>
    %cst_140 = arith.constant 0.000000e+00 : f32
    %390 = vector.broadcast %cst_140 : f32 to vector<1x4xf32>
    %391 = arith.subf %390, %380 : vector<1x4xf32>
    %392 = arith.mulf %391, %389 : vector<1x4xf32>
    %393 = tpu.concatenate %389, %392 in 0 : vector<1x4xf32>, vector<1x4xf32> -> vector<2x4xf32>
    %cst_141 = arith.constant dense<0.000000e+00> : vector<2x128xf32>
    %394 = tpu.matmul %393, %1, %cst_141 {dimension_numbers = #tpu.dot_dimension_numbers<[1], [0], [0], [1], [0, 0, 1, 1], [], []>} : vector<2x4xf32>, vector<4x128xf32>, vector<2x128xf32> -> vector<2x128xf32>
    %395 = vector.extract_strided_slice %394 {offsets = [0, 0], sizes = [1, 128], strides = [1, 1]} : vector<2x128xf32> to vector<1x128xf32>
    %396 = vector.broadcast %395 : vector<1x128xf32> to vector<32x128xf32>
    %397 = arith.mulf %369, %396 : vector<32x128xf32>
    %398 = vector.extract_strided_slice %394 {offsets = [1, 0], sizes = [1, 128], strides = [1, 1]} : vector<2x128xf32> to vector<1x128xf32>
    %399 = vector.broadcast %398 : vector<1x128xf32> to vector<32x128xf32>
    %400 = arith.addf %397, %399 : vector<32x128xf32>
    %401 = vector.broadcast %370 : vector<32x1xf32> to vector<32x128xf32>
    %402 = arith.mulf %401, %400 : vector<32x128xf32>
    %403 = vector.broadcast %371 : vector<32x1xf32> to vector<32x128xf32>
    %404 = arith.addf %402, %403 : vector<32x128xf32>
    %cst_142 = arith.constant dense<0.000000e+00> : vector<16x128xf32>
    %405 = tpu.matmul %296, %404, %cst_142 {dimension_numbers = #tpu.dot_dimension_numbers<[1], [0], [0], [1], [0, 0, 1, 1], [], []>} : vector<16x32xf32>, vector<32x128xf32>, vector<16x128xf32> -> vector<16x128xf32>
    %406 = arith.addf %288, %405 : vector<16x128xf32>
    %c2_143 = arith.constant 2 : index
    %c0_144 = arith.constant 0 : index
    %c0_145 = arith.constant 0 : index
    %407 = vector.load %arg13[%c2_143, %c0_144, %c0_145] : memref<4x16x1xf32, #tpu.memory_space<vmem>>, vector<1x16x1xf32>
    %408 = vector.shape_cast %407 : vector<1x16x1xf32> to vector<16x1xf32>
    %409 = vector.broadcast %408 : vector<16x1xf32> to vector<16x128xf32>
    %410 = arith.addf %406, %409 : vector<16x128xf32>
    %c3_146 = arith.constant 3 : index
    %c0_147 = arith.constant 0 : index
    %c0_148 = arith.constant 0 : index
    %411 = vector.load %arg10[%c3_146, %c0_147, %c0_148] : memref<4x32x6xf32, #tpu.memory_space<vmem>>, vector<1x32x6xf32>
    %412 = vector.shape_cast %411 : vector<1x32x6xf32> to vector<32x6xf32>
    %c3_149 = arith.constant 3 : index
    %c0_150 = arith.constant 0 : index
    %c0_151 = arith.constant 0 : index
    %413 = vector.load %arg11[%c3_149, %c0_150, %c0_151] : memref<4x32x3xf32, #tpu.memory_space<vmem>>, vector<1x32x3xf32>
    %414 = vector.shape_cast %413 : vector<1x32x3xf32> to vector<32x3xf32>
    %c3_152 = arith.constant 3 : index
    %c0_153 = arith.constant 0 : index
    %c0_154 = arith.constant 0 : index
    %415 = vector.load %arg9[%c3_152, %c0_153, %c0_154] : memref<4x32x16xf32, #tpu.memory_space<vmem>>, vector<1x32x16xf32>
    %416 = vector.shape_cast %415 : vector<1x32x16xf32> to vector<32x16xf32>
    %c3_155 = arith.constant 3 : index
    %c0_156 = arith.constant 0 : index
    %c0_157 = arith.constant 0 : index
    %417 = vector.load %arg12[%c3_155, %c0_156, %c0_157] : memref<4x16x32xf32, #tpu.memory_space<vmem>>, vector<1x16x32xf32>
    %418 = vector.shape_cast %417 : vector<1x16x32xf32> to vector<16x32xf32>
    %c6 = arith.constant 6 : index
    %419 = memref.load %arg1[%c6] : memref<9xf32, #tpu.memory_space<smem>>
    %c7 = arith.constant 7 : index
    %420 = memref.load %arg1[%c7] : memref<9xf32, #tpu.memory_space<smem>>
    %cst_158 = arith.constant dense<0.000000e+00> : vector<32x128xf32>
    %421 = tpu.matmul %416, %410, %cst_158 {dimension_numbers = #tpu.dot_dimension_numbers<[1], [0], [0], [1], [0, 0, 1, 1], [], []>} : vector<32x16xf32>, vector<16x128xf32>, vector<32x128xf32> -> vector<32x128xf32>
    %422 = vector.extract_strided_slice %412 {offsets = [0, 0], sizes = [32, 1], strides = [1, 1]} : vector<32x6xf32> to vector<32x1xf32>
    %423 = vector.broadcast %422 : vector<32x1xf32> to vector<32x128xf32>
    %424 = arith.addf %421, %423 : vector<32x128xf32>
    %cst_159 = arith.constant 0.000000e+00 : f32
    %425 = vector.broadcast %cst_159 : f32 to vector<32x128xf32>
    %426 = arith.cmpf ogt, %424, %425 : vector<32x128xf32>
    %427 = vector.broadcast %419 : f32 to vector<32x128xf32>
    %428 = arith.mulf %427, %424 : vector<32x128xf32>
    %429 = arith.select %426, %424, %428 : vector<32x128xi1>, vector<32x128xf32>
    %430 = vector.extract_strided_slice %412 {offsets = [0, 1], sizes = [32, 1], strides = [1, 1]} : vector<32x6xf32> to vector<32x1xf32>
    %431 = vector.extract_strided_slice %412 {offsets = [0, 2], sizes = [32, 1], strides = [1, 1]} : vector<32x6xf32> to vector<32x1xf32>
    %cst_160 = arith.constant dense<0.000000e+00> : vector<32x4xf32>
    %432 = tpu.matmul %429, %0, %cst_160 {dimension_numbers = #tpu.dot_dimension_numbers<[1], [0], [0], [1], [0, 0, 1, 1], [], []>} : vector<32x128xf32>, vector<128x4xf32>, vector<32x4xf32> -> vector<32x4xf32>
    %433 = arith.mulf %429, %429 : vector<32x128xf32>
    %cst_161 = arith.constant dense<0.000000e+00> : vector<32x4xf32>
    %434 = tpu.matmul %433, %0, %cst_161 {dimension_numbers = #tpu.dot_dimension_numbers<[1], [0], [0], [1], [0, 0, 1, 1], [], []>} : vector<32x128xf32>, vector<128x4xf32>, vector<32x4xf32> -> vector<32x4xf32>
    %cst_162 = arith.constant dense<0.000000e+00> : vector<4xf32>
    %435 = vector.multi_reduction <add>, %432, %cst_162 [0] : vector<32x4xf32> to vector<4xf32>
    %436 = vector.shape_cast %435 : vector<4xf32> to vector<1x4xf32>
    %cst_163 = arith.constant dense<0.000000e+00> : vector<4xf32>
    %437 = vector.multi_reduction <add>, %434, %cst_163 [0] : vector<32x4xf32> to vector<4xf32>
    %438 = vector.shape_cast %437 : vector<4xf32> to vector<1x4xf32>
    %cst_164 = arith.constant 9.765625E-4 : f32
    %439 = vector.broadcast %cst_164 : f32 to vector<1x4xf32>
    %440 = arith.mulf %436, %439 : vector<1x4xf32>
    %cst_165 = arith.constant 9.765625E-4 : f32
    %441 = vector.broadcast %cst_165 : f32 to vector<1x4xf32>
    %442 = arith.mulf %438, %441 : vector<1x4xf32>
    %443 = arith.mulf %440, %440 : vector<1x4xf32>
    %444 = arith.subf %442, %443 : vector<1x4xf32>
    %cst_166 = arith.constant 0.000000e+00 : f32
    %445 = vector.broadcast %cst_166 : f32 to vector<1x4xf32>
    %446 = arith.maximumf %444, %445 : vector<1x4xf32>
    %cst_167 = arith.constant 9.99999993E-9 : f32
    %447 = vector.broadcast %cst_167 : f32 to vector<1x4xf32>
    %448 = arith.addf %446, %447 : vector<1x4xf32>
    %449 = math.rsqrt %448 : vector<1x4xf32>
    %cst_168 = arith.constant 0.000000e+00 : f32
    %450 = vector.broadcast %cst_168 : f32 to vector<1x4xf32>
    %451 = arith.subf %450, %440 : vector<1x4xf32>
    %452 = arith.mulf %451, %449 : vector<1x4xf32>
    %453 = tpu.concatenate %449, %452 in 0 : vector<1x4xf32>, vector<1x4xf32> -> vector<2x4xf32>
    %cst_169 = arith.constant dense<0.000000e+00> : vector<2x128xf32>
    %454 = tpu.matmul %453, %1, %cst_169 {dimension_numbers = #tpu.dot_dimension_numbers<[1], [0], [0], [1], [0, 0, 1, 1], [], []>} : vector<2x4xf32>, vector<4x128xf32>, vector<2x128xf32> -> vector<2x128xf32>
    %455 = vector.extract_strided_slice %454 {offsets = [0, 0], sizes = [1, 128], strides = [1, 1]} : vector<2x128xf32> to vector<1x128xf32>
    %456 = vector.broadcast %455 : vector<1x128xf32> to vector<32x128xf32>
    %457 = arith.mulf %429, %456 : vector<32x128xf32>
    %458 = vector.extract_strided_slice %454 {offsets = [1, 0], sizes = [1, 128], strides = [1, 1]} : vector<2x128xf32> to vector<1x128xf32>
    %459 = vector.broadcast %458 : vector<1x128xf32> to vector<32x128xf32>
    %460 = arith.addf %457, %459 : vector<32x128xf32>
    %461 = vector.broadcast %430 : vector<32x1xf32> to vector<32x128xf32>
    %462 = arith.mulf %461, %460 : vector<32x128xf32>
    %463 = vector.broadcast %431 : vector<32x1xf32> to vector<32x128xf32>
    %464 = arith.addf %462, %463 : vector<32x128xf32>
    %c2_i32_170 = arith.constant 2 : i32
    %465 = tpu.dynamic_rotate %464 by %c2_i32_170 dim 1 : vector<32x128xf32>, i32 -> vector<32x128xf32>
    %466 = vector.extract_strided_slice %2 {offsets = [3, 0], sizes = [1, 128], strides = [1, 1]} : vector<6x128xf32> to vector<1x128xf32>
    %467 = vector.broadcast %466 : vector<1x128xf32> to vector<32x128xf32>
    %468 = arith.mulf %465, %467 : vector<32x128xf32>
    %469 = vector.extract_strided_slice %414 {offsets = [0, 0], sizes = [32, 1], strides = [1, 1]} : vector<32x3xf32> to vector<32x1xf32>
    %470 = vector.broadcast %469 : vector<32x1xf32> to vector<32x128xf32>
    %471 = arith.mulf %470, %468 : vector<32x128xf32>
    %472 = vector.extract_strided_slice %414 {offsets = [0, 1], sizes = [32, 1], strides = [1, 1]} : vector<32x3xf32> to vector<32x1xf32>
    %473 = vector.broadcast %472 : vector<32x1xf32> to vector<32x128xf32>
    %474 = arith.mulf %473, %464 : vector<32x128xf32>
    %475 = arith.addf %471, %474 : vector<32x128xf32>
    %c126_i32_171 = arith.constant 126 : i32
    %476 = tpu.dynamic_rotate %464 by %c126_i32_171 dim 1 : vector<32x128xf32>, i32 -> vector<32x128xf32>
    %477 = vector.extract_strided_slice %2 {offsets = [5, 0], sizes = [1, 128], strides = [1, 1]} : vector<6x128xf32> to vector<1x128xf32>
    %478 = vector.broadcast %477 : vector<1x128xf32> to vector<32x128xf32>
    %479 = arith.mulf %476, %478 : vector<32x128xf32>
    %480 = vector.extract_strided_slice %414 {offsets = [0, 2], sizes = [32, 1], strides = [1, 1]} : vector<32x3xf32> to vector<32x1xf32>
    %481 = vector.broadcast %480 : vector<32x1xf32> to vector<32x128xf32>
    %482 = arith.mulf %481, %479 : vector<32x128xf32>
    %483 = arith.addf %475, %482 : vector<32x128xf32>
    %484 = vector.extract_strided_slice %412 {offsets = [0, 3], sizes = [32, 1], strides = [1, 1]} : vector<32x6xf32> to vector<32x1xf32>
    %485 = vector.broadcast %484 : vector<32x1xf32> to vector<32x128xf32>
    %486 = arith.addf %483, %485 : vector<32x128xf32>
    %cst_172 = arith.constant 0.000000e+00 : f32
    %487 = vector.broadcast %cst_172 : f32 to vector<32x128xf32>
    %488 = arith.cmpf ogt, %486, %487 : vector<32x128xf32>
    %489 = vector.broadcast %420 : f32 to vector<32x128xf32>
    %490 = arith.mulf %489, %486 : vector<32x128xf32>
    %491 = arith.select %488, %486, %490 : vector<32x128xi1>, vector<32x128xf32>
    %492 = vector.extract_strided_slice %412 {offsets = [0, 4], sizes = [32, 1], strides = [1, 1]} : vector<32x6xf32> to vector<32x1xf32>
    %493 = vector.extract_strided_slice %412 {offsets = [0, 5], sizes = [32, 1], strides = [1, 1]} : vector<32x6xf32> to vector<32x1xf32>
    %cst_173 = arith.constant dense<0.000000e+00> : vector<32x4xf32>
    %494 = tpu.matmul %491, %0, %cst_173 {dimension_numbers = #tpu.dot_dimension_numbers<[1], [0], [0], [1], [0, 0, 1, 1], [], []>} : vector<32x128xf32>, vector<128x4xf32>, vector<32x4xf32> -> vector<32x4xf32>
    %495 = arith.mulf %491, %491 : vector<32x128xf32>
    %cst_174 = arith.constant dense<0.000000e+00> : vector<32x4xf32>
    %496 = tpu.matmul %495, %0, %cst_174 {dimension_numbers = #tpu.dot_dimension_numbers<[1], [0], [0], [1], [0, 0, 1, 1], [], []>} : vector<32x128xf32>, vector<128x4xf32>, vector<32x4xf32> -> vector<32x4xf32>
    %cst_175 = arith.constant dense<0.000000e+00> : vector<4xf32>
    %497 = vector.multi_reduction <add>, %494, %cst_175 [0] : vector<32x4xf32> to vector<4xf32>
    %498 = vector.shape_cast %497 : vector<4xf32> to vector<1x4xf32>
    %cst_176 = arith.constant dense<0.000000e+00> : vector<4xf32>
    %499 = vector.multi_reduction <add>, %496, %cst_176 [0] : vector<32x4xf32> to vector<4xf32>
    %500 = vector.shape_cast %499 : vector<4xf32> to vector<1x4xf32>
    %cst_177 = arith.constant 9.765625E-4 : f32
    %501 = vector.broadcast %cst_177 : f32 to vector<1x4xf32>
    %502 = arith.mulf %498, %501 : vector<1x4xf32>
    %cst_178 = arith.constant 9.765625E-4 : f32
    %503 = vector.broadcast %cst_178 : f32 to vector<1x4xf32>
    %504 = arith.mulf %500, %503 : vector<1x4xf32>
    %505 = arith.mulf %502, %502 : vector<1x4xf32>
    %506 = arith.subf %504, %505 : vector<1x4xf32>
    %cst_179 = arith.constant 0.000000e+00 : f32
    %507 = vector.broadcast %cst_179 : f32 to vector<1x4xf32>
    %508 = arith.maximumf %506, %507 : vector<1x4xf32>
    %cst_180 = arith.constant 9.99999993E-9 : f32
    %509 = vector.broadcast %cst_180 : f32 to vector<1x4xf32>
    %510 = arith.addf %508, %509 : vector<1x4xf32>
    %511 = math.rsqrt %510 : vector<1x4xf32>
    %cst_181 = arith.constant 0.000000e+00 : f32
    %512 = vector.broadcast %cst_181 : f32 to vector<1x4xf32>
    %513 = arith.subf %512, %502 : vector<1x4xf32>
    %514 = arith.mulf %513, %511 : vector<1x4xf32>
    %515 = tpu.concatenate %511, %514 in 0 : vector<1x4xf32>, vector<1x4xf32> -> vector<2x4xf32>
    %cst_182 = arith.constant dense<0.000000e+00> : vector<2x128xf32>
    %516 = tpu.matmul %515, %1, %cst_182 {dimension_numbers = #tpu.dot_dimension_numbers<[1], [0], [0], [1], [0, 0, 1, 1], [], []>} : vector<2x4xf32>, vector<4x128xf32>, vector<2x128xf32> -> vector<2x128xf32>
    %517 = vector.extract_strided_slice %516 {offsets = [0, 0], sizes = [1, 128], strides = [1, 1]} : vector<2x128xf32> to vector<1x128xf32>
    %518 = vector.broadcast %517 : vector<1x128xf32> to vector<32x128xf32>
    %519 = arith.mulf %491, %518 : vector<32x128xf32>
    %520 = vector.extract_strided_slice %516 {offsets = [1, 0], sizes = [1, 128], strides = [1, 1]} : vector<2x128xf32> to vector<1x128xf32>
    %521 = vector.broadcast %520 : vector<1x128xf32> to vector<32x128xf32>
    %522 = arith.addf %519, %521 : vector<32x128xf32>
    %523 = vector.broadcast %492 : vector<32x1xf32> to vector<32x128xf32>
    %524 = arith.mulf %523, %522 : vector<32x128xf32>
    %525 = vector.broadcast %493 : vector<32x1xf32> to vector<32x128xf32>
    %526 = arith.addf %524, %525 : vector<32x128xf32>
    %cst_183 = arith.constant dense<0.000000e+00> : vector<16x128xf32>
    %527 = tpu.matmul %418, %526, %cst_183 {dimension_numbers = #tpu.dot_dimension_numbers<[1], [0], [0], [1], [0, 0, 1, 1], [], []>} : vector<16x32xf32>, vector<32x128xf32>, vector<16x128xf32> -> vector<16x128xf32>
    %528 = arith.addf %410, %527 : vector<16x128xf32>
    %c3_184 = arith.constant 3 : index
    %c0_185 = arith.constant 0 : index
    %c0_186 = arith.constant 0 : index
    %529 = vector.load %arg13[%c3_184, %c0_185, %c0_186] : memref<4x16x1xf32, #tpu.memory_space<vmem>>, vector<1x16x1xf32>
    %530 = vector.shape_cast %529 : vector<1x16x1xf32> to vector<16x1xf32>
    %531 = vector.broadcast %530 : vector<16x1xf32> to vector<16x128xf32>
    %532 = arith.addf %528, %531 : vector<16x128xf32>
    %cst_187 = arith.constant dense<0.000000e+00> : vector<16x4xf32>
    %533 = tpu.matmul %532, %0, %cst_187 {dimension_numbers = #tpu.dot_dimension_numbers<[1], [0], [0], [1], [0, 0, 1, 1], [], []>} : vector<16x128xf32>, vector<128x4xf32>, vector<16x4xf32> -> vector<16x4xf32>
    %cst_188 = arith.constant 3.125000e-02 : f32
    %534 = vector.broadcast %cst_188 : f32 to vector<16x4xf32>
    %535 = arith.mulf %533, %534 : vector<16x4xf32>
    %c8 = arith.constant 8 : index
    %536 = memref.load %arg1[%c8] : memref<9xf32, #tpu.memory_space<smem>>
    %cst_189 = arith.constant 0.000000e+00 : f32
    %537 = vector.broadcast %cst_189 : f32 to vector<16x4xf32>
    %538 = arith.cmpf ogt, %535, %537 : vector<16x4xf32>
    %539 = vector.broadcast %536 : f32 to vector<16x4xf32>
    %540 = arith.mulf %539, %535 : vector<16x4xf32>
    %541 = arith.select %538, %535, %540 : vector<16x4xi1>, vector<16x4xf32>
    %c0_190 = arith.constant 0 : index
    %c0_191 = arith.constant 0 : index
    %542 = vector.load %arg14[%c0_190, %c0_191] : memref<16x128xf32, #tpu.memory_space<vmem>>, vector<16x128xf32>
    %cst_192 = arith.constant dense<0.000000e+00> : vector<4x128xf32>
    %543 = tpu.matmul %541, %542, %cst_192 {dimension_numbers = #tpu.dot_dimension_numbers<[0], [0], [1], [1], [0, 1, 1, 1], [], []>} : vector<16x4xf32>, vector<16x128xf32>, vector<4x128xf32> -> vector<4x128xf32>
    %c0_193 = arith.constant 0 : index
    %c0_194 = arith.constant 0 : index
    %544 = vector.load %arg15[%c0_193, %c0_194] : memref<1x128xf32, #tpu.memory_space<vmem>>, vector<1x128xf32>
    %545 = vector.broadcast %544 : vector<1x128xf32> to vector<4x128xf32>
    %546 = arith.addf %543, %545 : vector<4x128xf32>
    %c0_195 = arith.constant 0 : index
    %c0_196 = arith.constant 0 : index
    %c0_197 = arith.constant 0 : index
    %547 = vector.load %arg16[%c0_195, %c0_196, %c0_197] : memref<1x4x128xf32, #tpu.memory_space<vmem>>, vector<1x4x128xf32>
    %548 = vector.shape_cast %547 : vector<1x4x128xf32> to vector<4x128xf32>
    %549 = vector.shape_cast %546 : vector<4x128xf32> to vector<1x4x128xf32>
    tpu.vector_store %arg16[%c0_195, %c0_196, %c0_197], %549 {strides = array<i32>} : memref<1x4x128xf32, #tpu.memory_space<vmem>>, vector<1x4x128xf32>,
    return
  }
  func.func @transform_0(%arg0: i32) -> i32 {
    %c0_i32 = arith.constant 0 : i32
    %c0_i32_0 = arith.constant 0 : i32
    return %c0_i32 : i32
  }
  func.func @transform_1(%arg0: i32) -> (i32, i32, i32) {
    %c0_i32 = arith.constant 0 : i32
    %c0_i32_0 = arith.constant 0 : i32
    %c0_i32_1 = arith.constant 0 : i32
    return %arg0, %c0_i32, %c0_i32_0 : i32, i32, i32
  }
  func.func @transform_2(%arg0: i32) -> (i32, i32) {
    %c0_i32 = arith.constant 0 : i32
    %c0_i32_0 = arith.constant 0 : i32
    %c0_i32_1 = arith.constant 0 : i32
    return %c0_i32, %c0_i32_0 : i32, i32
  }
  func.func @transform_3(%arg0: i32) -> (i32, i32) {
    %c0_i32 = arith.constant 0 : i32
    %c0_i32_0 = arith.constant 0 : i32
    %c0_i32_1 = arith.constant 0 : i32
    return %c0_i32, %c0_i32_0 : i32, i32
  }
  func.func @transform_4(%arg0: i32) -> (i32, i32) {
    %c0_i32 = arith.constant 0 : i32
    %c0_i32_0 = arith.constant 0 : i32
    %c0_i32_1 = arith.constant 0 : i32
    return %c0_i32, %c0_i32_0 : i32, i32
  }
  func.func @transform_5(%arg0: i32) -> (i32, i32) {
    %c0_i32 = arith.constant 0 : i32
    %c0_i32_0 = arith.constant 0 : i32
    %c0_i32_1 = arith.constant 0 : i32
    return %c0_i32, %c0_i32_0 : i32, i32
  }
  func.func @transform_6(%arg0: i32) -> (i32, i32) {
    %c0_i32 = arith.constant 0 : i32
    %c0_i32_0 = arith.constant 0 : i32
    %c0_i32_1 = arith.constant 0 : i32
    return %c0_i32, %c0_i32_0 : i32, i32
  }
  func.func @transform_7(%arg0: i32) -> (i32, i32) {
    %c0_i32 = arith.constant 0 : i32
    %c0_i32_0 = arith.constant 0 : i32
    %c0_i32_1 = arith.constant 0 : i32
    return %c0_i32, %c0_i32_0 : i32, i32
  }
  func.func @transform_8(%arg0: i32) -> (i32, i32, i32) {
    %c0_i32 = arith.constant 0 : i32
    %c0_i32_0 = arith.constant 0 : i32
    %c0_i32_1 = arith.constant 0 : i32
    %c0_i32_2 = arith.constant 0 : i32
    return %c0_i32, %c0_i32_0, %c0_i32_1 : i32, i32, i32
  }
  func.func @transform_9(%arg0: i32) -> (i32, i32, i32) {
    %c0_i32 = arith.constant 0 : i32
    %c0_i32_0 = arith.constant 0 : i32
    %c0_i32_1 = arith.constant 0 : i32
    %c0_i32_2 = arith.constant 0 : i32
    return %c0_i32, %c0_i32_0, %c0_i32_1 : i32, i32, i32
  }
  func.func @transform_10(%arg0: i32) -> (i32, i32, i32) {
    %c0_i32 = arith.constant 0 : i32
    %c0_i32_0 = arith.constant 0 : i32
    %c0_i32_1 = arith.constant 0 : i32
    %c0_i32_2 = arith.constant 0 : i32
    return %c0_i32, %c0_i32_0, %c0_i32_1 : i32, i32, i32
  }
  func.func @transform_11(%arg0: i32) -> (i32, i32, i32) {
    %c0_i32 = arith.constant 0 : i32
    %c0_i32_0 = arith.constant 0 : i32
    %c0_i32_1 = arith.constant 0 : i32
    %c0_i32_2 = arith.constant 0 : i32
    return %c0_i32, %c0_i32_0, %c0_i32_1 : i32, i32, i32
  }
  func.func @transform_12(%arg0: i32) -> (i32, i32, i32) {
    %c0_i32 = arith.constant 0 : i32
    %c0_i32_0 = arith.constant 0 : i32
    %c0_i32_1 = arith.constant 0 : i32
    %c0_i32_2 = arith.constant 0 : i32
    return %c0_i32, %c0_i32_0, %c0_i32_1 : i32, i32, i32
  }
  func.func @transform_13(%arg0: i32) -> (i32, i32) {
    %c0_i32 = arith.constant 0 : i32
    %c0_i32_0 = arith.constant 0 : i32
    %c0_i32_1 = arith.constant 0 : i32
    return %c0_i32, %c0_i32_0 : i32, i32
  }
  func.func @transform_14(%arg0: i32) -> (i32, i32) {
    %c0_i32 = arith.constant 0 : i32
    %c0_i32_0 = arith.constant 0 : i32
    %c0_i32_1 = arith.constant 0 : i32
    return %c0_i32, %c0_i32_0 : i32, i32
  }
  func.func @transform_15(%arg0: i32) -> (i32, i32, i32) {
    %c0_i32 = arith.constant 0 : i32
    %c0_i32_0 = arith.constant 0 : i32
    %c0_i32_1 = arith.constant 0 : i32
    return %arg0, %c0_i32, %c0_i32_0 : i32, i32, i32
  }
}

</mosaic_0001>

<llo_original>
// kernel: tpu_custom_call.1
$region0: #{tpu_custom_call.1}
  #allocation0 [shape = 'u32[]', space=smem, size = 0x4, offset = 0x4, fixed_abs, tag = 'smem constant byte address 0x4 - core index']
  #allocation1 [shape = 'u32[144,128]{1,0:T(1,128)}', space=vmem, size = 0x12000, scoped, tag = 'internal scratch']
  %s0 = inlined_call_operand.vmem [shape: f32[9], index: 0, kind: input, shape index: {}]
  %s1 = inlined_call_operand.vmem [shape: f32[2,8,128], index: 1, kind: input, shape index: {}]
  %s2 = inlined_call_operand.vmem [shape: f32[128,4], index: 2, kind: input, shape index: {}]
  %s3 = inlined_call_operand.vmem [shape: f32[4,128], index: 3, kind: input, shape index: {}]
  %s4 = inlined_call_operand.vmem [shape: f32[6,128], index: 4, kind: input, shape index: {}]
  %s5 = inlined_call_operand.vmem [shape: f32[8,2], index: 5, kind: input, shape index: {}]
  %s6 = inlined_call_operand.vmem [shape: f32[16,8], index: 6, kind: input, shape index: {}]
  %s7 = inlined_call_operand.vmem [shape: f32[16,1], index: 7, kind: input, shape index: {}]
  %s8 = inlined_call_operand.vmem [shape: f32[4,32,16], index: 8, kind: input, shape index: {}]
  %s9 = inlined_call_operand.vmem [shape: f32[4,32,6], index: 9, kind: input, shape index: {}]
  %s10 = inlined_call_operand.vmem [shape: f32[4,32,3], index: 10, kind: input, shape index: {}]
  %s11 = inlined_call_operand.vmem [shape: f32[4,16,32], index: 11, kind: input, shape index: {}]
  %s12 = inlined_call_operand.vmem [shape: f32[4,16,1], index: 12, kind: input, shape index: {}]
  %s13 = inlined_call_operand.vmem [shape: f32[16,128], index: 13, kind: input, shape index: {}]
  %s14 = inlined_call_operand.vmem [shape: f32[1,128], index: 14, kind: input, shape index: {}]
  %s15 = inlined_call_operand.hbm [shape: f32[2,4,128], index: 15, kind: output, shape index: {}]
  %s16 = sld [smem:[#allocation0]]
  $region97: #{tpu_custom_call.1} parent=0
    _
  %s18 = ssub.s32 1, %s16
  %s19 = scalar_select 0, %s18, %s16
  $region1: #{tpu_custom_call.1} parent=0
    #allocation2 [shape = 'u8[512]{0}', space=smem, size = 0x200, scoped, tag = 'input window, operand 0, single buffered']
    #allocation3 [shape = 's32[2]{0}', space=sflag, size = 0x8, scoped, tag = 'scoped memory for tpu_custom_call.1']
    #allocation4 [shape = 's32[2]{0}', space=sflag, size = 0x8, scoped, tag = 'scoped memory for tpu_custom_call.1']
    #allocation5 [shape = 'u8[4096]{0}', space=vmem, size = 0x1000, scoped, tag = 'output window, operand 0']
    %20 = vsyncpa [#allocation4], 0
    %21 = vsyncpa [#allocation3], 0
    %s22 = scalar_lea.sflag [#allocation3], 1
    %23 = vsyncpa %s22, 0
    loop: start=0, step=1, limit=4
    $region2: #{tpu_custom_call.1} parent=1 // loop_pre_header
      _
    $region3: #{tpu_custom_call.1} parent=1 // loop_header
      %s25 = sphi 0, %s29
      %p26 = scmp.ge.s32.totalorder %s25, 4
      %s33 = sphi 0, %s33
      %s35 = sphi 0, %s33
      %s36 = sphi 0, %s35
      %s50 = sphi 0, %s36
      %s56 = sphi 0, %s58
      %s59 = sphi 0, %s56
      %s60 = sphi 0, %s59
      %s76 = sphi 0, %s60
      %s80 = sphi 0, %s80
      %s82 = sphi 0, %s80
      %s83 = sphi 0, %s82
      %s97 = sphi 0, %s83
      %s101 = sphi 0, %s101
      %s103 = sphi 0, %s101
      %s104 = sphi 0, %s103
      %s118 = sphi 0, %s104
      %s122 = sphi 0, %s122
      %s124 = sphi 0, %s122
      %s125 = sphi 0, %s124
      %s139 = sphi 0, %s125
      %s143 = sphi 0, %s143
      %s145 = sphi 0, %s143
      %s146 = sphi 0, %s145
      %s160 = sphi 0, %s146
      %s164 = sphi 0, %s164
      %s166 = sphi 0, %s164
      %s167 = sphi 0, %s166
      %s181 = sphi 0, %s167
      %s185 = sphi 0, %s185
      %s187 = sphi 0, %s185
      %s188 = sphi 0, %s187
      %s202 = sphi 0, %s188
      %s206 = sphi 0, %s206
      %s208 = sphi 0, %s206
      %s209 = sphi 0, %s208
      %s223 = sphi 0, %s209
      %s227 = sphi 0, %s227
      %s229 = sphi 0, %s227
      %s230 = sphi 0, %s229
      %s244 = sphi 0, %s230
      %s248 = sphi 0, %s248
      %s250 = sphi 0, %s248
      %s251 = sphi 0, %s250
      %s265 = sphi 0, %s251
      %s269 = sphi 0, %s269
      %s271 = sphi 0, %s269
      %s272 = sphi 0, %s271
      %s286 = sphi 0, %s272
      %s290 = sphi 0, %s290
      %s292 = sphi 0, %s290
      %s293 = sphi 0, %s292
      %s307 = sphi 0, %s293
      %s311 = sphi 0, %s311
      %s313 = sphi 0, %s311
      %s314 = sphi 0, %s313
      %s328 = sphi 0, %s314
      %s332 = sphi 0, %s332
      %s334 = sphi 0, %s332
      %s335 = sphi 0, %s334
      %s349 = sphi 0, %s335
      %s355 = sphi 0, %s357
      %s358 = sphi 0, %s355
      %s359 = sphi 0, %s358
      %s375 = sphi 0, %s359
    $region4: #{tpu_custom_call.1} parent=1 // loop_header_branch
      %28 = sbr.rel (%p26) target = $region8
    $region5: #{tpu_custom_call.1} parent=1 // loop_body
      %s30 = ssub.s32 %s25, 1
      %s31 = ssub.s32 %s25, 2
      %s32 = sadd.s32 %s25, 1
      %s34 = sadd.s32 %s33, 1
      %p37 = scmp.eq.s32.totalorder %s25, 1
      %p38 = scmp.ne.s32.totalorder %s33, %s35
      %p39 = scmp.eq.s32.totalorder %s25, 0
      %p40 = por %p38, %p39
      %p41 = scmp.ne.s32.totalorder %s33, %s35
      %p42 = scmp.eq.s32.totalorder %s30, 1
      %p43 = por %p41, %p42
      %p44 = scmp.ne.s32.totalorder %s35, %s36
      %p45 = scmp.eq.s32.totalorder %s30, 0
      %p46 = por %p44, %p45
      %p47 = scmp.ne.s32.totalorder %s35, %s36
      %p48 = scmp.eq.s32.totalorder %s31, 1
      %p49 = por %p47, %p48
      %p51 = scmp.ne.s32.totalorder %s36, %s50
      %p52 = scmp.eq.s32.totalorder %s31, 0
      %p53 = por %p51, %p52
      %s54 = ssub.s32 %s25, %s32
      %p55 = scmp.eq.s32.totalorder %s54, 0
      %s57 = sadd.s32 %s56, 1
      %s58 = scalar_select %p55, %s56, %s57
      %p61 = pneg %p55
      %p62 = scmp.eq.s32.totalorder %s25, 1
      %p63 = por %p61, %p62
      %p64 = scmp.ne.s32.totalorder %s56, %s59
      %p65 = scmp.eq.s32.totalorder %s25, 0
      %p66 = por %p64, %p65
      %p67 = scmp.ne.s32.totalorder %s56, %s59
      %p68 = scmp.eq.s32.totalorder %s30, 1
      %p69 = por %p67, %p68
      %p70 = scmp.ne.s32.totalorder %s59, %s60
      %p71 = scmp.eq.s32.totalorder %s30, 0
      %p72 = por %p70, %p71
      %p73 = scmp.ne.s32.totalorder %s59, %s60
      %p74 = scmp.eq.s32.totalorder %s31, 1
      %p75 = por %p73, %p74
      %p77 = scmp.ne.s32.totalorder %s60, %s76
      %p78 = scmp.eq.s32.totalorder %s31, 0
      %p79 = por %p77, %p78
      %s81 = sadd.s32 %s80, 1
      %p84 = scmp.eq.s32.totalorder %s25, 1
      %p85 = scmp.ne.s32.totalorder %s80, %s82
      %p86 = scmp.eq.s32.totalorder %s25, 0
      %p87 = por %p85, %p86
      %p88 = scmp.ne.s32.totalorder %s80, %s82
      %p89 = scmp.eq.s32.totalorder %s30, 1
      %p90 = por %p88, %p89
      %p91 = scmp.ne.s32.totalorder %s82, %s83
      %p92 = scmp.eq.s32.totalorder %s30, 0
      %p93 = por %p91, %p92
      %p94 = scmp.ne.s32.totalorder %s82, %s83
      %p95 = scmp.eq.s32.totalorder %s31, 1
      %p96 = por %p94, %p95
      %p98 = scmp.ne.s32.totalorder %s83, %s97
      %p99 = scmp.eq.s32.totalorder %s31, 0
      %p100 = por %p98, %p99
      %s102 = sadd.s32 %s101, 1
      %p105 = scmp.eq.s32.totalorder %s25, 1
      %p106 = scmp.ne.s32.totalorder %s101, %s103
      %p107 = scmp.eq.s32.totalorder %s25, 0
      %p108 = por %p106, %p107
      %p109 = scmp.ne.s32.totalorder %s101, %s103
      %p110 = scmp.eq.s32.totalorder %s30, 1
      %p111 = por %p109, %p110
      %p112 = scmp.ne.s32.totalorder %s103, %s104
      %p113 = scmp.eq.s32.totalorder %s30, 0
      %p114 = por %p112, %p113
      %p115 = scmp.ne.s32.totalorder %s103, %s104
      %p116 = scmp.eq.s32.totalorder %s31, 1
      %p117 = por %p115, %p116
      %p119 = scmp.ne.s32.totalorder %s104, %s118
      %p120 = scmp.eq.s32.totalorder %s31, 0
      %p121 = por %p119, %p120
      %s123 = sadd.s32 %s122, 1
      %p126 = scmp.eq.s32.totalorder %s25, 1
      %p127 = scmp.ne.s32.totalorder %s122, %s124
      %p128 = scmp.eq.s32.totalorder %s25, 0
      %p129 = por %p127, %p128
      %p130 = scmp.ne.s32.totalorder %s122, %s124
      %p131 = scmp.eq.s32.totalorder %s30, 1
      %p132 = por %p130, %p131
      %p133 = scmp.ne.s32.totalorder %s124, %s125
      %p134 = scmp.eq.s32.totalorder %s30, 0
      %p135 = por %p133, %p134
      %p136 = scmp.ne.s32.totalorder %s124, %s125
      %p137 = scmp.eq.s32.totalorder %s31, 1
      %p138 = por %p136, %p137
      %p140 = scmp.ne.s32.totalorder %s125, %s139
      %p141 = scmp.eq.s32.totalorder %s31, 0
      %p142 = por %p140, %p141
      %s144 = sadd.s32 %s143, 1
      %p147 = scmp.eq.s32.totalorder %s25, 1
      %p148 = scmp.ne.s32.totalorder %s143, %s145
      %p149 = scmp.eq.s32.totalorder %s25, 0
      %p150 = por %p148, %p149
      %p151 = scmp.ne.s32.totalorder %s143, %s145
      %p152 = scmp.eq.s32.totalorder %s30, 1
      %p153 = por %p151, %p152
      %p154 = scmp.ne.s32.totalorder %s145, %s146
      %p155 = scmp.eq.s32.totalorder %s30, 0
      %p156 = por %p154, %p155
      %p157 = scmp.ne.s32.totalorder %s145, %s146
      %p158 = scmp.eq.s32.totalorder %s31, 1
      %p159 = por %p157, %p158
      %p161 = scmp.ne.s32.totalorder %s146, %s160
      %p162 = scmp.eq.s32.totalorder %s31, 0
      %p163 = por %p161, %p162
      %s165 = sadd.s32 %s164, 1
      %p168 = scmp.eq.s32.totalorder %s25, 1
      %p169 = scmp.ne.s32.totalorder %s164, %s166
      %p170 = scmp.eq.s32.totalorder %s25, 0
      %p171 = por %p169, %p170
      %p172 = scmp.ne.s32.totalorder %s164, %s166
      %p173 = scmp.eq.s32.totalorder %s30, 1
      %p174 = por %p172, %p173
      %p175 = scmp.ne.s32.totalorder %s166, %s167
      %p176 = scmp.eq.s32.totalorder %s30, 0
      %p177 = por %p175, %p176
      %p178 = scmp.ne.s32.totalorder %s166, %s167
      %p179 = scmp.eq.s32.totalorder %s31, 1
      %p180 = por %p178, %p179
      %p182 = scmp.ne.s32.totalorder %s167, %s181
      %p183 = scmp.eq.s32.totalorder %s31, 0
      %p184 = por %p182, %p183
      %s186 = sadd.s32 %s185, 1
      %p189 = scmp.eq.s32.totalorder %s25, 1
      %p190 = scmp.ne.s32.totalorder %s185, %s187
      %p191 = scmp.eq.s32.totalorder %s25, 0
      %p192 = por %p190, %p191
      %p193 = scmp.ne.s32.totalorder %s185, %s187
      %p194 = scmp.eq.s32.totalorder %s30, 1
      %p195 = por %p193, %p194
      %p196 = scmp.ne.s32.totalorder %s187, %s188
      %p197 = scmp.eq.s32.totalorder %s30, 0
      %p198 = por %p196, %p197
      %p199 = scmp.ne.s32.totalorder %s187, %s188
      %p200 = scmp.eq.s32.totalorder %s31, 1
      %p201 = por %p199, %p200
      %p203 = scmp.ne.s32.totalorder %s188, %s202
      %p204 = scmp.eq.s32.totalorder %s31, 0
      %p205 = por %p203, %p204
      %s207 = sadd.s32 %s206, 1
      %p210 = scmp.eq.s32.totalorder %s25, 1
      %p211 = scmp.ne.s32.totalorder %s206, %s208
      %p212 = scmp.eq.s32.totalorder %s25, 0
      %p213 = por %p211, %p212
      %p214 = scmp.ne.s32.totalorder %s206, %s208
      %p215 = scmp.eq.s32.totalorder %s30, 1
      %p216 = por %p214, %p215
      %p217 = scmp.ne.s32.totalorder %s208, %s209
      %p218 = scmp.eq.s32.totalorder %s30, 0
      %p219 = por %p217, %p218
      %p220 = scmp.ne.s32.totalorder %s208, %s209
      %p221 = scmp.eq.s32.totalorder %s31, 1
      %p222 = por %p220, %p221
      %p224 = scmp.ne.s32.totalorder %s209, %s223
      %p225 = scmp.eq.s32.totalorder %s31, 0
      %p226 = por %p224, %p225
      %s228 = sadd.s32 %s227, 1
      %p231 = scmp.eq.s32.totalorder %s25, 1
      %p232 = scmp.ne.s32.totalorder %s227, %s229
      %p233 = scmp.eq.s32.totalorder %s25, 0
      %p234 = por %p232, %p233
      %p235 = scmp.ne.s32.totalorder %s227, %s229
      %p236 = scmp.eq.s32.totalorder %s30, 1
      %p237 = por %p235, %p236
      %p238 = scmp.ne.s32.totalorder %s229, %s230
      %p239 = scmp.eq.s32.totalorder %s30, 0
      %p240 = por %p238, %p239
      %p241 = scmp.ne.s32.totalorder %s229, %s230
      %p242 = scmp.eq.s32.totalorder %s31, 1
      %p243 = por %p241, %p242
      %p245 = scmp.ne.s32.totalorder %s230, %s244
      %p246 = scmp.eq.s32.totalorder %s31, 0
      %p247 = por %p245, %p246
      %s249 = sadd.s32 %s248, 1
      %p252 = scmp.eq.s32.totalorder %s25, 1
      %p253 = scmp.ne.s32.totalorder %s248, %s250
      %p254 = scmp.eq.s32.totalorder %s25, 0
      %p255 = por %p253, %p254
      %p256 = scmp.ne.s32.totalorder %s248, %s250
      %p257 = scmp.eq.s32.totalorder %s30, 1
      %p258 = por %p256, %p257
      %p259 = scmp.ne.s32.totalorder %s250, %s251
      %p260 = scmp.eq.s32.totalorder %s30, 0
      %p261 = por %p259, %p260
      %p262 = scmp.ne.s32.totalorder %s250, %s251
      %p263 = scmp.eq.s32.totalorder %s31, 1
      %p264 = por %p262, %p263
      %p266 = scmp.ne.s32.totalorder %s251, %s265
      %p267 = scmp.eq.s32.totalorder %s31, 0
      %p268 = por %p266, %p267
      %s270 = sadd.s32 %s269, 1
      %p273 = scmp.eq.s32.totalorder %s25, 1
      %p274 = scmp.ne.s32.totalorder %s269, %s271
      %p275 = scmp.eq.s32.totalorder %s25, 0
      %p276 = por %p274, %p275
      %p277 = scmp.ne.s32.totalorder %s269, %s271
      %p278 = scmp.eq.s32.totalorder %s30, 1
      %p279 = por %p277, %p278
      %p280 = scmp.ne.s32.totalorder %s271, %s272
      %p281 = scmp.eq.s32.totalorder %s30, 0
      %p282 = por %p280, %p281
      %p283 = scmp.ne.s32.totalorder %s271, %s272
      %p284 = scmp.eq.s32.totalorder %s31, 1
      %p285 = por %p283, %p284
      %p287 = scmp.ne.s32.totalorder %s272, %s286
      %p288 = scmp.eq.s32.totalorder %s31, 0
      %p289 = por %p287, %p288
      %s291 = sadd.s32 %s290, 1
      %p294 = scmp.eq.s32.totalorder %s25, 1
      %p295 = scmp.ne.s32.totalorder %s290, %s292
      %p296 = scmp.eq.s32.totalorder %s25, 0
      %p297 = por %p295, %p296
      %p298 = scmp.ne.s32.totalorder %s290, %s292
      %p299 = scmp.eq.s32.totalorder %s30, 1
      %p300 = por %p298, %p299
      %p301 = scmp.ne.s32.totalorder %s292, %s293
      %p302 = scmp.eq.s32.totalorder %s30, 0
      %p303 = por %p301, %p302
      %p304 = scmp.ne.s32.totalorder %s292, %s293
      %p305 = scmp.eq.s32.totalorder %s31, 1
      %p306 = por %p304, %p305
      %p308 = scmp.ne.s32.totalorder %s293, %s307
      %p309 = scmp.eq.s32.totalorder %s31, 0
      %p310 = por %p308, %p309
      %s312 = sadd.s32 %s311, 1
      %p315 = scmp.eq.s32.totalorder %s25, 1
      %p316 = scmp.ne.s32.totalorder %s311, %s313
      %p317 = scmp.eq.s32.totalorder %s25, 0
      %p318 = por %p316, %p317
      %p319 = scmp.ne.s32.totalorder %s311, %s313
      %p320 = scmp.eq.s32.totalorder %s30, 1
      %p321 = por %p319, %p320
      %p322 = scmp.ne.s32.totalorder %s313, %s314
      %p323 = scmp.eq.s32.totalorder %s30, 0
      %p324 = por %p322, %p323
      %p325 = scmp.ne.s32.totalorder %s313, %s314
      %p326 = scmp.eq.s32.totalorder %s31, 1
      %p327 = por %p325, %p326
      %p329 = scmp.ne.s32.totalorder %s314, %s328
      %p330 = scmp.eq.s32.totalorder %s31, 0
      %p331 = por %p329, %p330
      %s333 = sadd.s32 %s332, 1
      %p336 = scmp.eq.s32.totalorder %s25, 1
      %p337 = scmp.ne.s32.totalorder %s332, %s334
      %p338 = scmp.eq.s32.totalorder %s25, 0
      %p339 = por %p337, %p338
      %p340 = scmp.ne.s32.totalorder %s332, %s334
      %p341 = scmp.eq.s32.totalorder %s30, 1
      %p342 = por %p340, %p341
      %p343 = scmp.ne.s32.totalorder %s334, %s335
      %p344 = scmp.eq.s32.totalorder %s30, 0
      %p345 = por %p343, %p344
      %p346 = scmp.ne.s32.totalorder %s334, %s335
      %p347 = scmp.eq.s32.totalorder %s31, 1
      %p348 = por %p346, %p347
      %p350 = scmp.ne.s32.totalorder %s335, %s349
      %p351 = scmp.eq.s32.totalorder %s31, 0
      %p352 = por %p350, %p351
      %s353 = ssub.s32 %s25, %s32
      %p354 = scmp.eq.s32.totalorder %s353, 0
      %s356 = sadd.s32 %s355, 1
      %s357 = scalar_select %p354, %s355, %s356
      %p360 = pneg %p354
      %p361 = scmp.eq.s32.totalorder %s25, 1
      %p362 = por %p360, %p361
      %p363 = scmp.ne.s32.totalorder %s355, %s358
      %p364 = scmp.eq.s32.totalorder %s25, 0
      %p365 = por %p363, %p364
      %p366 = scmp.ne.s32.totalorder %s355, %s358
      %p367 = scmp.eq.s32.totalorder %s30, 1
      %p368 = por %p366, %p367
      %p369 = scmp.ne.s32.totalorder %s358, %s359
      %p370 = scmp.eq.s32.totalorder %s30, 0
      %p371 = por %p369, %p370
      %p372 = scmp.ne.s32.totalorder %s358, %s359
      %p373 = scmp.eq.s32.totalorder %s31, 1
      %p374 = por %p372, %p373
      %p376 = scmp.ne.s32.totalorder %s359, %s375
      %p377 = scmp.eq.s32.totalorder %s31, 0
      %p378 = por %p376, %p377
      %p379 = scmp.le.s32.totalorder 1, %s25
      %p380 = scmp.lt.s32.totalorder %s25, 3
      %p381 = pnand %p379, %p380
      %p382 = pneg %p381
      // Predicated region
      $region9: #{tpu_custom_call.1} parent=5 // pred_check
        _
      $region10: #{tpu_custom_call.1} parent=5 // pred_check_branch
        %384 = sbr.rel (%p381) target = $region12
      $region11: #{tpu_custom_call.1} parent=5 // pred_region
        %s385 = ssub.s32 %s25, 1
        // Predicated region
        $region13: #{tpu_custom_call.1} parent=11 // pred_check
          %p386 = pneg %p46
        $region14: #{tpu_custom_call.1} parent=11 // pred_check_branch
          %388 = sbr.rel (%p386) target = $region16
        $region15: #{tpu_custom_call.1} parent=11 // pred_region
          %s390 = ssub.s32 16, 16
          %391 = vsyncadd [#allocation4], %s390
          %s393 = sshll.u32 %s0, 4
          %s394 = int_to_ptr.vmem [resolvable:$true] %s393
          %396 = dma.vmem_to_smem %s394, 16, [#allocation2], [#allocation4]
        $region16: #{tpu_custom_call.1} parent=11 // pred_fallthru
          _
        // Predicated region
        $region17: #{tpu_custom_call.1} parent=11 // pred_check
          %p397 = pneg %p93
        $region18: #{tpu_custom_call.1} parent=11 // pred_check_branch
          %399 = sbr.rel (%p397) target = $region20
        $region19: #{tpu_custom_call.1} parent=11 // pred_region
          _
        $region20: #{tpu_custom_call.1} parent=11 // pred_fallthru
          _
        // Predicated region
        $region21: #{tpu_custom_call.1} parent=11 // pred_check
          %p400 = pneg %p114
        $region22: #{tpu_custom_call.1} parent=11 // pred_check_branch
          %402 = sbr.rel (%p400) target = $region24
        $region23: #{tpu_custom_call.1} parent=11 // pred_region
          _
        $region24: #{tpu_custom_call.1} parent=11 // pred_fallthru
          _
        // Predicated region
        $region25: #{tpu_custom_call.1} parent=11 // pred_check
          %p403 = pneg %p135
        $region26: #{tpu_custom_call.1} parent=11 // pred_check_branch
          %405 = sbr.rel (%p403) target = $region28
        $region27: #{tpu_custom_call.1} parent=11 // pred_region
          _
        $region28: #{tpu_custom_call.1} parent=11 // pred_fallthru
          _
        // Predicated region
        $region29: #{tpu_custom_call.1} parent=11 // pred_check
          %p406 = pneg %p156
        $region30: #{tpu_custom_call.1} parent=11 // pred_check_branch
          %408 = sbr.rel (%p406) target = $region32
        $region31: #{tpu_custom_call.1} parent=11 // pred_region
          _
        $region32: #{tpu_custom_call.1} parent=11 // pred_fallthru
          _
        // Predicated region
        $region33: #{tpu_custom_call.1} parent=11 // pred_check
          %p409 = pneg %p177
        $region34: #{tpu_custom_call.1} parent=11 // pred_check_branch
          %411 = sbr.rel (%p409) target = $region36
        $region35: #{tpu_custom_call.1} parent=11 // pred_region
          _
        $region36: #{tpu_custom_call.1} parent=11 // pred_fallthru
          _
        // Predicated region
        $region37: #{tpu_custom_call.1} parent=11 // pred_check
          %p412 = pneg %p198
        $region38: #{tpu_custom_call.1} parent=11 // pred_check_branch
          %414 = sbr.rel (%p412) target = $region40
        $region39: #{tpu_custom_call.1} parent=11 // pred_region
          _
        $region40: #{tpu_custom_call.1} parent=11 // pred_fallthru
          _
        // Predicated region
        $region41: #{tpu_custom_call.1} parent=11 // pred_check
          %p415 = pneg %p219
        $region42: #{tpu_custom_call.1} parent=11 // pred_check_branch
          %417 = sbr.rel (%p415) target = $region44
        $region43: #{tpu_custom_call.1} parent=11 // pred_region
          _
        $region44: #{tpu_custom_call.1} parent=11 // pred_fallthru
          _
        // Predicated region
        $region45: #{tpu_custom_call.1} parent=11 // pred_check
          %p418 = pneg %p240
        $region46: #{tpu_custom_call.1} parent=11 // pred_check_branch
          %420 = sbr.rel (%p418) target = $region48
        $region47: #{tpu_custom_call.1} parent=11 // pred_region
          _
        $region48: #{tpu_custom_call.1} parent=11 // pred_fallthru
          _
        // Predicated region
        $region49: #{tpu_custom_call.1} parent=11 // pred_check
          %p421 = pneg %p261
        $region50: #{tpu_custom_call.1} parent=11 // pred_check_branch
          %423 = sbr.rel (%p421) target = $region52
        $region51: #{tpu_custom_call.1} parent=11 // pred_region
          _
        $region52: #{tpu_custom_call.1} parent=11 // pred_fallthru
          _
        // Predicated region
        $region53: #{tpu_custom_call.1} parent=11 // pred_check
          %p424 = pneg %p282
        $region54: #{tpu_custom_call.1} parent=11 // pred_check_branch
          %426 = sbr.rel (%p424) target = $region56
        $region55: #{tpu_custom_call.1} parent=11 // pred_region
          _
        $region56: #{tpu_custom_call.1} parent=11 // pred_fallthru
          _
        // Predicated region
        $region57: #{tpu_custom_call.1} parent=11 // pred_check
          %p427 = pneg %p303
        $region58: #{tpu_custom_call.1} parent=11 // pred_check_branch
          %429 = sbr.rel (%p427) target = $region60
        $region59: #{tpu_custom_call.1} parent=11 // pred_region
          _
        $region60: #{tpu_custom_call.1} parent=11 // pred_fallthru
          _
        // Predicated region
        $region61: #{tpu_custom_call.1} parent=11 // pred_check
          %p430 = pneg %p324
        $region62: #{tpu_custom_call.1} parent=11 // pred_check_branch
          %432 = sbr.rel (%p430) target = $region64
        $region63: #{tpu_custom_call.1} parent=11 // pred_region
          _
        $region64: #{tpu_custom_call.1} parent=11 // pred_fallthru
          _
        // Predicated region
        $region65: #{tpu_custom_call.1} parent=11 // pred_check
          %p433 = pneg %p345
        $region66: #{tpu_custom_call.1} parent=11 // pred_check_branch
          %435 = sbr.rel (%p433) target = $region68
        $region67: #{tpu_custom_call.1} parent=11 // pred_region
          _
        $region68: #{tpu_custom_call.1} parent=11 // pred_fallthru
          _
      $region12: #{tpu_custom_call.1} parent=5 // pred_fallthru
        _
      %p436 = scmp.lt.s32.totalorder %s25, 2
      // Predicated region
      $region69: #{tpu_custom_call.1} parent=5 // pred_check
        %p437 = pneg %p436
      $region70: #{tpu_custom_call.1} parent=5 // pred_check_branch
        %439 = sbr.rel (%p437) target = $region72
      $region71: #{tpu_custom_call.1} parent=5 // pred_region
        // Predicated region
        $region73: #{tpu_custom_call.1} parent=71 // pred_check
          %p440 = pneg %p66
        $region74: #{tpu_custom_call.1} parent=71 // pred_check_branch
          %442 = sbr.rel (%p440) target = $region76
        $region75: #{tpu_custom_call.1} parent=71 // pred_region
          %p443 = scmp.lt.s32.totalorder %s25, 1
          %s444 = scalar_select %p443, %s25, 1
          %s445 = smul.addr %s444, 8
          %s446 = scalar_lea.vmem %s1, %s445
        $region76: #{tpu_custom_call.1} parent=71 // pred_fallthru
          _
      $region72: #{tpu_custom_call.1} parent=5 // pred_fallthru
        _
      %p447 = scmp.le.s32.totalorder 1, %s25
      %p448 = scmp.lt.s32.totalorder %s25, 3
      %p449 = pnand %p447, %p448
      %p450 = pneg %p449
      // Predicated region
      $region77: #{tpu_custom_call.1} parent=5 // pred_check
        _
      $region78: #{tpu_custom_call.1} parent=5 // pred_check_branch
        %452 = sbr.rel (%p449) target = $region80
      $region79: #{tpu_custom_call.1} parent=5 // pred_region
        %s453 = ssub.s32 %s25, 1
        // Predicated region
        $region81: #{tpu_custom_call.1} parent=79 // pred_check
          %p454 = pneg %p46
        $region82: #{tpu_custom_call.1} parent=79 // pred_check_branch
          %456 = sbr.rel (%p454) target = $region84
        $region83: #{tpu_custom_call.1} parent=79 // pred_region
          %457 = dma.done [#allocation4], 16
        $region84: #{tpu_custom_call.1} parent=79 // pred_fallthru
          _
        %458 = sfence
        %p459 = pneg %p46
        %p460 = pneg %p43
        %p461 = scmp.lt.s32.totalorder %s30, 1
        %s462 = scalar_select %p461, %s30, 1
        %s463 = smul.addr %s462, 8
        %s464 = scalar_lea.vmem %s1, %s463
        %p465 = pneg %p72
        %p466 = pneg %p69
        %p467 = pneg %p93
        %p468 = pneg %p90
        %p469 = pneg %p114
        %p470 = pneg %p111
        %p471 = pneg %p135
        %p472 = pneg %p132
        %p473 = pneg %p156
        %p474 = pneg %p153
        %p475 = pneg %p177
        %p476 = pneg %p174
        %p477 = pneg %p198
        %p478 = pneg %p195
        %p479 = pneg %p219
        %p480 = pneg %p216
        %p481 = pneg %p240
        %p482 = pneg %p237
        %p483 = pneg %p261
        %p484 = pneg %p258
        %p485 = pneg %p282
        %p486 = pneg %p279
        %p487 = pneg %p303
        %p488 = pneg %p300
        %p489 = pneg %p324
        %p490 = pneg %p321
        %p491 = pneg %p345
        %p492 = pneg %p342
        %p493 = pneg %p371
        %p494 = pneg %p368
        %s495 = sand.u32 %s358, 1
        %s496 = scalar_lea.sflag [#allocation3], %s495
        %s497 = sand.u32 %s358, 1
        %s498 = smul.addr %s497, 4
        %s499 = scalar_lea.vmem [#allocation5], %s498
        %p500 = scmp.lt.s32.totalorder %s30, 1
        %s501 = scalar_select %p500, %s30, 1
        %s502 = smul.addr %s501, 8
        %s503 = scalar_lea.vmem %s1, %s502
        %v504 = vld [vmem:[%s2] sm:$0xff]
        %v505 = vld [vmem:[%s2 + $0x8] sm:$0xff]
        %v506 = vld [vmem:[%s2 + $0x10] sm:$0xff]
        %v507 = vld [vmem:[%s2 + $0x18] sm:$0xff]
        %v508 = vld [vmem:[%s2 + $0x20] sm:$0xff]
        %v509 = vld [vmem:[%s2 + $0x28] sm:$0xff]
        %v510 = vld [vmem:[%s2 + $0x30] sm:$0xff]
        %v511 = vld [vmem:[%s2 + $0x38] sm:$0xff]
        %v512 = vld [vmem:[%s2 + $0x40] sm:$0xff]
        %v513 = vld [vmem:[%s2 + $0x48] sm:$0xff]
        %v514 = vld [vmem:[%s2 + $0x50] sm:$0xff]
        %v515 = vld [vmem:[%s2 + $0x58] sm:$0xff]
        %v516 = vld [vmem:[%s2 + $0x60] sm:$0xff]
        %v517 = vld [vmem:[%s2 + $0x68] sm:$0xff]
        %v518 = vld [vmem:[%s2 + $0x70] sm:$0xff]
        %v519 = vld [vmem:[%s2 + $0x78] sm:$0xff]
        %v520 = vld [vmem:[%s3] sm:$0xf]
        %v521 = vld [vmem:[%s4] sm:$0x3f]
        %v522 = vld [vmem:[%s503] sm:$0xff]
        %v523 = vld [vmem:[%s5] sm:$0xff]
        %524 = vmatprep.subr.mxu0 0.0
        %525 = vmatpush1.msra.mxu0 %v504
        %526 = vmatprep.subr.mxu0 0.0
        %527 = vmatpush1.msra.mxu0 %v505
        %528 = vmatprep.subr.mxu0 0.0
        %529 = vmatpush1.msra.mxu0 %v506
        %530 = vmatprep.subr.mxu0 0.0
        %531 = vmatpush1.msra.mxu0 %v507
        %532 = vmatprep.subr.mxu0 0.0
        %533 = vmatpush1.msra.mxu0 %v508
        %534 = vmatprep.subr.mxu0 0.0
        %535 = vmatpush1.msra.mxu0 %v509
        %536 = vmatprep.subr.mxu0 0.0
        %537 = vmatpush1.msra.mxu0 %v510
        %538 = vmatprep.subr.mxu0 0.0
        %539 = vmatpush1.msra.mxu0 %v511
        %540 = vmatprep.subr.mxu0 0.0
        %541 = vmatpush1.msra.mxu0 %v512
        %542 = vmatprep.subr.mxu0 0.0
        %543 = vmatpush1.msra.mxu0 %v513
        %544 = vmatprep.subr.mxu0 0.0
        %545 = vmatpush1.msra.mxu0 %v514
        %546 = vmatprep.subr.mxu0 0.0
        %547 = vmatpush1.msra.mxu0 %v515
        %548 = vmatprep.subr.mxu0 0.0
        %549 = vmatpush1.msra.mxu0 %v516
        %550 = vmatprep.subr.mxu0 0.0
        %551 = vmatpush1.msra.mxu0 %v517
        %552 = vmatprep.subr.mxu0 0.0
        %553 = vmatpush1.msra.mxu0 %v518
        %554 = vmatprep.subr.mxu0 0.0
        %555 = vmatpush1.msra.mxu0 %v519
        %556 = vmatprep.subr.mxu0 0.0
        %557 = vmatpush1.msra.mxu0 0.0
        %558 = vmatprep.subr.mxu0 0.0
        %559 = vmatpush1.msra.mxu0 0.0
        %560 = vmatprep.subr.mxu0 0.0
        %561 = vmatpush1.msra.mxu0 0.0
        %562 = vmatprep.subr.mxu0 0.0
        %563 = vmatpush1.msra.mxu0 0.0
        %564 = vmatprep.subr.mxu0 0.0
        %565 = vmatpush1.msra.mxu0 0.0
        %566 = vmatprep.subr.mxu0 0.0
        %567 = vmatpush1.msra.mxu0 0.0
        %568 = vmatprep.subr.mxu0 0.0
        %569 = vmatpush1.msra.mxu0 0.0
        %570 = vmatprep.subr.mxu0 0.0
        %571 = vmatpush1.msra.mxu0 0.0
        %572 = vmatprep.subr.mxu0 0.0
        %573 = vmatpush1.msra.mxu0 0.0
        %574 = vmatprep.subr.mxu0 0.0
        %575 = vmatpush1.msra.mxu0 0.0
        %576 = vmatprep.subr.mxu0 0.0
        %577 = vmatpush1.msra.mxu0 0.0
        %578 = vmatprep.subr.mxu0 0.0
        %579 = vmatpush1.msra.mxu0 0.0
        %580 = vmatprep.subr.mxu0 0.0
        %581 = vmatpush1.msra.mxu0 0.0
        %582 = vmatprep.subr.mxu0 0.0
        %583 = vmatpush1.msra.mxu0 0.0
        %584 = vmatprep.subr.mxu0 0.0
        %585 = vmatpush1.msra.mxu0 0.0
        %586 = vmatprep.subr.mxu0 0.0
        %587 = vmatpush1.msra.mxu0 0.0
        %588 = vmatprep.mubr.f32.mxu0 0.0
        %589 = vmatmul.mubr.f32.gmra.mrb[0].mxu0 %v522
        %v590 = vpop.f32.mrb[0].mxu0
        %v591 = vadd.f32 0.0, %v590
        %v592 = vpop.f32.mrb[0].mxu0
        %593 = vdwg.mxu0
        %v594 = vmul.f32 %v522, %v522
        %595 = vmatprep.subr.mxu0 0.0
        %596 = vmatpush1.msra.mxu0 %v504
        %597 = vmatprep.subr.mxu0 0.0
        %598 = vmatpush1.msra.mxu0 %v505
        %599 = vmatprep.subr.mxu0 0.0
        %600 = vmatpush1.msra.mxu0 %v506
        %601 = vmatprep.subr.mxu0 0.0
        %602 = vmatpush1.msra.mxu0 %v507
        %603 = vmatprep.subr.mxu0 0.0
        %604 = vmatpush1.msra.mxu0 %v508
        %605 = vmatprep.subr.mxu0 0.0
        %606 = vmatpush1.msra.mxu0 %v509
        %607 = vmatprep.subr.mxu0 0.0
        %608 = vmatpush1.msra.mxu0 %v510
        %609 = vmatprep.subr.mxu0 0.0
        %610 = vmatpush1.msra.mxu0 %v511
        %611 = vmatprep.subr.mxu0 0.0
        %612 = vmatpush1.msra.mxu0 %v512
        %613 = vmatprep.subr.mxu0 0.0
        %614 = vmatpush1.msra.mxu0 %v513
        %615 = vmatprep.subr.mxu0 0.0
        %616 = vmatpush1.msra.mxu0 %v514
        %617 = vmatprep.subr.mxu0 0.0
        %618 = vmatpush1.msra.mxu0 %v515
        %619 = vmatprep.subr.mxu0 0.0
        %620 = vmatpush1.msra.mxu0 %v516
        %621 = vmatprep.subr.mxu0 0.0
        %622 = vmatpush1.msra.mxu0 %v517
        %623 = vmatprep.subr.mxu0 0.0
        %624 = vmatpush1.msra.mxu0 %v518
        %625 = vmatprep.subr.mxu0 0.0
        %626 = vmatpush1.msra.mxu0 %v519
        %627 = vmatprep.subr.mxu0 0.0
        %628 = vmatpush1.msra.mxu0 0.0
        %629 = vmatprep.subr.mxu0 0.0
        %630 = vmatpush1.msra.mxu0 0.0
        %631 = vmatprep.subr.mxu0 0.0
        %632 = vmatpush1.msra.mxu0 0.0
        %633 = vmatprep.subr.mxu0 0.0
        %634 = vmatpush1.msra.mxu0 0.0
        %635 = vmatprep.subr.mxu0 0.0
        %636 = vmatpush1.msra.mxu0 0.0
        %637 = vmatprep.subr.mxu0 0.0
        %638 = vmatpush1.msra.mxu0 0.0
        %639 = vmatprep.subr.mxu0 0.0
        %640 = vmatpush1.msra.mxu0 0.0
        %641 = vmatprep.subr.mxu0 0.0
        %642 = vmatpush1.msra.mxu0 0.0
        %643 = vmatprep.subr.mxu0 0.0
        %644 = vmatpush1.msra.mxu0 0.0
        %645 = vmatprep.subr.mxu0 0.0
        %646 = vmatpush1.msra.mxu0 0.0
        %647 = vmatprep.subr.mxu0 0.0
        %648 = vmatpush1.msra.mxu0 0.0
        %649 = vmatprep.subr.mxu0 0.0
        %650 = vmatpush1.msra.mxu0 0.0
        %651 = vmatprep.subr.mxu0 0.0
        %652 = vmatpush1.msra.mxu0 0.0
        %653 = vmatprep.subr.mxu0 0.0
        %654 = vmatpush1.msra.mxu0 0.0
        %655 = vmatprep.subr.mxu0 0.0
        %656 = vmatpush1.msra.mxu0 0.0
        %657 = vmatprep.subr.mxu0 0.0
        %658 = vmatpush1.msra.mxu0 0.0
        %659 = vmatprep.mubr.f32.mxu0 0.0
        %660 = vmatmul.mubr.f32.gmra.mrb[0].mxu0 %v594
        %v661 = vpop.f32.mrb[0].mxu0
        %v662 = vadd.f32 0.0, %v661
        %v663 = vpop.f32.mrb[0].mxu0
        %664 = vdwg.mxu0
        %vm665 = vcmask 31744
        %v666 = vsel %vm665, %v591, 0.0
        %v667 = vrot.slane %v666, 4
        %v668 = vadd.f32 %v666, %v667
        %v669 = vrot.slane %v668, 2
        %v670 = vadd.f32 %v668, %v669
        %v671 = vrot.slane %v670, 1
        %v672 = vadd.f32 %v670, %v671
        %v673 = vsel %vm665, %v662, 0.0
        %v674 = vrot.slane %v673, 4
        %v675 = vadd.f32 %v673, %v674
        %v676 = vrot.slane %v675, 2
        %v677 = vadd.f32 %v675, %v676
        %v678 = vrot.slane %v677, 1
        %v679 = vadd.f32 %v677, %v678
        %v680 = vmul.f32 %v672, 0.00390625
        %v681 = vmul.f32 %v679, 0.00390625
        %v682 = vmul.f32 %v680, %v680
        %v683 = vsub.f32 %v681, %v682
        %v684 = vmax.f32 %v683, 0.0
        %v685 = vadd.f32 %v684, 1e-08
        %v686 = vrsqrt.pop %v685
        %v687 = vsub.f32 0.0, %v680
        %v688 = vmul.f32 %v687, %v686
        %vm689 = vcmask 1040384
        %v690 = vsel %vm689, %v686, %v688
        %v692 = vsel %vm665, %v690, 0
        %vm694 = vcmask 1043456
        %v696 = vsel %vm694, %v520, 0
        %698 = vmatprep.subr.mxu0 0.0
        %699 = vmatpush1.msra.mxu0 %v696
        %700 = vmatprep.subr.mxu0 0.0
        %701 = vmatpush1.msra.mxu0 0.0
        %702 = vmatprep.subr.mxu0 0.0
        %703 = vmatpush1.msra.mxu0 0.0
        %704 = vmatprep.subr.mxu0 0.0
        %705 = vmatpush1.msra.mxu0 0.0
        %706 = vmatprep.subr.mxu0 0.0
        %707 = vmatpush1.msra.mxu0 0.0
        %708 = vmatprep.subr.mxu0 0.0
        %709 = vmatpush1.msra.mxu0 0.0
        %710 = vmatprep.subr.mxu0 0.0
        %711 = vmatpush1.msra.mxu0 0.0
        %712 = vmatprep.subr.mxu0 0.0
        %713 = vmatpush1.msra.mxu0 0.0
        %714 = vmatprep.subr.mxu0 0.0
        %715 = vmatpush1.msra.mxu0 0.0
        %716 = vmatprep.subr.mxu0 0.0
        %717 = vmatpush1.msra.mxu0 0.0
        %718 = vmatprep.subr.mxu0 0.0
        %719 = vmatpush1.msra.mxu0 0.0
        %720 = vmatprep.subr.mxu0 0.0
        %721 = vmatpush1.msra.mxu0 0.0
        %722 = vmatprep.subr.mxu0 0.0
        %723 = vmatpush1.msra.mxu0 0.0
        %724 = vmatprep.subr.mxu0 0.0
        %725 = vmatpush1.msra.mxu0 0.0
        %726 = vmatprep.subr.mxu0 0.0
        %727 = vmatpush1.msra.mxu0 0.0
        %728 = vmatprep.subr.mxu0 0.0
        %729 = vmatpush1.msra.mxu0 0.0
        %730 = vmatprep.subr.mxu0 0.0
        %731 = vmatpush1.msra.mxu0 0.0
        %732 = vmatprep.subr.mxu0 0.0
        %733 = vmatpush1.msra.mxu0 0.0
        %734 = vmatprep.subr.mxu0 0.0
        %735 = vmatpush1.msra.mxu0 0.0
        %736 = vmatprep.subr.mxu0 0.0
        %737 = vmatpush1.msra.mxu0 0.0
        %738 = vmatprep.subr.mxu0 0.0
        %739 = vmatpush1.msra.mxu0 0.0
        %740 = vmatprep.subr.mxu0 0.0
        %741 = vmatpush1.msra.mxu0 0.0
        %742 = vmatprep.subr.mxu0 0.0
        %743 = vmatpush1.msra.mxu0 0.0
        %744 = vmatprep.subr.mxu0 0.0
        %745 = vmatpush1.msra.mxu0 0.0
        %746 = vmatprep.subr.mxu0 0.0
        %747 = vmatpush1.msra.mxu0 0.0
        %748 = vmatprep.subr.mxu0 0.0
        %749 = vmatpush1.msra.mxu0 0.0
        %750 = vmatprep.subr.mxu0 0.0
        %751 = vmatpush1.msra.mxu0 0.0
        %752 = vmatprep.subr.mxu0 0.0
        %753 = vmatpush1.msra.mxu0 0.0
        %754 = vmatprep.subr.mxu0 0.0
        %755 = vmatpush1.msra.mxu0 0.0
        %756 = vmatprep.subr.mxu0 0.0
        %757 = vmatpush1.msra.mxu0 0.0
        %758 = vmatprep.subr.mxu0 0.0
        %759 = vmatpush1.msra.mxu0 0.0
        %760 = vmatprep.subr.mxu0 0.0
        %761 = vmatpush1.msra.mxu0 0.0
        %762 = vmatprep.mubr.f32.mxu0 0.0
        %763 = vmatmul.mubr.f32.gmra.mrb[0].mxu0 %v692
        %v764 = vpop.f32.mrb[0].mxu0
        %v765 = vadd.f32 0.0, %v764
        %v766 = vpop.f32.mrb[0].mxu0
        %767 = vdwg.mxu0
        %v768 = vlaneseq
        %v769 = vshrl.u32 %v768, 7
        %v770 = vsub.s32 0, %v769
        %v771 = vrot.slane %v765, %v770
        %v772 = vmul.f32 %v522, %v771
        %v773 = vlaneseq
        %v774 = vshrl.u32 %v773, 7
        %v775 = vsub.s32 1, %v774
        %v776 = vrot.slane %v765, %v775
        %v777 = vadd.f32 %v772, %v776
        %779 = vset.pattern.permute.xlu0 0
        %780 = vperm.xlu0 %779, %v523
        %v781 = vpop.permute.xlu0 %780
        %v783 = vmul.f32 %v781, %v777
        %784 = vset.pattern.permute.xlu0 1
        %785 = vperm.xlu0 %784, %v523
        %v786 = vpop.permute.xlu0 %785
        %v788 = vadd.f32 %v783, %v786
        %v789 = vld [vmem:[%s6] sm:$0xff]
        %v790 = vld [vmem:[%s6 + $0x8] sm:$0xff]
        %v791 = vld [vmem:[%s7] sm:$0xff]
        %v792 = vld [vmem:[%s7 + $0x8] sm:$0xff]
        %794 = vset.pattern.permute.xlu0 0
        %795 = vperm.xlu0 %794, %v791
        %v796 = vpop.permute.xlu0 %795
        %799 = vset.pattern.permute.xlu0 0
        %800 = vperm.xlu0 %799, %v792
        %v801 = vpop.permute.xlu0 %800
        %vm803 = vcmask 64512
        %v805 = vsel %vm803, %v789, 0
        %v808 = vsel %vm803, %v790, 0
        %810 = vmatprep.subr.mxu0 0.0
        %811 = vmatpush1.msra.mxu0 %v788
        %812 = vmatprep.subr.mxu0 0.0
        %813 = vmatpush1.msra.mxu0 0.0
        %814 = vmatprep.subr.mxu0 0.0
        %815 = vmatpush1.msra.mxu0 0.0
        %816 = vmatprep.subr.mxu0 0.0
        %817 = vmatpush1.msra.mxu0 0.0
        %818 = vmatprep.subr.mxu0 0.0
        %819 = vmatpush1.msra.mxu0 0.0
        %820 = vmatprep.subr.mxu0 0.0
        %821 = vmatpush1.msra.mxu0 0.0
        %822 = vmatprep.subr.mxu0 0.0
        %823 = vmatpush1.msra.mxu0 0.0
        %824 = vmatprep.subr.mxu0 0.0
        %825 = vmatpush1.msra.mxu0 0.0
        %826 = vmatprep.subr.mxu0 0.0
        %827 = vmatpush1.msra.mxu0 0.0
        %828 = vmatprep.subr.mxu0 0.0
        %829 = vmatpush1.msra.mxu0 0.0
        %830 = vmatprep.subr.mxu0 0.0
        %831 = vmatpush1.msra.mxu0 0.0
        %832 = vmatprep.subr.mxu0 0.0
        %833 = vmatpush1.msra.mxu0 0.0
        %834 = vmatprep.subr.mxu0 0.0
        %835 = vmatpush1.msra.mxu0 0.0
        %836 = vmatprep.subr.mxu0 0.0
        %837 = vmatpush1.msra.mxu0 0.0
        %838 = vmatprep.subr.mxu0 0.0
        %839 = vmatpush1.msra.mxu0 0.0
        %840 = vmatprep.subr.mxu0 0.0
        %841 = vmatpush1.msra.mxu0 0.0
        %842 = vmatprep.subr.mxu0 0.0
        %843 = vmatpush1.msra.mxu0 0.0
        %844 = vmatprep.subr.mxu0 0.0
        %845 = vmatpush1.msra.mxu0 0.0
        %846 = vmatprep.subr.mxu0 0.0
        %847 = vmatpush1.msra.mxu0 0.0
        %848 = vmatprep.subr.mxu0 0.0
        %849 = vmatpush1.msra.mxu0 0.0
        %850 = vmatprep.subr.mxu0 0.0
        %851 = vmatpush1.msra.mxu0 0.0
        %852 = vmatprep.subr.mxu0 0.0
        %853 = vmatpush1.msra.mxu0 0.0
        %854 = vmatprep.subr.mxu0 0.0
        %855 = vmatpush1.msra.mxu0 0.0
        %856 = vmatprep.subr.mxu0 0.0
        %857 = vmatpush1.msra.mxu0 0.0
        %858 = vmatprep.subr.mxu0 0.0
        %859 = vmatpush1.msra.mxu0 0.0
        %860 = vmatprep.subr.mxu0 0.0
        %861 = vmatpush1.msra.mxu0 0.0
        %862 = vmatprep.subr.mxu0 0.0
        %863 = vmatpush1.msra.mxu0 0.0
        %864 = vmatprep.subr.mxu0 0.0
        %865 = vmatpush1.msra.mxu0 0.0
        %866 = vmatprep.subr.mxu0 0.0
        %867 = vmatpush1.msra.mxu0 0.0
        %868 = vmatprep.subr.mxu0 0.0
        %869 = vmatpush1.msra.mxu0 0.0
        %870 = vmatprep.subr.mxu0 0.0
        %871 = vmatpush1.msra.mxu0 0.0
        %872 = vmatprep.subr.mxu0 0.0
        %873 = vmatpush1.msra.mxu0 0.0
        %874 = vmatprep.mubr.f32.mxu0 0.0
        %875 = vmatmul.mubr.f32.gmra.mrb[0].mxu0 %v805
        %v876 = vpop.f32.mrb[0].mxu0
        %v877 = vadd.f32 %v796, %v876
        %v878 = vpop.f32.mrb[0].mxu0
        %879 = vmatprep.mubr.f32.mxu0 0.0
        %880 = vmatmul.mubr.f32.gmra.mrb[0].mxu0 %v808
        %v881 = vpop.f32.mrb[0].mxu0
        %v882 = vadd.f32 %v801, %v881
        %v883 = vpop.f32.mrb[0].mxu0
        %884 = vdwg.mxu0
        %v885 = vld [vmem:[%s9] sm:$0xff]
        %v886 = vld [vmem:[%s9 + $0x8] sm:$0xff]
        %v887 = vld [vmem:[%s9 + $0x10] sm:$0xff]
        %v888 = vld [vmem:[%s9 + $0x18] sm:$0xff]
        %v889 = vld [vmem:[%s10] sm:$0xff]
        %v890 = vld [vmem:[%s10 + $0x8] sm:$0xff]
        %v891 = vld [vmem:[%s10 + $0x10] sm:$0xff]
        %v892 = vld [vmem:[%s10 + $0x18] sm:$0xff]
        %v893 = vld [vmem:[%s8] sm:$0xff]
        %v894 = vld [vmem:[%s8 + $0x8] sm:$0xff]
        %v895 = vld [vmem:[%s8 + $0x10] sm:$0xff]
        %v896 = vld [vmem:[%s8 + $0x18] sm:$0xff]
        %v897 = vld [vmem:[%s11] sm:$0xff]
        %v898 = vld [vmem:[%s11 + $0x8] sm:$0xff]
        %s899 = sld [smem:[#allocation2]]
        %s900 = sld [smem:[#allocation2 + $0x1]]
        %902 = vset.pattern.permute.xlu0 0
        %903 = vperm.xlu0 %902, %v885
        %v904 = vpop.permute.xlu0 %903
        %907 = vset.pattern.permute.xlu0 0
        %908 = vperm.xlu0 %907, %v886
        %v909 = vpop.permute.xlu0 %908
        %912 = vset.pattern.permute.xlu0 0
        %913 = vperm.xlu0 %912, %v887
        %v914 = vpop.permute.xlu0 %913
        %917 = vset.pattern.permute.xlu0 0
        %918 = vperm.xlu0 %917, %v888
        %v919 = vpop.permute.xlu0 %918
        %vm921 = vcmask 130048
        %v923 = vsel %vm921, %v893, 0
        %v926 = vsel %vm921, %v894, 0
        %v929 = vsel %vm921, %v895, 0
        %v932 = vsel %vm921, %v896, 0
        %934 = vmatprep.subr.mxu0 0.0
        %935 = vmatpush1.msra.mxu0 %v877
        %936 = vmatprep.subr.mxu0 0.0
        %937 = vmatpush1.msra.mxu0 %v882
        %938 = vmatprep.subr.mxu0 0.0
        %939 = vmatpush1.msra.mxu0 0.0
        %940 = vmatprep.subr.mxu0 0.0
        %941 = vmatpush1.msra.mxu0 0.0
        %942 = vmatprep.subr.mxu0 0.0
        %943 = vmatpush1.msra.mxu0 0.0
        %944 = vmatprep.subr.mxu0 0.0
        %945 = vmatpush1.msra.mxu0 0.0
        %946 = vmatprep.subr.mxu0 0.0
        %947 = vmatpush1.msra.mxu0 0.0
        %948 = vmatprep.subr.mxu0 0.0
        %949 = vmatpush1.msra.mxu0 0.0
        %950 = vmatprep.subr.mxu0 0.0
        %951 = vmatpush1.msra.mxu0 0.0
        %952 = vmatprep.subr.mxu0 0.0
        %953 = vmatpush1.msra.mxu0 0.0
        %954 = vmatprep.subr.mxu0 0.0
        %955 = vmatpush1.msra.mxu0 0.0
        %956 = vmatprep.subr.mxu0 0.0
        %957 = vmatpush1.msra.mxu0 0.0
        %958 = vmatprep.subr.mxu0 0.0
        %959 = vmatpush1.msra.mxu0 0.0
        %960 = vmatprep.subr.mxu0 0.0
        %961 = vmatpush1.msra.mxu0 0.0
        %962 = vmatprep.subr.mxu0 0.0
        %963 = vmatpush1.msra.mxu0 0.0
        %964 = vmatprep.subr.mxu0 0.0
        %965 = vmatpush1.msra.mxu0 0.0
        %966 = vmatprep.subr.mxu0 0.0
        %967 = vmatpush1.msra.mxu0 0.0
        %968 = vmatprep.subr.mxu0 0.0
        %969 = vmatpush1.msra.mxu0 0.0
        %970 = vmatprep.subr.mxu0 0.0
        %971 = vmatpush1.msra.mxu0 0.0
        %972 = vmatprep.subr.mxu0 0.0
        %973 = vmatpush1.msra.mxu0 0.0
        %974 = vmatprep.subr.mxu0 0.0
        %975 = vmatpush1.msra.mxu0 0.0
        %976 = vmatprep.subr.mxu0 0.0
        %977 = vmatpush1.msra.mxu0 0.0
        %978 = vmatprep.subr.mxu0 0.0
        %979 = vmatpush1.msra.mxu0 0.0
        %980 = vmatprep.subr.mxu0 0.0
        %981 = vmatpush1.msra.mxu0 0.0
        %982 = vmatprep.subr.mxu0 0.0
        %983 = vmatpush1.msra.mxu0 0.0
        %984 = vmatprep.subr.mxu0 0.0
        %985 = vmatpush1.msra.mxu0 0.0
        %986 = vmatprep.subr.mxu0 0.0
        %987 = vmatpush1.msra.mxu0 0.0
        %988 = vmatprep.subr.mxu0 0.0
        %989 = vmatpush1.msra.mxu0 0.0
        %990 = vmatprep.subr.mxu0 0.0
        %991 = vmatpush1.msra.mxu0 0.0
        %992 = vmatprep.subr.mxu0 0.0
        %993 = vmatpush1.msra.mxu0 0.0
        %994 = vmatprep.subr.mxu0 0.0
        %995 = vmatpush1.msra.mxu0 0.0
        %996 = vmatprep.subr.mxu0 0.0
        %997 = vmatpush1.msra.mxu0 0.0
        %998 = vmatprep.mubr.f32.mxu0 0.0
        %999 = vmatmul.mubr.f32.gmra.mrb[0].mxu0 %v923
        %v1000 = vpop.f32.mrb[0].mxu0
        %v1001 = vadd.f32 %v904, %v1000
        %v1002 = vpop.f32.mrb[0].mxu0
        %1003 = vmatprep.mubr.f32.mxu0 0.0
        %1004 = vmatmul.mubr.f32.gmra.mrb[0].mxu0 %v926
        %v1005 = vpop.f32.mrb[0].mxu0
        %v1006 = vadd.f32 %v909, %v1005
        %v1007 = vpop.f32.mrb[0].mxu0
        %1008 = vmatprep.mubr.f32.mxu0 0.0
        %1009 = vmatmul.mubr.f32.gmra.mrb[0].mxu0 %v929
        %v1010 = vpop.f32.mrb[0].mxu0
        %v1011 = vadd.f32 %v914, %v1010
        %v1012 = vpop.f32.mrb[0].mxu0
        %1013 = vmatprep.mubr.f32.mxu0 0.0
        %1014 = vmatmul.mubr.f32.gmra.mrb[0].mxu0 %v932
        %v1015 = vpop.f32.mrb[0].mxu0
        %v1016 = vadd.f32 %v919, %v1015
        %v1017 = vpop.f32.mrb[0].mxu0
        %1018 = vdwg.mxu0
        %vm1019 = vcmp.gt.f32.partialorder %v1001, 0.0
        %vm1020 = vcmp.gt.f32.partialorder %v1006, 0.0
        %vm1021 = vcmp.gt.f32.partialorder %v1011, 0.0
        %vm1022 = vcmp.gt.f32.partialorder %v1016, 0.0
        %v1023 = vstv %s899
        %v1024 = vmul.f32 %v1023, %v1001
        %v1025 = vmul.f32 %v1023, %v1006
        %v1026 = vmul.f32 %v1023, %v1011
        %v1027 = vmul.f32 %v1023, %v1016
        %v1028 = vsel %vm1019, %v1001, %v1024
        %v1029 = vsel %vm1020, %v1006, %v1025
        %v1030 = vsel %vm1021, %v1011, %v1026
        %v1031 = vsel %vm1022, %v1016, %v1027
        %1032 = vmatprep.subr.mxu0 0.0
        %1033 = vmatpush1.msra.mxu0 %v504
        %1034 = vmatprep.subr.mxu0 0.0
        %1035 = vmatpush1.msra.mxu0 %v505
        %1036 = vmatprep.subr.mxu0 0.0
        %1037 = vmatpush1.msra.mxu0 %v506
        %1038 = vmatprep.subr.mxu0 0.0
        %1039 = vmatpush1.msra.mxu0 %v507
        %1040 = vmatprep.subr.mxu0 0.0
        %1041 = vmatpush1.msra.mxu0 %v508
        %1042 = vmatprep.subr.mxu0 0.0
        %1043 = vmatpush1.msra.mxu0 %v509
        %1044 = vmatprep.subr.mxu0 0.0
        %1045 = vmatpush1.msra.mxu0 %v510
        %1046 = vmatprep.subr.mxu0 0.0
        %1047 = vmatpush1.msra.mxu0 %v511
        %1048 = vmatprep.subr.mxu0 0.0
        %1049 = vmatpush1.msra.mxu0 %v512
        %1050 = vmatprep.subr.mxu0 0.0
        %1051 = vmatpush1.msra.mxu0 %v513
        %1052 = vmatprep.subr.mxu0 0.0
        %1053 = vmatpush1.msra.mxu0 %v514
        %1054 = vmatprep.subr.mxu0 0.0
        %1055 = vmatpush1.msra.mxu0 %v515
        %1056 = vmatprep.subr.mxu0 0.0
        %1057 = vmatpush1.msra.mxu0 %v516
        %1058 = vmatprep.subr.mxu0 0.0
        %1059 = vmatpush1.msra.mxu0 %v517
        %1060 = vmatprep.subr.mxu0 0.0
        %1061 = vmatpush1.msra.mxu0 %v518
        %1062 = vmatprep.subr.mxu0 0.0
        %1063 = vmatpush1.msra.mxu0 %v519
        %1064 = vmatprep.subr.mxu0 0.0
        %1065 = vmatpush1.msra.mxu0 0.0
        %1066 = vmatprep.subr.mxu0 0.0
        %1067 = vmatpush1.msra.mxu0 0.0
        %1068 = vmatprep.subr.mxu0 0.0
        %1069 = vmatpush1.msra.mxu0 0.0
        %1070 = vmatprep.subr.mxu0 0.0
        %1071 = vmatpush1.msra.mxu0 0.0
        %1072 = vmatprep.subr.mxu0 0.0
        %1073 = vmatpush1.msra.mxu0 0.0
        %1074 = vmatprep.subr.mxu0 0.0
        %1075 = vmatpush1.msra.mxu0 0.0
        %1076 = vmatprep.subr.mxu0 0.0
        %1077 = vmatpush1.msra.mxu0 0.0
        %1078 = vmatprep.subr.mxu0 0.0
        %1079 = vmatpush1.msra.mxu0 0.0
        %1080 = vmatprep.subr.mxu0 0.0
        %1081 = vmatpush1.msra.mxu0 0.0
        %1082 = vmatprep.subr.mxu0 0.0
        %1083 = vmatpush1.msra.mxu0 0.0
        %1084 = vmatprep.subr.mxu0 0.0
        %1085 = vmatpush1.msra.mxu0 0.0
        %1086 = vmatprep.subr.mxu0 0.0
        %1087 = vmatpush1.msra.mxu0 0.0
        %1088 = vmatprep.subr.mxu0 0.0
        %1089 = vmatpush1.msra.mxu0 0.0
        %1090 = vmatprep.subr.mxu0 0.0
        %1091 = vmatpush1.msra.mxu0 0.0
        %1092 = vmatprep.subr.mxu0 0.0
        %1093 = vmatpush1.msra.mxu0 0.0
        %1094 = vmatprep.subr.mxu0 0.0
        %1095 = vmatpush1.msra.mxu0 0.0
        %1096 = vmatprep.mubr.f32.mxu0 0.0
        %1097 = vmatmul.mubr.f32.gmra.mrb[0].mxu0 %v1028
        %v1098 = vpop.f32.mrb[0].mxu0
        %v1099 = vadd.f32 0.0, %v1098
        %v1100 = vpop.f32.mrb[0].mxu0
        %1101 = vmatprep.mubr.f32.mxu0 0.0
        %1102 = vmatmul.mubr.f32.gmra.mrb[0].mxu0 %v1029
        %v1103 = vpop.f32.mrb[0].mxu0
        %v1104 = vadd.f32 0.0, %v1103
        %v1105 = vpop.f32.mrb[0].mxu0
        %1106 = vmatprep.mubr.f32.mxu0 0.0
        %1107 = vmatmul.mubr.f32.gmra.mrb[0].mxu0 %v1030
        %v1108 = vpop.f32.mrb[0].mxu0
        %v1109 = vadd.f32 0.0, %v1108
        %v1110 = vpop.f32.mrb[0].mxu0
        %1111 = vmatprep.mubr.f32.mxu0 0.0
        %1112 = vmatmul.mubr.f32.gmra.mrb[0].mxu0 %v1031
        %v1113 = vpop.f32.mrb[0].mxu0
        %v1114 = vadd.f32 0.0, %v1113
        %v1115 = vpop.f32.mrb[0].mxu0
        %1116 = vdwg.mxu0
        %v1117 = vmul.f32 %v1028, %v1028
        %v1118 = vmul.f32 %v1029, %v1029
        %v1119 = vmul.f32 %v1030, %v1030
        %v1120 = vmul.f32 %v1031, %v1031
        %1121 = vmatprep.subr.mxu0 0.0
        %1122 = vmatpush1.msra.mxu0 %v504
        %1123 = vmatprep.subr.mxu0 0.0
        %1124 = vmatpush1.msra.mxu0 %v505
        %1125 = vmatprep.subr.mxu0 0.0
        %1126 = vmatpush1.msra.mxu0 %v506
        %1127 = vmatprep.subr.mxu0 0.0
        %1128 = vmatpush1.msra.mxu0 %v507
        %1129 = vmatprep.subr.mxu0 0.0
        %1130 = vmatpush1.msra.mxu0 %v508
        %1131 = vmatprep.subr.mxu0 0.0
        %1132 = vmatpush1.msra.mxu0 %v509
        %1133 = vmatprep.subr.mxu0 0.0
        %1134 = vmatpush1.msra.mxu0 %v510
        %1135 = vmatprep.subr.mxu0 0.0
        %1136 = vmatpush1.msra.mxu0 %v511
        %1137 = vmatprep.subr.mxu0 0.0
        %1138 = vmatpush1.msra.mxu0 %v512
        %1139 = vmatprep.subr.mxu0 0.0
        %1140 = vmatpush1.msra.mxu0 %v513
        %1141 = vmatprep.subr.mxu0 0.0
        %1142 = vmatpush1.msra.mxu0 %v514
        %1143 = vmatprep.subr.mxu0 0.0
        %1144 = vmatpush1.msra.mxu0 %v515
        %1145 = vmatprep.subr.mxu0 0.0
        %1146 = vmatpush1.msra.mxu0 %v516
        %1147 = vmatprep.subr.mxu0 0.0
        %1148 = vmatpush1.msra.mxu0 %v517
        %1149 = vmatprep.subr.mxu0 0.0
        %1150 = vmatpush1.msra.mxu0 %v518
        %1151 = vmatprep.subr.mxu0 0.0
        %1152 = vmatpush1.msra.mxu0 %v519
        %1153 = vmatprep.subr.mxu0 0.0
        %1154 = vmatpush1.msra.mxu0 0.0
        %1155 = vmatprep.subr.mxu0 0.0
        %1156 = vmatpush1.msra.mxu0 0.0
        %1157 = vmatprep.subr.mxu0 0.0
        %1158 = vmatpush1.msra.mxu0 0.0
        %1159 = vmatprep.subr.mxu0 0.0
        %1160 = vmatpush1.msra.mxu0 0.0
        %1161 = vmatprep.subr.mxu0 0.0
        %1162 = vmatpush1.msra.mxu0 0.0
        %1163 = vmatprep.subr.mxu0 0.0
        %1164 = vmatpush1.msra.mxu0 0.0
        %1165 = vmatprep.subr.mxu0 0.0
        %1166 = vmatpush1.msra.mxu0 0.0
        %1167 = vmatprep.subr.mxu0 0.0
        %1168 = vmatpush1.msra.mxu0 0.0
        %1169 = vmatprep.subr.mxu0 0.0
        %1170 = vmatpush1.msra.mxu0 0.0
        %1171 = vmatprep.subr.mxu0 0.0
        %1172 = vmatpush1.msra.mxu0 0.0
        %1173 = vmatprep.subr.mxu0 0.0
        %1174 = vmatpush1.msra.mxu0 0.0
        %1175 = vmatprep.subr.mxu0 0.0
        %1176 = vmatpush1.msra.mxu0 0.0
        %1177 = vmatprep.subr.mxu0 0.0
        %1178 = vmatpush1.msra.mxu0 0.0
        %1179 = vmatprep.subr.mxu0 0.0
        %1180 = vmatpush1.msra.mxu0 0.0
        %1181 = vmatprep.subr.mxu0 0.0
        %1182 = vmatpush1.msra.mxu0 0.0
        %1183 = vmatprep.subr.mxu0 0.0
        %1184 = vmatpush1.msra.mxu0 0.0
        %1185 = vmatprep.mubr.f32.mxu0 0.0
        %1186 = vmatmul.mubr.f32.gmra.mrb[0].mxu0 %v1117
        %v1187 = vpop.f32.mrb[0].mxu0
        %v1188 = vadd.f32 0.0, %v1187
        %v1189 = vpop.f32.mrb[0].mxu0
        %1190 = vmatprep.mubr.f32.mxu0 0.0
        %1191 = vmatmul.mubr.f32.gmra.mrb[0].mxu0 %v1118
        %v1192 = vpop.f32.mrb[0].mxu0
        %v1193 = vadd.f32 0.0, %v1192
        %v1194 = vpop.f32.mrb[0].mxu0
        %1195 = vmatprep.mubr.f32.mxu0 0.0
        %1196 = vmatmul.mubr.f32.gmra.mrb[0].mxu0 %v1119
        %v1197 = vpop.f32.mrb[0].mxu0
        %v1198 = vadd.f32 0.0, %v1197
        %v1199 = vpop.f32.mrb[0].mxu0
        %1200 = vmatprep.mubr.f32.mxu0 0.0
        %1201 = vmatmul.mubr.f32.gmra.mrb[0].mxu0 %v1120
        %v1202 = vpop.f32.mrb[0].mxu0
        %v1203 = vadd.f32 0.0, %v1202
        %v1204 = vpop.f32.mrb[0].mxu0
        %1205 = vdwg.mxu0
        %v1206 = vsel %vm665, %v1099, 0.0
        %v1207 = vsel %vm665, %v1104, 0.0
        %v1208 = vadd.f32 %v1206, %v1207
        %v1209 = vsel %vm665, %v1109, 0.0
        %v1210 = vadd.f32 %v1208, %v1209
        %v1211 = vsel %vm665, %v1114, 0.0
        %v1212 = vadd.f32 %v1210, %v1211
        %v1213 = vrot.slane %v1212, 4
        %v1214 = vadd.f32 %v1212, %v1213
        %v1215 = vrot.slane %v1214, 2
        %v1216 = vadd.f32 %v1214, %v1215
        %v1217 = vrot.slane %v1216, 1
        %v1218 = vadd.f32 %v1216, %v1217
        %v1219 = vsel %vm665, %v1188, 0.0
        %v1220 = vsel %vm665, %v1193, 0.0
        %v1221 = vadd.f32 %v1219, %v1220
        %v1222 = vsel %vm665, %v1198, 0.0
        %v1223 = vadd.f32 %v1221, %v1222
        %v1224 = vsel %vm665, %v1203, 0.0
        %v1225 = vadd.f32 %v1223, %v1224
        %v1226 = vrot.slane %v1225, 4
        %v1227 = vadd.f32 %v1225, %v1226
        %v1228 = vrot.slane %v1227, 2
        %v1229 = vadd.f32 %v1227, %v1228
        %v1230 = vrot.slane %v1229, 1
        %v1231 = vadd.f32 %v1229, %v1230
        %v1232 = vmul.f32 %v1218, 0.0009765625
        %v1233 = vmul.f32 %v1231, 0.0009765625
        %v1234 = vmul.f32 %v1232, %v1232
        %v1235 = vsub.f32 %v1233, %v1234
        %v1236 = vmax.f32 %v1235, 0.0
        %v1237 = vadd.f32 %v1236, 1e-08
        %v1238 = vrsqrt.pop %v1237
        %v1239 = vsub.f32 0.0, %v1232
        %v1240 = vmul.f32 %v1239, %v1238
        %v1241 = vsel %vm689, %v1238, %v1240
        %v1243 = vsel %vm665, %v1241, 0
        %1245 = vmatprep.subr.mxu0 0.0
        %1246 = vmatpush1.msra.mxu0 %v696
        %1247 = vmatprep.subr.mxu0 0.0
        %1248 = vmatpush1.msra.mxu0 0.0
        %1249 = vmatprep.subr.mxu0 0.0
        %1250 = vmatpush1.msra.mxu0 0.0
        %1251 = vmatprep.subr.mxu0 0.0
        %1252 = vmatpush1.msra.mxu0 0.0
        %1253 = vmatprep.subr.mxu0 0.0
        %1254 = vmatpush1.msra.mxu0 0.0
        %1255 = vmatprep.subr.mxu0 0.0
        %1256 = vmatpush1.msra.mxu0 0.0
        %1257 = vmatprep.subr.mxu0 0.0
        %1258 = vmatpush1.msra.mxu0 0.0
        %1259 = vmatprep.subr.mxu0 0.0
        %1260 = vmatpush1.msra.mxu0 0.0
        %1261 = vmatprep.subr.mxu0 0.0
        %1262 = vmatpush1.msra.mxu0 0.0
        %1263 = vmatprep.subr.mxu0 0.0
        %1264 = vmatpush1.msra.mxu0 0.0
        %1265 = vmatprep.subr.mxu0 0.0
        %1266 = vmatpush1.msra.mxu0 0.0
        %1267 = vmatprep.subr.mxu0 0.0
        %1268 = vmatpush1.msra.mxu0 0.0
        %1269 = vmatprep.subr.mxu0 0.0
        %1270 = vmatpush1.msra.mxu0 0.0
        %1271 = vmatprep.subr.mxu0 0.0
        %1272 = vmatpush1.msra.mxu0 0.0
        %1273 = vmatprep.subr.mxu0 0.0
        %1274 = vmatpush1.msra.mxu0 0.0
        %1275 = vmatprep.subr.mxu0 0.0
        %1276 = vmatpush1.msra.mxu0 0.0
        %1277 = vmatprep.subr.mxu0 0.0
        %1278 = vmatpush1.msra.mxu0 0.0
        %1279 = vmatprep.subr.mxu0 0.0
        %1280 = vmatpush1.msra.mxu0 0.0
        %1281 = vmatprep.subr.mxu0 0.0
        %1282 = vmatpush1.msra.mxu0 0.0
        %1283 = vmatprep.subr.mxu0 0.0
        %1284 = vmatpush1.msra.mxu0 0.0
        %1285 = vmatprep.subr.mxu0 0.0
        %1286 = vmatpush1.msra.mxu0 0.0
        %1287 = vmatprep.subr.mxu0 0.0
        %1288 = vmatpush1.msra.mxu0 0.0
        %1289 = vmatprep.subr.mxu0 0.0
        %1290 = vmatpush1.msra.mxu0 0.0
        %1291 = vmatprep.subr.mxu0 0.0
        %1292 = vmatpush1.msra.mxu0 0.0
        %1293 = vmatprep.subr.mxu0 0.0
        %1294 = vmatpush1.msra.mxu0 0.0
        %1295 = vmatprep.subr.mxu0 0.0
        %1296 = vmatpush1.msra.mxu0 0.0
        %1297 = vmatprep.subr.mxu0 0.0
        %1298 = vmatpush1.msra.mxu0 0.0
        %1299 = vmatprep.subr.mxu0 0.0
        %1300 = vmatpush1.msra.mxu0 0.0
        %1301 = vmatprep.subr.mxu0 0.0
        %1302 = vmatpush1.msra.mxu0 0.0
        %1303 = vmatprep.subr.mxu0 0.0
        %1304 = vmatpush1.msra.mxu0 0.0
        %1305 = vmatprep.subr.mxu0 0.0
        %1306 = vmatpush1.msra.mxu0 0.0
        %1307 = vmatprep.subr.mxu0 0.0
        %1308 = vmatpush1.msra.mxu0 0.0
        %1309 = vmatprep.mubr.f32.mxu0 0.0
        %1310 = vmatmul.mubr.f32.gmra.mrb[0].mxu0 %v1243
        %v1311 = vpop.f32.mrb[0].mxu0
        %v1312 = vadd.f32 0.0, %v1311
        %v1313 = vpop.f32.mrb[0].mxu0
        %1314 = vdwg.mxu0
        %v1315 = vlaneseq
        %v1316 = vshrl.u32 %v1315, 7
        %v1317 = vsub.s32 0, %v1316
        %v1318 = vrot.slane %v1312, %v1317
        %v1319 = vmul.f32 %v1028, %v1318
        %v1320 = vmul.f32 %v1029, %v1318
        %v1321 = vmul.f32 %v1030, %v1318
        %v1322 = vmul.f32 %v1031, %v1318
        %v1323 = vlaneseq
        %v1324 = vshrl.u32 %v1323, 7
        %v1325 = vsub.s32 1, %v1324
        %v1326 = vrot.slane %v1312, %v1325
        %v1327 = vadd.f32 %v1319, %v1326
        %v1328 = vadd.f32 %v1320, %v1326
        %v1329 = vadd.f32 %v1321, %v1326
        %v1330 = vadd.f32 %v1322, %v1326
        %1331 = vset.pattern.permute.xlu0 1
        %1332 = vperm.xlu0 %1331, %v885
        %v1333 = vpop.permute.xlu0 %1332
        %1335 = vset.pattern.permute.xlu0 1
        %1336 = vperm.xlu0 %1335, %v886
        %v1337 = vpop.permute.xlu0 %1336
        %1339 = vset.pattern.permute.xlu0 1
        %1340 = vperm.xlu0 %1339, %v887
        %v1341 = vpop.permute.xlu0 %1340
        %1343 = vset.pattern.permute.xlu0 1
        %1344 = vperm.xlu0 %1343, %v888
        %v1345 = vpop.permute.xlu0 %1344
        %v1347 = vmul.f32 %v1333, %v1327
        %v1348 = vmul.f32 %v1337, %v1328
        %v1349 = vmul.f32 %v1341, %v1329
        %v1350 = vmul.f32 %v1345, %v1330
        %1351 = vset.pattern.permute.xlu0 2
        %1352 = vperm.xlu0 %1351, %v885
        %v1353 = vpop.permute.xlu0 %1352
        %1355 = vset.pattern.permute.xlu0 2
        %1356 = vperm.xlu0 %1355, %v886
        %v1357 = vpop.permute.xlu0 %1356
        %1359 = vset.pattern.permute.xlu0 2
        %1360 = vperm.xlu0 %1359, %v887
        %v1361 = vpop.permute.xlu0 %1360
        %1363 = vset.pattern.permute.xlu0 2
        %1364 = vperm.xlu0 %1363, %v888
        %v1365 = vpop.permute.xlu0 %1364
        %v1367 = vadd.f32 %v1347, %v1353
        %v1368 = vadd.f32 %v1348, %v1357
        %v1369 = vadd.f32 %v1349, %v1361
        %v1370 = vadd.f32 %v1350, %v1365
        %1371 = vrot.lane.b32.xlu0 %v1367, 1
        %v1372 = vpop.permute.xlu0 %1371
        %1373 = vrot.lane.b32.xlu0 %v1368, 1
        %v1374 = vpop.permute.xlu0 %1373
        %1375 = vrot.lane.b32.xlu0 %v1369, 1
        %v1376 = vpop.permute.xlu0 %1375
        %1377 = vrot.lane.b32.xlu0 %v1370, 1
        %v1378 = vpop.permute.xlu0 %1377
        %v1379 = vlaneseq
        %v1380 = vshrl.u32 %v1379, 7
        %v1381 = vsub.s32 0, %v1380
        %v1382 = vrot.slane %v521, %v1381
        %v1383 = vmul.f32 %v1372, %v1382
        %v1384 = vmul.f32 %v1374, %v1382
        %v1385 = vmul.f32 %v1376, %v1382
        %v1386 = vmul.f32 %v1378, %v1382
        %1388 = vset.pattern.permute.xlu0 0
        %1389 = vperm.xlu0 %1388, %v889
        %v1390 = vpop.permute.xlu0 %1389
        %1393 = vset.pattern.permute.xlu0 0
        %1394 = vperm.xlu0 %1393, %v890
        %v1395 = vpop.permute.xlu0 %1394
        %1398 = vset.pattern.permute.xlu0 0
        %1399 = vperm.xlu0 %1398, %v891
        %v1400 = vpop.permute.xlu0 %1399
        %1403 = vset.pattern.permute.xlu0 0
        %1404 = vperm.xlu0 %1403, %v892
        %v1405 = vpop.permute.xlu0 %1404
        %v1407 = vmul.f32 %v1390, %v1383
        %v1408 = vmul.f32 %v1395, %v1384
        %v1409 = vmul.f32 %v1400, %v1385
        %v1410 = vmul.f32 %v1405, %v1386
        %1411 = vset.pattern.permute.xlu0 1
        %1412 = vperm.xlu0 %1411, %v889
        %v1413 = vpop.permute.xlu0 %1412
        %1415 = vset.pattern.permute.xlu0 1
        %1416 = vperm.xlu0 %1415, %v890
        %v1417 = vpop.permute.xlu0 %1416
        %1419 = vset.pattern.permute.xlu0 1
        %1420 = vperm.xlu0 %1419, %v891
        %v1421 = vpop.permute.xlu0 %1420
        %1423 = vset.pattern.permute.xlu0 1
        %1424 = vperm.xlu0 %1423, %v892
        %v1425 = vpop.permute.xlu0 %1424
        %v1427 = vmul.f32 %v1413, %v1367
        %v1428 = vmul.f32 %v1417, %v1368
        %v1429 = vmul.f32 %v1421, %v1369
        %v1430 = vmul.f32 %v1425, %v1370
        %v1431 = vadd.f32 %v1407, %v1427
        %v1432 = vadd.f32 %v1408, %v1428
        %v1433 = vadd.f32 %v1409, %v1429
        %v1434 = vadd.f32 %v1410, %v1430
        %1435 = vrot.lane.b32.xlu0 %v1367, 127
        %v1436 = vpop.permute.xlu0 %1435
        %1437 = vrot.lane.b32.xlu0 %v1368, 127
        %v1438 = vpop.permute.xlu0 %1437
        %1439 = vrot.lane.b32.xlu0 %v1369, 127
        %v1440 = vpop.permute.xlu0 %1439
        %1441 = vrot.lane.b32.xlu0 %v1370, 127
        %v1442 = vpop.permute.xlu0 %1441
        %v1443 = vlaneseq
        %v1444 = vshrl.u32 %v1443, 7
        %v1445 = vsub.s32 2, %v1444
        %v1446 = vrot.slane %v521, %v1445
        %v1447 = vmul.f32 %v1436, %v1446
        %v1448 = vmul.f32 %v1438, %v1446
        %v1449 = vmul.f32 %v1440, %v1446
        %v1450 = vmul.f32 %v1442, %v1446
        %1451 = vset.pattern.permute.xlu0 2
        %1452 = vperm.xlu0 %1451, %v889
        %v1453 = vpop.permute.xlu0 %1452
        %1455 = vset.pattern.permute.xlu0 2
        %1456 = vperm.xlu0 %1455, %v890
        %v1457 = vpop.permute.xlu0 %1456
        %1459 = vset.pattern.permute.xlu0 2
        %1460 = vperm.xlu0 %1459, %v891
        %v1461 = vpop.permute.xlu0 %1460
        %1463 = vset.pattern.permute.xlu0 2
        %1464 = vperm.xlu0 %1463, %v892
        %v1465 = vpop.permute.xlu0 %1464
        %v1467 = vmul.f32 %v1453, %v1447
        %v1468 = vmul.f32 %v1457, %v1448
        %v1469 = vmul.f32 %v1461, %v1449
        %v1470 = vmul.f32 %v1465, %v1450
        %v1471 = vadd.f32 %v1431, %v1467
        %v1472 = vadd.f32 %v1432, %v1468
        %v1473 = vadd.f32 %v1433, %v1469
        %v1474 = vadd.f32 %v1434, %v1470
        %1475 = vset.pattern.permute.xlu0 3
        %1476 = vperm.xlu0 %1475, %v885
        %v1477 = vpop.permute.xlu0 %1476
        %1479 = vset.pattern.permute.xlu0 3
        %1480 = vperm.xlu0 %1479, %v886
        %v1481 = vpop.permute.xlu0 %1480
        %1483 = vset.pattern.permute.xlu0 3
        %1484 = vperm.xlu0 %1483, %v887
        %v1485 = vpop.permute.xlu0 %1484
        %1487 = vset.pattern.permute.xlu0 3
        %1488 = vperm.xlu0 %1487, %v888
        %v1489 = vpop.permute.xlu0 %1488
        %v1491 = vadd.f32 %v1471, %v1477
        %v1492 = vadd.f32 %v1472, %v1481
        %v1493 = vadd.f32 %v1473, %v1485
        %v1494 = vadd.f32 %v1474, %v1489
        %vm1495 = vcmp.gt.f32.partialorder %v1491, 0.0
        %vm1496 = vcmp.gt.f32.partialorder %v1492, 0.0
        %vm1497 = vcmp.gt.f32.partialorder %v1493, 0.0
        %vm1498 = vcmp.gt.f32.partialorder %v1494, 0.0
        %v1499 = vstv %s900
        %v1500 = vmul.f32 %v1499, %v1491
        %v1501 = vmul.f32 %v1499, %v1492
        %v1502 = vmul.f32 %v1499, %v1493
        %v1503 = vmul.f32 %v1499, %v1494
        %v1504 = vsel %vm1495, %v1491, %v1500
        %v1505 = vsel %vm1496, %v1492, %v1501
        %v1506 = vsel %vm1497, %v1493, %v1502
        %v1507 = vsel %vm1498, %v1494, %v1503
        %1508 = vmatprep.subr.mxu0 0.0
        %1509 = vmatpush1.msra.mxu0 %v504
        %1510 = vmatprep.subr.mxu0 0.0
        %1511 = vmatpush1.msra.mxu0 %v505
        %1512 = vmatprep.subr.mxu0 0.0
        %1513 = vmatpush1.msra.mxu0 %v506
        %1514 = vmatprep.subr.mxu0 0.0
        %1515 = vmatpush1.msra.mxu0 %v507
        %1516 = vmatprep.subr.mxu0 0.0
        %1517 = vmatpush1.msra.mxu0 %v508
        %1518 = vmatprep.subr.mxu0 0.0
        %1519 = vmatpush1.msra.mxu0 %v509
        %1520 = vmatprep.subr.mxu0 0.0
        %1521 = vmatpush1.msra.mxu0 %v510
        %1522 = vmatprep.subr.mxu0 0.0
        %1523 = vmatpush1.msra.mxu0 %v511
        %1524 = vmatprep.subr.mxu0 0.0
        %1525 = vmatpush1.msra.mxu0 %v512
        %1526 = vmatprep.subr.mxu0 0.0
        %1527 = vmatpush1.msra.mxu0 %v513
        %1528 = vmatprep.subr.mxu0 0.0
        %1529 = vmatpush1.msra.mxu0 %v514
        %1530 = vmatprep.subr.mxu0 0.0
        %1531 = vmatpush1.msra.mxu0 %v515
        %1532 = vmatprep.subr.mxu0 0.0
        %1533 = vmatpush1.msra.mxu0 %v516
        %1534 = vmatprep.subr.mxu0 0.0
        %1535 = vmatpush1.msra.mxu0 %v517
        %1536 = vmatprep.subr.mxu0 0.0
        %1537 = vmatpush1.msra.mxu0 %v518
        %1538 = vmatprep.subr.mxu0 0.0
        %1539 = vmatpush1.msra.mxu0 %v519
        %1540 = vmatprep.subr.mxu0 0.0
        %1541 = vmatpush1.msra.mxu0 0.0
        %1542 = vmatprep.subr.mxu0 0.0
        %1543 = vmatpush1.msra.mxu0 0.0
        %1544 = vmatprep.subr.mxu0 0.0
        %1545 = vmatpush1.msra.mxu0 0.0
        %1546 = vmatprep.subr.mxu0 0.0
        %1547 = vmatpush1.msra.mxu0 0.0
        %1548 = vmatprep.subr.mxu0 0.0
        %1549 = vmatpush1.msra.mxu0 0.0
        %1550 = vmatprep.subr.mxu0 0.0
        %1551 = vmatpush1.msra.mxu0 0.0
        %1552 = vmatprep.subr.mxu0 0.0
        %1553 = vmatpush1.msra.mxu0 0.0
        %1554 = vmatprep.subr.mxu0 0.0
        %1555 = vmatpush1.msra.mxu0 0.0
        %1556 = vmatprep.subr.mxu0 0.0
        %1557 = vmatpush1.msra.mxu0 0.0
        %1558 = vmatprep.subr.mxu0 0.0
        %1559 = vmatpush1.msra.mxu0 0.0
        %1560 = vmatprep.subr.mxu0 0.0
        %1561 = vmatpush1.msra.mxu0 0.0
        %1562 = vmatprep.subr.mxu0 0.0
        %1563 = vmatpush1.msra.mxu0 0.0
        %1564 = vmatprep.subr.mxu0 0.0
        %1565 = vmatpush1.msra.mxu0 0.0
        %1566 = vmatprep.subr.mxu0 0.0
        %1567 = vmatpush1.msra.mxu0 0.0
        %1568 = vmatprep.subr.mxu0 0.0
        %1569 = vmatpush1.msra.mxu0 0.0
        %1570 = vmatprep.subr.mxu0 0.0
        %1571 = vmatpush1.msra.mxu0 0.0
        %1572 = vmatprep.mubr.f32.mxu0 0.0
        %1573 = vmatmul.mubr.f32.gmra.mrb[0].mxu0 %v1504
        %v1574 = vpop.f32.mrb[0].mxu0
        %v1575 = vadd.f32 0.0, %v1574
        %v1576 = vpop.f32.mrb[0].mxu0
        %1577 = vmatprep.mubr.f32.mxu0 0.0
        %1578 = vmatmul.mubr.f32.gmra.mrb[0].mxu0 %v1505
        %v1579 = vpop.f32.mrb[0].mxu0
        %v1580 = vadd.f32 0.0, %v1579
        %v1581 = vpop.f32.mrb[0].mxu0
        %1582 = vmatprep.mubr.f32.mxu0 0.0
        %1583 = vmatmul.mubr.f32.gmra.mrb[0].mxu0 %v1506
        %v1584 = vpop.f32.mrb[0].mxu0
        %v1585 = vadd.f32 0.0, %v1584
        %v1586 = vpop.f32.mrb[0].mxu0
        %1587 = vmatprep.mubr.f32.mxu0 0.0
        %1588 = vmatmul.mubr.f32.gmra.mrb[0].mxu0 %v1507
        %v1589 = vpop.f32.mrb[0].mxu0
        %v1590 = vadd.f32 0.0, %v1589
        %v1591 = vpop.f32.mrb[0].mxu0
        %1592 = vdwg.mxu0
        %v1593 = vmul.f32 %v1504, %v1504
        %v1594 = vmul.f32 %v1505, %v1505
        %v1595 = vmul.f32 %v1506, %v1506
        %v1596 = vmul.f32 %v1507, %v1507
        %1597 = vmatprep.subr.mxu0 0.0
        %1598 = vmatpush1.msra.mxu0 %v504
        %1599 = vmatprep.subr.mxu0 0.0
        %1600 = vmatpush1.msra.mxu0 %v505
        %1601 = vmatprep.subr.mxu0 0.0
        %1602 = vmatpush1.msra.mxu0 %v506
        %1603 = vmatprep.subr.mxu0 0.0
        %1604 = vmatpush1.msra.mxu0 %v507
        %1605 = vmatprep.subr.mxu0 0.0
        %1606 = vmatpush1.msra.mxu0 %v508
        %1607 = vmatprep.subr.mxu0 0.0
        %1608 = vmatpush1.msra.mxu0 %v509
        %1609 = vmatprep.subr.mxu0 0.0
        %1610 = vmatpush1.msra.mxu0 %v510
        %1611 = vmatprep.subr.mxu0 0.0
        %1612 = vmatpush1.msra.mxu0 %v511
        %1613 = vmatprep.subr.mxu0 0.0
        %1614 = vmatpush1.msra.mxu0 %v512
        %1615 = vmatprep.subr.mxu0 0.0
        %1616 = vmatpush1.msra.mxu0 %v513
        %1617 = vmatprep.subr.mxu0 0.0
        %1618 = vmatpush1.msra.mxu0 %v514
        %1619 = vmatprep.subr.mxu0 0.0
        %1620 = vmatpush1.msra.mxu0 %v515
        %1621 = vmatprep.subr.mxu0 0.0
        %1622 = vmatpush1.msra.mxu0 %v516
        %1623 = vmatprep.subr.mxu0 0.0
        %1624 = vmatpush1.msra.mxu0 %v517
        %1625 = vmatprep.subr.mxu0 0.0
        %1626 = vmatpush1.msra.mxu0 %v518
        %1627 = vmatprep.subr.mxu0 0.0
        %1628 = vmatpush1.msra.mxu0 %v519
        %1629 = vmatprep.subr.mxu0 0.0
        %1630 = vmatpush1.msra.mxu0 0.0
        %1631 = vmatprep.subr.mxu0 0.0
        %1632 = vmatpush1.msra.mxu0 0.0
        %1633 = vmatprep.subr.mxu0 0.0
        %1634 = vmatpush1.msra.mxu0 0.0
        %1635 = vmatprep.subr.mxu0 0.0
        %1636 = vmatpush1.msra.mxu0 0.0
        %1637 = vmatprep.subr.mxu0 0.0
        %1638 = vmatpush1.msra.mxu0 0.0
        %1639 = vmatprep.subr.mxu0 0.0
        %1640 = vmatpush1.msra.mxu0 0.0
        %1641 = vmatprep.subr.mxu0 0.0
        %1642 = vmatpush1.msra.mxu0 0.0
        %1643 = vmatprep.subr.mxu0 0.0
        %1644 = vmatpush1.msra.mxu0 0.0
        %1645 = vmatprep.subr.mxu0 0.0
        %1646 = vmatpush1.msra.mxu0 0.0
        %1647 = vmatprep.subr.mxu0 0.0
        %1648 = vmatpush1.msra.mxu0 0.0
        %1649 = vmatprep.subr.mxu0 0.0
        %1650 = vmatpush1.msra.mxu0 0.0
        %1651 = vmatprep.subr.mxu0 0.0
        %1652 = vmatpush1.msra.mxu0 0.0
        %1653 = vmatprep.subr.mxu0 0.0
        %1654 = vmatpush1.msra.mxu0 0.0
        %1655 = vmatprep.subr.mxu0 0.0
        %1656 = vmatpush1.msra.mxu0 0.0
        %1657 = vmatprep.subr.mxu0 0.0
        %1658 = vmatpush1.msra.mxu0 0.0
        %1659 = vmatprep.subr.mxu0 0.0
        %1660 = vmatpush1.msra.mxu0 0.0
        %1661 = vmatprep.mubr.f32.mxu0 0.0
        %1662 = vmatmul.mubr.f32.gmra.mrb[0].mxu0 %v1593
        %v1663 = vpop.f32.mrb[0].mxu0
        %v1664 = vadd.f32 0.0, %v1663
        %v1665 = vpop.f32.mrb[0].mxu0
        %1666 = vmatprep.mubr.f32.mxu0 0.0
        %1667 = vmatmul.mubr.f32.gmra.mrb[0].mxu0 %v1594
        %v1668 = vpop.f32.mrb[0].mxu0
        %v1669 = vadd.f32 0.0, %v1668
        %v1670 = vpop.f32.mrb[0].mxu0
        %1671 = vmatprep.mubr.f32.mxu0 0.0
        %1672 = vmatmul.mubr.f32.gmra.mrb[0].mxu0 %v1595
        %v1673 = vpop.f32.mrb[0].mxu0
        %v1674 = vadd.f32 0.0, %v1673
        %v1675 = vpop.f32.mrb[0].mxu0
        %1676 = vmatprep.mubr.f32.mxu0 0.0
        %1677 = vmatmul.mubr.f32.gmra.mrb[0].mxu0 %v1596
        %v1678 = vpop.f32.mrb[0].mxu0
        %v1679 = vadd.f32 0.0, %v1678
        %v1680 = vpop.f32.mrb[0].mxu0
        %1681 = vdwg.mxu0
        %v1682 = vsel %vm665, %v1575, 0.0
        %v1683 = vsel %vm665, %v1580, 0.0
        %v1684 = vadd.f32 %v1682, %v1683
        %v1685 = vsel %vm665, %v1585, 0.0
        %v1686 = vadd.f32 %v1684, %v1685
        %v1687 = vsel %vm665, %v1590, 0.0
        %v1688 = vadd.f32 %v1686, %v1687
        %v1689 = vrot.slane %v1688, 4
        %v1690 = vadd.f32 %v1688, %v1689
        %v1691 = vrot.slane %v1690, 2
        %v1692 = vadd.f32 %v1690, %v1691
        %v1693 = vrot.slane %v1692, 1
        %v1694 = vadd.f32 %v1692, %v1693
        %v1695 = vsel %vm665, %v1664, 0.0
        %v1696 = vsel %vm665, %v1669, 0.0
        %v1697 = vadd.f32 %v1695, %v1696
        %v1698 = vsel %vm665, %v1674, 0.0
        %v1699 = vadd.f32 %v1697, %v1698
        %v1700 = vsel %vm665, %v1679, 0.0
        %v1701 = vadd.f32 %v1699, %v1700
        %v1702 = vrot.slane %v1701, 4
        %v1703 = vadd.f32 %v1701, %v1702
        %v1704 = vrot.slane %v1703, 2
        %v1705 = vadd.f32 %v1703, %v1704
        %v1706 = vrot.slane %v1705, 1
        %v1707 = vadd.f32 %v1705, %v1706
        %v1708 = vmul.f32 %v1694, 0.0009765625
        %v1709 = vmul.f32 %v1707, 0.0009765625
        %v1710 = vmul.f32 %v1708, %v1708
        %v1711 = vsub.f32 %v1709, %v1710
        %v1712 = vmax.f32 %v1711, 0.0
        %v1713 = vadd.f32 %v1712, 1e-08
        %v1714 = vrsqrt.pop %v1713
        %v1715 = vsub.f32 0.0, %v1708
        %v1716 = vmul.f32 %v1715, %v1714
        %v1717 = vsel %vm689, %v1714, %v1716
        %v1719 = vsel %vm665, %v1717, 0
        %1721 = vmatprep.subr.mxu0 0.0
        %1722 = vmatpush1.msra.mxu0 %v696
        %1723 = vmatprep.subr.mxu0 0.0
        %1724 = vmatpush1.msra.mxu0 0.0
        %1725 = vmatprep.subr.mxu0 0.0
        %1726 = vmatpush1.msra.mxu0 0.0
        %1727 = vmatprep.subr.mxu0 0.0
        %1728 = vmatpush1.msra.mxu0 0.0
        %1729 = vmatprep.subr.mxu0 0.0
        %1730 = vmatpush1.msra.mxu0 0.0
        %1731 = vmatprep.subr.mxu0 0.0
        %1732 = vmatpush1.msra.mxu0 0.0
        %1733 = vmatprep.subr.mxu0 0.0
        %1734 = vmatpush1.msra.mxu0 0.0
        %1735 = vmatprep.subr.mxu0 0.0
        %1736 = vmatpush1.msra.mxu0 0.0
        %1737 = vmatprep.subr.mxu0 0.0
        %1738 = vmatpush1.msra.mxu0 0.0
        %1739 = vmatprep.subr.mxu0 0.0
        %1740 = vmatpush1.msra.mxu0 0.0
        %1741 = vmatprep.subr.mxu0 0.0
        %1742 = vmatpush1.msra.mxu0 0.0
        %1743 = vmatprep.subr.mxu0 0.0
        %1744 = vmatpush1.msra.mxu0 0.0
        %1745 = vmatprep.subr.mxu0 0.0
        %1746 = vmatpush1.msra.mxu0 0.0
        %1747 = vmatprep.subr.mxu0 0.0
        %1748 = vmatpush1.msra.mxu0 0.0
        %1749 = vmatprep.subr.mxu0 0.0
        %1750 = vmatpush1.msra.mxu0 0.0
        %1751 = vmatprep.subr.mxu0 0.0
        %1752 = vmatpush1.msra.mxu0 0.0
        %1753 = vmatprep.subr.mxu0 0.0
        %1754 = vmatpush1.msra.mxu0 0.0
        %1755 = vmatprep.subr.mxu0 0.0
        %1756 = vmatpush1.msra.mxu0 0.0
        %1757 = vmatprep.subr.mxu0 0.0
        %1758 = vmatpush1.msra.mxu0 0.0
        %1759 = vmatprep.subr.mxu0 0.0
        %1760 = vmatpush1.msra.mxu0 0.0
        %1761 = vmatprep.subr.mxu0 0.0
        %1762 = vmatpush1.msra.mxu0 0.0
        %1763 = vmatprep.subr.mxu0 0.0
        %1764 = vmatpush1.msra.mxu0 0.0
        %1765 = vmatprep.subr.mxu0 0.0
        %1766 = vmatpush1.msra.mxu0 0.0
        %1767 = vmatprep.subr.mxu0 0.0
        %1768 = vmatpush1.msra.mxu0 0.0
        %1769 = vmatprep.subr.mxu0 0.0
        %1770 = vmatpush1.msra.mxu0 0.0
        %1771 = vmatprep.subr.mxu0 0.0
        %1772 = vmatpush1.msra.mxu0 0.0
        %1773 = vmatprep.subr.mxu0 0.0
        %1774 = vmatpush1.msra.mxu0 0.0
        %1775 = vmatprep.subr.mxu0 0.0
        %1776 = vmatpush1.msra.mxu0 0.0
        %1777 = vmatprep.subr.mxu0 0.0
        %1778 = vmatpush1.msra.mxu0 0.0
        %1779 = vmatprep.subr.mxu0 0.0
        %1780 = vmatpush1.msra.mxu0 0.0
        %1781 = vmatprep.subr.mxu0 0.0
        %1782 = vmatpush1.msra.mxu0 0.0
        %1783 = vmatprep.subr.mxu0 0.0
        %1784 = vmatpush1.msra.mxu0 0.0
        %1785 = vmatprep.mubr.f32.mxu0 0.0
        %1786 = vmatmul.mubr.f32.gmra.mrb[0].mxu0 %v1719
        %v1787 = vpop.f32.mrb[0].mxu0
        %v1788 = vadd.f32 0.0, %v1787
        %v1789 = vpop.f32.mrb[0].mxu0
        %1790 = vdwg.mxu0
        %v1791 = vlaneseq
        %v1792 = vshrl.u32 %v1791, 7
        %v1793 = vsub.s32 0, %v1792
        %v1794 = vrot.slane %v1788, %v1793
        %v1795 = vmul.f32 %v1504, %v1794
        %v1796 = vmul.f32 %v1505, %v1794
        %v1797 = vmul.f32 %v1506, %v1794
        %v1798 = vmul.f32 %v1507, %v1794
        %v1799 = vlaneseq
        %v1800 = vshrl.u32 %v1799, 7
        %v1801 = vsub.s32 1, %v1800
        %v1802 = vrot.slane %v1788, %v1801
        %v1803 = vadd.f32 %v1795, %v1802
        %v1804 = vadd.f32 %v1796, %v1802
        %v1805 = vadd.f32 %v1797, %v1802
        %v1806 = vadd.f32 %v1798, %v1802
        %1807 = vset.pattern.permute.xlu0 4
        %1808 = vperm.xlu0 %1807, %v885
        %v1809 = vpop.permute.xlu0 %1808
        %1811 = vset.pattern.permute.xlu0 4
        %1812 = vperm.xlu0 %1811, %v886
        %v1813 = vpop.permute.xlu0 %1812
        %1815 = vset.pattern.permute.xlu0 4
        %1816 = vperm.xlu0 %1815, %v887
        %v1817 = vpop.permute.xlu0 %1816
        %1819 = vset.pattern.permute.xlu0 4
        %1820 = vperm.xlu0 %1819, %v888
        %v1821 = vpop.permute.xlu0 %1820
        %v1823 = vmul.f32 %v1809, %v1803
        %v1824 = vmul.f32 %v1813, %v1804
        %v1825 = vmul.f32 %v1817, %v1805
        %v1826 = vmul.f32 %v1821, %v1806
        %1827 = vset.pattern.permute.xlu0 5
        %1828 = vperm.xlu0 %1827, %v885
        %v1829 = vpop.permute.xlu0 %1828
        %1831 = vset.pattern.permute.xlu0 5
        %1832 = vperm.xlu0 %1831, %v886
        %v1833 = vpop.permute.xlu0 %1832
        %1835 = vset.pattern.permute.xlu0 5
        %1836 = vperm.xlu0 %1835, %v887
        %v1837 = vpop.permute.xlu0 %1836
        %1839 = vset.pattern.permute.xlu0 5
        %1840 = vperm.xlu0 %1839, %v888
        %v1841 = vpop.permute.xlu0 %1840
        %v1843 = vadd.f32 %v1823, %v1829
        %v1844 = vadd.f32 %v1824, %v1833
        %v1845 = vadd.f32 %v1825, %v1837
        %v1846 = vadd.f32 %v1826, %v1841
        %vm1847 = vcmask 261120
        %v1849 = vsel %vm1847, %v897, 0
        %v1852 = vsel %vm1847, %v898, 0
        %1854 = vmatprep.subr.mxu0 0.0
        %1855 = vmatpush1.msra.mxu0 %v1843
        %1856 = vmatprep.subr.mxu0 0.0
        %1857 = vmatpush1.msra.mxu0 %v1844
        %1858 = vmatprep.subr.mxu0 0.0
        %1859 = vmatpush1.msra.mxu0 %v1845
        %1860 = vmatprep.subr.mxu0 0.0
        %1861 = vmatpush1.msra.mxu0 %v1846
        %1862 = vmatprep.subr.mxu0 0.0
        %1863 = vmatpush1.msra.mxu0 0.0
        %1864 = vmatprep.subr.mxu0 0.0
        %1865 = vmatpush1.msra.mxu0 0.0
        %1866 = vmatprep.subr.mxu0 0.0
        %1867 = vmatpush1.msra.mxu0 0.0
        %1868 = vmatprep.subr.mxu0 0.0
        %1869 = vmatpush1.msra.mxu0 0.0
        %1870 = vmatprep.subr.mxu0 0.0
        %1871 = vmatpush1.msra.mxu0 0.0
        %1872 = vmatprep.subr.mxu0 0.0
        %1873 = vmatpush1.msra.mxu0 0.0
        %1874 = vmatprep.subr.mxu0 0.0
        %1875 = vmatpush1.msra.mxu0 0.0
        %1876 = vmatprep.subr.mxu0 0.0
        %1877 = vmatpush1.msra.mxu0 0.0
        %1878 = vmatprep.subr.mxu0 0.0
        %1879 = vmatpush1.msra.mxu0 0.0
        %1880 = vmatprep.subr.mxu0 0.0
        %1881 = vmatpush1.msra.mxu0 0.0
        %1882 = vmatprep.subr.mxu0 0.0
        %1883 = vmatpush1.msra.mxu0 0.0
        %1884 = vmatprep.subr.mxu0 0.0
        %1885 = vmatpush1.msra.mxu0 0.0
        %1886 = vmatprep.subr.mxu0 0.0
        %1887 = vmatpush1.msra.mxu0 0.0
        %1888 = vmatprep.subr.mxu0 0.0
        %1889 = vmatpush1.msra.mxu0 0.0
        %1890 = vmatprep.subr.mxu0 0.0
        %1891 = vmatpush1.msra.mxu0 0.0
        %1892 = vmatprep.subr.mxu0 0.0
        %1893 = vmatpush1.msra.mxu0 0.0
        %1894 = vmatprep.subr.mxu0 0.0
        %1895 = vmatpush1.msra.mxu0 0.0
        %1896 = vmatprep.subr.mxu0 0.0
        %1897 = vmatpush1.msra.mxu0 0.0
        %1898 = vmatprep.subr.mxu0 0.0
        %1899 = vmatpush1.msra.mxu0 0.0
        %1900 = vmatprep.subr.mxu0 0.0
        %1901 = vmatpush1.msra.mxu0 0.0
        %1902 = vmatprep.subr.mxu0 0.0
        %1903 = vmatpush1.msra.mxu0 0.0
        %1904 = vmatprep.subr.mxu0 0.0
        %1905 = vmatpush1.msra.mxu0 0.0
        %1906 = vmatprep.subr.mxu0 0.0
        %1907 = vmatpush1.msra.mxu0 0.0
        %1908 = vmatprep.subr.mxu0 0.0
        %1909 = vmatpush1.msra.mxu0 0.0
        %1910 = vmatprep.subr.mxu0 0.0
        %1911 = vmatpush1.msra.mxu0 0.0
        %1912 = vmatprep.subr.mxu0 0.0
        %1913 = vmatpush1.msra.mxu0 0.0
        %1914 = vmatprep.subr.mxu0 0.0
        %1915 = vmatpush1.msra.mxu0 0.0
        %1916 = vmatprep.subr.mxu0 0.0
        %1917 = vmatpush1.msra.mxu0 0.0
        %1918 = vmatprep.mubr.f32.mxu0 0.0
        %1919 = vmatmul.mubr.f32.gmra.mrb[0].mxu0 %v1849
        %v1920 = vpop.f32.mrb[0].mxu0
        %v1921 = vadd.f32 0.0, %v1920
        %v1922 = vpop.f32.mrb[0].mxu0
        %1923 = vmatprep.mubr.f32.mxu0 0.0
        %1924 = vmatmul.mubr.f32.gmra.mrb[0].mxu0 %v1852
        %v1925 = vpop.f32.mrb[0].mxu0
        %v1926 = vadd.f32 0.0, %v1925
        %v1927 = vpop.f32.mrb[0].mxu0
        %1928 = vdwg.mxu0
        %v1929 = vadd.f32 %v877, %v1921
        %v1930 = vadd.f32 %v882, %v1926
        %v1931 = vld [vmem:[%s12] sm:$0xff]
        %v1932 = vld [vmem:[%s12 + $0x8] sm:$0xff]
        %1934 = vset.pattern.permute.xlu0 0
        %1935 = vperm.xlu0 %1934, %v1931
        %v1936 = vpop.permute.xlu0 %1935
        %1939 = vset.pattern.permute.xlu0 0
        %1940 = vperm.xlu0 %1939, %v1932
        %v1941 = vpop.permute.xlu0 %1940
        %v1943 = vadd.f32 %v1929, %v1936
        %v1944 = vadd.f32 %v1930, %v1941
        %s1945 = scalar_lea.vmem %s9, 32
        %v1946 = vld [vmem:[%s1945] sm:$0xff]
        %v1947 = vld [vmem:[%s1945 + $0x8] sm:$0xff]
        %v1948 = vld [vmem:[%s1945 + $0x10] sm:$0xff]
        %v1949 = vld [vmem:[%s1945 + $0x18] sm:$0xff]
        %s1950 = scalar_lea.vmem %s10, 32
        %v1951 = vld [vmem:[%s1950] sm:$0xff]
        %v1952 = vld [vmem:[%s1950 + $0x8] sm:$0xff]
        %v1953 = vld [vmem:[%s1950 + $0x10] sm:$0xff]
        %v1954 = vld [vmem:[%s1950 + $0x18] sm:$0xff]
        %s1955 = scalar_lea.vmem %s8, 32
        %v1956 = vld [vmem:[%s1955] sm:$0xff]
        %v1957 = vld [vmem:[%s1955 + $0x8] sm:$0xff]
        %v1958 = vld [vmem:[%s1955 + $0x10] sm:$0xff]
        %v1959 = vld [vmem:[%s1955 + $0x18] sm:$0xff]
        %s1960 = scalar_lea.vmem %s11, 16
        %v1961 = vld [vmem:[%s1960] sm:$0xff]
        %v1962 = vld [vmem:[%s1960 + $0x8] sm:$0xff]
        %s1963 = sld [smem:[#allocation2 + $0x2]]
        %s1964 = sld [smem:[#allocation2 + $0x3]]
        %1966 = vset.pattern.permute.xlu0 0
        %1967 = vperm.xlu0 %1966, %v1946
        %v1968 = vpop.permute.xlu0 %1967
        %1971 = vset.pattern.permute.xlu0 0
        %1972 = vperm.xlu0 %1971, %v1947
        %v1973 = vpop.permute.xlu0 %1972
        %1976 = vset.pattern.permute.xlu0 0
        %1977 = vperm.xlu0 %1976, %v1948
        %v1978 = vpop.permute.xlu0 %1977
        %1981 = vset.pattern.permute.xlu0 0
        %1982 = vperm.xlu0 %1981, %v1949
        %v1983 = vpop.permute.xlu0 %1982
        %v1986 = vsel %vm921, %v1956, 0
        %v1989 = vsel %vm921, %v1957, 0
        %v1992 = vsel %vm921, %v1958, 0
        %v1995 = vsel %vm921, %v1959, 0
        %1997 = vmatprep.subr.mxu0 0.0
        %1998 = vmatpush1.msra.mxu0 %v1943
        %1999 = vmatprep.subr.mxu0 0.0
        %2000 = vmatpush1.msra.mxu0 %v1944
        %2001 = vmatprep.subr.mxu0 0.0
        %2002 = vmatpush1.msra.mxu0 0.0
        %2003 = vmatprep.subr.mxu0 0.0
        %2004 = vmatpush1.msra.mxu0 0.0
        %2005 = vmatprep.subr.mxu0 0.0
        %2006 = vmatpush1.msra.mxu0 0.0
        %2007 = vmatprep.subr.mxu0 0.0
        %2008 = vmatpush1.msra.mxu0 0.0
        %2009 = vmatprep.subr.mxu0 0.0
        %2010 = vmatpush1.msra.mxu0 0.0
        %2011 = vmatprep.subr.mxu0 0.0
        %2012 = vmatpush1.msra.mxu0 0.0
        %2013 = vmatprep.subr.mxu0 0.0
        %2014 = vmatpush1.msra.mxu0 0.0
        %2015 = vmatprep.subr.mxu0 0.0
        %2016 = vmatpush1.msra.mxu0 0.0
        %2017 = vmatprep.subr.mxu0 0.0
        %2018 = vmatpush1.msra.mxu0 0.0
        %2019 = vmatprep.subr.mxu0 0.0
        %2020 = vmatpush1.msra.mxu0 0.0
        %2021 = vmatprep.subr.mxu0 0.0
        %2022 = vmatpush1.msra.mxu0 0.0
        %2023 = vmatprep.subr.mxu0 0.0
        %2024 = vmatpush1.msra.mxu0 0.0
        %2025 = vmatprep.subr.mxu0 0.0
        %2026 = vmatpush1.msra.mxu0 0.0
        %2027 = vmatprep.subr.mxu0 0.0
        %2028 = vmatpush1.msra.mxu0 0.0
        %2029 = vmatprep.subr.mxu0 0.0
        %2030 = vmatpush1.msra.mxu0 0.0
        %2031 = vmatprep.subr.mxu0 0.0
        %2032 = vmatpush1.msra.mxu0 0.0
        %2033 = vmatprep.subr.mxu0 0.0
        %2034 = vmatpush1.msra.mxu0 0.0
        %2035 = vmatprep.subr.mxu0 0.0
        %2036 = vmatpush1.msra.mxu0 0.0
        %2037 = vmatprep.subr.mxu0 0.0
        %2038 = vmatpush1.msra.mxu0 0.0
        %2039 = vmatprep.subr.mxu0 0.0
        %2040 = vmatpush1.msra.mxu0 0.0
        %2041 = vmatprep.subr.mxu0 0.0
        %2042 = vmatpush1.msra.mxu0 0.0
        %2043 = vmatprep.subr.mxu0 0.0
        %2044 = vmatpush1.msra.mxu0 0.0
        %2045 = vmatprep.subr.mxu0 0.0
        %2046 = vmatpush1.msra.mxu0 0.0
        %2047 = vmatprep.subr.mxu0 0.0
        %2048 = vmatpush1.msra.mxu0 0.0
        %2049 = vmatprep.subr.mxu0 0.0
        %2050 = vmatpush1.msra.mxu0 0.0
        %2051 = vmatprep.subr.mxu0 0.0
        %2052 = vmatpush1.msra.mxu0 0.0
        %2053 = vmatprep.subr.mxu0 0.0
        %2054 = vmatpush1.msra.mxu0 0.0
        %2055 = vmatprep.subr.mxu0 0.0
        %2056 = vmatpush1.msra.mxu0 0.0
        %2057 = vmatprep.subr.mxu0 0.0
        %2058 = vmatpush1.msra.mxu0 0.0
        %2059 = vmatprep.subr.mxu0 0.0
        %2060 = vmatpush1.msra.mxu0 0.0
        %2061 = vmatprep.mubr.f32.mxu0 0.0
        %2062 = vmatmul.mubr.f32.gmra.mrb[0].mxu0 %v1986
        %v2063 = vpop.f32.mrb[0].mxu0
        %v2064 = vadd.f32 %v1968, %v2063
        %v2065 = vpop.f32.mrb[0].mxu0
        %2066 = vmatprep.mubr.f32.mxu0 0.0
        %2067 = vmatmul.mubr.f32.gmra.mrb[0].mxu0 %v1989
        %v2068 = vpop.f32.mrb[0].mxu0
        %v2069 = vadd.f32 %v1973, %v2068
        %v2070 = vpop.f32.mrb[0].mxu0
        %2071 = vmatprep.mubr.f32.mxu0 0.0
        %2072 = vmatmul.mubr.f32.gmra.mrb[0].mxu0 %v1992
        %v2073 = vpop.f32.mrb[0].mxu0
        %v2074 = vadd.f32 %v1978, %v2073
        %v2075 = vpop.f32.mrb[0].mxu0
        %2076 = vmatprep.mubr.f32.mxu0 0.0
        %2077 = vmatmul.mubr.f32.gmra.mrb[0].mxu0 %v1995
        %v2078 = vpop.f32.mrb[0].mxu0
        %v2079 = vadd.f32 %v1983, %v2078
        %v2080 = vpop.f32.mrb[0].mxu0
        %2081 = vdwg.mxu0
        %vm2082 = vcmp.gt.f32.partialorder %v2064, 0.0
        %vm2083 = vcmp.gt.f32.partialorder %v2069, 0.0
        %vm2084 = vcmp.gt.f32.partialorder %v2074, 0.0
        %vm2085 = vcmp.gt.f32.partialorder %v2079, 0.0
        %v2086 = vstv %s1963
        %v2087 = vmul.f32 %v2086, %v2064
        %v2088 = vmul.f32 %v2086, %v2069
        %v2089 = vmul.f32 %v2086, %v2074
        %v2090 = vmul.f32 %v2086, %v2079
        %v2091 = vsel %vm2082, %v2064, %v2087
        %v2092 = vsel %vm2083, %v2069, %v2088
        %v2093 = vsel %vm2084, %v2074, %v2089
        %v2094 = vsel %vm2085, %v2079, %v2090
        %2095 = vmatprep.subr.mxu0 0.0
        %2096 = vmatpush1.msra.mxu0 %v504
        %2097 = vmatprep.subr.mxu0 0.0
        %2098 = vmatpush1.msra.mxu0 %v505
        %2099 = vmatprep.subr.mxu0 0.0
        %2100 = vmatpush1.msra.mxu0 %v506
        %2101 = vmatprep.subr.mxu0 0.0
        %2102 = vmatpush1.msra.mxu0 %v507
        %2103 = vmatprep.subr.mxu0 0.0
        %2104 = vmatpush1.msra.mxu0 %v508
        %2105 = vmatprep.subr.mxu0 0.0
        %2106 = vmatpush1.msra.mxu0 %v509
        %2107 = vmatprep.subr.mxu0 0.0
        %2108 = vmatpush1.msra.mxu0 %v510
        %2109 = vmatprep.subr.mxu0 0.0
        %2110 = vmatpush1.msra.mxu0 %v511
        %2111 = vmatprep.subr.mxu0 0.0
        %2112 = vmatpush1.msra.mxu0 %v512
        %2113 = vmatprep.subr.mxu0 0.0
        %2114 = vmatpush1.msra.mxu0 %v513
        %2115 = vmatprep.subr.mxu0 0.0
        %2116 = vmatpush1.msra.mxu0 %v514
        %2117 = vmatprep.subr.mxu0 0.0
        %2118 = vmatpush1.msra.mxu0 %v515
        %2119 = vmatprep.subr.mxu0 0.0
        %2120 = vmatpush1.msra.mxu0 %v516
        %2121 = vmatprep.subr.mxu0 0.0
        %2122 = vmatpush1.msra.mxu0 %v517
        %2123 = vmatprep.subr.mxu0 0.0
        %2124 = vmatpush1.msra.mxu0 %v518
        %2125 = vmatprep.subr.mxu0 0.0
        %2126 = vmatpush1.msra.mxu0 %v519
        %2127 = vmatprep.subr.mxu0 0.0
        %2128 = vmatpush1.msra.mxu0 0.0
        %2129 = vmatprep.subr.mxu0 0.0
        %2130 = vmatpush1.msra.mxu0 0.0
        %2131 = vmatprep.subr.mxu0 0.0
        %2132 = vmatpush1.msra.mxu0 0.0
        %2133 = vmatprep.subr.mxu0 0.0
        %2134 = vmatpush1.msra.mxu0 0.0
        %2135 = vmatprep.subr.mxu0 0.0
        %2136 = vmatpush1.msra.mxu0 0.0
        %2137 = vmatprep.subr.mxu0 0.0
        %2138 = vmatpush1.msra.mxu0 0.0
        %2139 = vmatprep.subr.mxu0 0.0
        %2140 = vmatpush1.msra.mxu0 0.0
        %2141 = vmatprep.subr.mxu0 0.0
        %2142 = vmatpush1.msra.mxu0 0.0
        %2143 = vmatprep.subr.mxu0 0.0
        %2144 = vmatpush1.msra.mxu0 0.0
        %2145 = vmatprep.subr.mxu0 0.0
        %2146 = vmatpush1.msra.mxu0 0.0
        %2147 = vmatprep.subr.mxu0 0.0
        %2148 = vmatpush1.msra.mxu0 0.0
        %2149 = vmatprep.subr.mxu0 0.0
        %2150 = vmatpush1.msra.mxu0 0.0
        %2151 = vmatprep.subr.mxu0 0.0
        %2152 = vmatpush1.msra.mxu0 0.0
        %2153 = vmatprep.subr.mxu0 0.0
        %2154 = vmatpush1.msra.mxu0 0.0
        %2155 = vmatprep.subr.mxu0 0.0
        %2156 = vmatpush1.msra.mxu0 0.0
        %2157 = vmatprep.subr.mxu0 0.0
        %2158 = vmatpush1.msra.mxu0 0.0
        %2159 = vmatprep.mubr.f32.mxu0 0.0
        %2160 = vmatmul.mubr.f32.gmra.mrb[0].mxu0 %v2091
        %v2161 = vpop.f32.mrb[0].mxu0
        %v2162 = vadd.f32 0.0, %v2161
        %v2163 = vpop.f32.mrb[0].mxu0
        %2164 = vmatprep.mubr.f32.mxu0 0.0
        %2165 = vmatmul.mubr.f32.gmra.mrb[0].mxu0 %v2092
        %v2166 = vpop.f32.mrb[0].mxu0
        %v2167 = vadd.f32 0.0, %v2166
        %v2168 = vpop.f32.mrb[0].mxu0
        %2169 = vmatprep.mubr.f32.mxu0 0.0
        %2170 = vmatmul.mubr.f32.gmra.mrb[0].mxu0 %v2093
        %v2171 = vpop.f32.mrb[0].mxu0
        %v2172 = vadd.f32 0.0, %v2171
        %v2173 = vpop.f32.mrb[0].mxu0
        %2174 = vmatprep.mubr.f32.mxu0 0.0
        %2175 = vmatmul.mubr.f32.gmra.mrb[0].mxu0 %v2094
        %v2176 = vpop.f32.mrb[0].mxu0
        %v2177 = vadd.f32 0.0, %v2176
        %v2178 = vpop.f32.mrb[0].mxu0
        %2179 = vdwg.mxu0
        %v2180 = vmul.f32 %v2091, %v2091
        %v2181 = vmul.f32 %v2092, %v2092
        %v2182 = vmul.f32 %v2093, %v2093
        %v2183 = vmul.f32 %v2094, %v2094
        %2184 = vmatprep.subr.mxu0 0.0
        %2185 = vmatpush1.msra.mxu0 %v504
        %2186 = vmatprep.subr.mxu0 0.0
        %2187 = vmatpush1.msra.mxu0 %v505
        %2188 = vmatprep.subr.mxu0 0.0
        %2189 = vmatpush1.msra.mxu0 %v506
        %2190 = vmatprep.subr.mxu0 0.0
        %2191 = vmatpush1.msra.mxu0 %v507
        %2192 = vmatprep.subr.mxu0 0.0
        %2193 = vmatpush1.msra.mxu0 %v508
        %2194 = vmatprep.subr.mxu0 0.0
        %2195 = vmatpush1.msra.mxu0 %v509
        %2196 = vmatprep.subr.mxu0 0.0
        %2197 = vmatpush1.msra.mxu0 %v510
        %2198 = vmatprep.subr.mxu0 0.0
        %2199 = vmatpush1.msra.mxu0 %v511
        %2200 = vmatprep.subr.mxu0 0.0
        %2201 = vmatpush1.msra.mxu0 %v512
        %2202 = vmatprep.subr.mxu0 0.0
        %2203 = vmatpush1.msra.mxu0 %v513
        %2204 = vmatprep.subr.mxu0 0.0
        %2205 = vmatpush1.msra.mxu0 %v514
        %2206 = vmatprep.subr.mxu0 0.0
        %2207 = vmatpush1.msra.mxu0 %v515
        %2208 = vmatprep.subr.mxu0 0.0
        %2209 = vmatpush1.msra.mxu0 %v516
        %2210 = vmatprep.subr.mxu0 0.0
        %2211 = vmatpush1.msra.mxu0 %v517
        %2212 = vmatprep.subr.mxu0 0.0
        %2213 = vmatpush1.msra.mxu0 %v518
        %2214 = vmatprep.subr.mxu0 0.0
        %2215 = vmatpush1.msra.mxu0 %v519
        %2216 = vmatprep.subr.mxu0 0.0
        %2217 = vmatpush1.msra.mxu0 0.0
        %2218 = vmatprep.subr.mxu0 0.0
        %2219 = vmatpush1.msra.mxu0 0.0
        %2220 = vmatprep.subr.mxu0 0.0
        %2221 = vmatpush1.msra.mxu0 0.0
        %2222 = vmatprep.subr.mxu0 0.0
        %2223 = vmatpush1.msra.mxu0 0.0
        %2224 = vmatprep.subr.mxu0 0.0
        %2225 = vmatpush1.msra.mxu0 0.0
        %2226 = vmatprep.subr.mxu0 0.0
        %2227 = vmatpush1.msra.mxu0 0.0
        %2228 = vmatprep.subr.mxu0 0.0
        %2229 = vmatpush1.msra.mxu0 0.0
        %2230 = vmatprep.subr.mxu0 0.0
        %2231 = vmatpush1.msra.mxu0 0.0
        %2232 = vmatprep.subr.mxu0 0.0
        %2233 = vmatpush1.msra.mxu0 0.0
        %2234 = vmatprep.subr.mxu0 0.0
        %2235 = vmatpush1.msra.mxu0 0.0
        %2236 = vmatprep.subr.mxu0 0.0
        %2237 = vmatpush1.msra.mxu0 0.0
        %2238 = vmatprep.subr.mxu0 0.0
        %2239 = vmatpush1.msra.mxu0 0.0
        %2240 = vmatprep.subr.mxu0 0.0
        %2241 = vmatpush1.msra.mxu0 0.0
        %2242 = vmatprep.subr.mxu0 0.0
        %2243 = vmatpush1.msra.mxu0 0.0
        %2244 = vmatprep.subr.mxu0 0.0
        %2245 = vmatpush1.msra.mxu0 0.0
        %2246 = vmatprep.subr.mxu0 0.0
        %2247 = vmatpush1.msra.mxu0 0.0
        %2248 = vmatprep.mubr.f32.mxu0 0.0
        %2249 = vmatmul.mubr.f32.gmra.mrb[0].mxu0 %v2180
        %v2250 = vpop.f32.mrb[0].mxu0
        %v2251 = vadd.f32 0.0, %v2250
        %v2252 = vpop.f32.mrb[0].mxu0
        %2253 = vmatprep.mubr.f32.mxu0 0.0
        %2254 = vmatmul.mubr.f32.gmra.mrb[0].mxu0 %v2181
        %v2255 = vpop.f32.mrb[0].mxu0
        %v2256 = vadd.f32 0.0, %v2255
        %v2257 = vpop.f32.mrb[0].mxu0
        %2258 = vmatprep.mubr.f32.mxu0 0.0
        %2259 = vmatmul.mubr.f32.gmra.mrb[0].mxu0 %v2182
        %v2260 = vpop.f32.mrb[0].mxu0
        %v2261 = vadd.f32 0.0, %v2260
        %v2262 = vpop.f32.mrb[0].mxu0
        %2263 = vmatprep.mubr.f32.mxu0 0.0
        %2264 = vmatmul.mubr.f32.gmra.mrb[0].mxu0 %v2183
        %v2265 = vpop.f32.mrb[0].mxu0
        %v2266 = vadd.f32 0.0, %v2265
        %v2267 = vpop.f32.mrb[0].mxu0
        %2268 = vdwg.mxu0
        %v2269 = vsel %vm665, %v2162, 0.0
        %v2270 = vsel %vm665, %v2167, 0.0
        %v2271 = vadd.f32 %v2269, %v2270
        %v2272 = vsel %vm665, %v2172, 0.0
        %v2273 = vadd.f32 %v2271, %v2272
        %v2274 = vsel %vm665, %v2177, 0.0
        %v2275 = vadd.f32 %v2273, %v2274
        %v2276 = vrot.slane %v2275, 4
        %v2277 = vadd.f32 %v2275, %v2276
        %v2278 = vrot.slane %v2277, 2
        %v2279 = vadd.f32 %v2277, %v2278
        %v2280 = vrot.slane %v2279, 1
        %v2281 = vadd.f32 %v2279, %v2280
        %v2282 = vsel %vm665, %v2251, 0.0
        %v2283 = vsel %vm665, %v2256, 0.0
        %v2284 = vadd.f32 %v2282, %v2283
        %v2285 = vsel %vm665, %v2261, 0.0
        %v2286 = vadd.f32 %v2284, %v2285
        %v2287 = vsel %vm665, %v2266, 0.0
        %v2288 = vadd.f32 %v2286, %v2287
        %v2289 = vrot.slane %v2288, 4
        %v2290 = vadd.f32 %v2288, %v2289
        %v2291 = vrot.slane %v2290, 2
        %v2292 = vadd.f32 %v2290, %v2291
        %v2293 = vrot.slane %v2292, 1
        %v2294 = vadd.f32 %v2292, %v2293
        %v2295 = vmul.f32 %v2281, 0.0009765625
        %v2296 = vmul.f32 %v2294, 0.0009765625
        %v2297 = vmul.f32 %v2295, %v2295
        %v2298 = vsub.f32 %v2296, %v2297
        %v2299 = vmax.f32 %v2298, 0.0
        %v2300 = vadd.f32 %v2299, 1e-08
        %v2301 = vrsqrt.pop %v2300
        %v2302 = vsub.f32 0.0, %v2295
        %v2303 = vmul.f32 %v2302, %v2301
        %v2304 = vsel %vm689, %v2301, %v2303
        %v2306 = vsel %vm665, %v2304, 0
        %2308 = vmatprep.subr.mxu0 0.0
        %2309 = vmatpush1.msra.mxu0 %v696
        %2310 = vmatprep.subr.mxu0 0.0
        %2311 = vmatpush1.msra.mxu0 0.0
        %2312 = vmatprep.subr.mxu0 0.0
        %2313 = vmatpush1.msra.mxu0 0.0
        %2314 = vmatprep.subr.mxu0 0.0
        %2315 = vmatpush1.msra.mxu0 0.0
        %2316 = vmatprep.subr.mxu0 0.0
        %2317 = vmatpush1.msra.mxu0 0.0
        %2318 = vmatprep.subr.mxu0 0.0
        %2319 = vmatpush1.msra.mxu0 0.0
        %2320 = vmatprep.subr.mxu0 0.0
        %2321 = vmatpush1.msra.mxu0 0.0
        %2322 = vmatprep.subr.mxu0 0.0
        %2323 = vmatpush1.msra.mxu0 0.0
        %2324 = vmatprep.subr.mxu0 0.0
        %2325 = vmatpush1.msra.mxu0 0.0
        %2326 = vmatprep.subr.mxu0 0.0
        %2327 = vmatpush1.msra.mxu0 0.0
        %2328 = vmatprep.subr.mxu0 0.0
        %2329 = vmatpush1.msra.mxu0 0.0
        %2330 = vmatprep.subr.mxu0 0.0
        %2331 = vmatpush1.msra.mxu0 0.0
        %2332 = vmatprep.subr.mxu0 0.0
        %2333 = vmatpush1.msra.mxu0 0.0
        %2334 = vmatprep.subr.mxu0 0.0
        %2335 = vmatpush1.msra.mxu0 0.0
        %2336 = vmatprep.subr.mxu0 0.0
        %2337 = vmatpush1.msra.mxu0 0.0
        %2338 = vmatprep.subr.mxu0 0.0
        %2339 = vmatpush1.msra.mxu0 0.0
        %2340 = vmatprep.subr.mxu0 0.0
        %2341 = vmatpush1.msra.mxu0 0.0
        %2342 = vmatprep.subr.mxu0 0.0
        %2343 = vmatpush1.msra.mxu0 0.0
        %2344 = vmatprep.subr.mxu0 0.0
        %2345 = vmatpush1.msra.mxu0 0.0
        %2346 = vmatprep.subr.mxu0 0.0
        %2347 = vmatpush1.msra.mxu0 0.0
        %2348 = vmatprep.subr.mxu0 0.0
        %2349 = vmatpush1.msra.mxu0 0.0
        %2350 = vmatprep.subr.mxu0 0.0
        %2351 = vmatpush1.msra.mxu0 0.0
        %2352 = vmatprep.subr.mxu0 0.0
        %2353 = vmatpush1.msra.mxu0 0.0
        %2354 = vmatprep.subr.mxu0 0.0
        %2355 = vmatpush1.msra.mxu0 0.0
        %2356 = vmatprep.subr.mxu0 0.0
        %2357 = vmatpush1.msra.mxu0 0.0
        %2358 = vmatprep.subr.mxu0 0.0
        %2359 = vmatpush1.msra.mxu0 0.0
        %2360 = vmatprep.subr.mxu0 0.0
        %2361 = vmatpush1.msra.mxu0 0.0
        %2362 = vmatprep.subr.mxu0 0.0
        %2363 = vmatpush1.msra.mxu0 0.0
        %2364 = vmatprep.subr.mxu0 0.0
        %2365 = vmatpush1.msra.mxu0 0.0
        %2366 = vmatprep.subr.mxu0 0.0
        %2367 = vmatpush1.msra.mxu0 0.0
        %2368 = vmatprep.subr.mxu0 0.0
        %2369 = vmatpush1.msra.mxu0 0.0
        %2370 = vmatprep.subr.mxu0 0.0
        %2371 = vmatpush1.msra.mxu0 0.0
        %2372 = vmatprep.mubr.f32.mxu0 0.0
        %2373 = vmatmul.mubr.f32.gmra.mrb[0].mxu0 %v2306
        %v2374 = vpop.f32.mrb[0].mxu0
        %v2375 = vadd.f32 0.0, %v2374
        %v2376 = vpop.f32.mrb[0].mxu0
        %2377 = vdwg.mxu0
        %v2378 = vlaneseq
        %v2379 = vshrl.u32 %v2378, 7
        %v2380 = vsub.s32 0, %v2379
        %v2381 = vrot.slane %v2375, %v2380
        %v2382 = vmul.f32 %v2091, %v2381
        %v2383 = vmul.f32 %v2092, %v2381
        %v2384 = vmul.f32 %v2093, %v2381
        %v2385 = vmul.f32 %v2094, %v2381
        %v2386 = vlaneseq
        %v2387 = vshrl.u32 %v2386, 7
        %v2388 = vsub.s32 1, %v2387
        %v2389 = vrot.slane %v2375, %v2388
        %v2390 = vadd.f32 %v2382, %v2389
        %v2391 = vadd.f32 %v2383, %v2389
        %v2392 = vadd.f32 %v2384, %v2389
        %v2393 = vadd.f32 %v2385, %v2389
        %2394 = vset.pattern.permute.xlu0 1
        %2395 = vperm.xlu0 %2394, %v1946
        %v2396 = vpop.permute.xlu0 %2395
        %2398 = vset.pattern.permute.xlu0 1
        %2399 = vperm.xlu0 %2398, %v1947
        %v2400 = vpop.permute.xlu0 %2399
        %2402 = vset.pattern.permute.xlu0 1
        %2403 = vperm.xlu0 %2402, %v1948
        %v2404 = vpop.permute.xlu0 %2403
        %2406 = vset.pattern.permute.xlu0 1
        %2407 = vperm.xlu0 %2406, %v1949
        %v2408 = vpop.permute.xlu0 %2407
        %v2410 = vmul.f32 %v2396, %v2390
        %v2411 = vmul.f32 %v2400, %v2391
        %v2412 = vmul.f32 %v2404, %v2392
        %v2413 = vmul.f32 %v2408, %v2393
        %2414 = vset.pattern.permute.xlu0 2
        %2415 = vperm.xlu0 %2414, %v1946
        %v2416 = vpop.permute.xlu0 %2415
        %2418 = vset.pattern.permute.xlu0 2
        %2419 = vperm.xlu0 %2418, %v1947
        %v2420 = vpop.permute.xlu0 %2419
        %2422 = vset.pattern.permute.xlu0 2
        %2423 = vperm.xlu0 %2422, %v1948
        %v2424 = vpop.permute.xlu0 %2423
        %2426 = vset.pattern.permute.xlu0 2
        %2427 = vperm.xlu0 %2426, %v1949
        %v2428 = vpop.permute.xlu0 %2427
        %v2430 = vadd.f32 %v2410, %v2416
        %v2431 = vadd.f32 %v2411, %v2420
        %v2432 = vadd.f32 %v2412, %v2424
        %v2433 = vadd.f32 %v2413, %v2428
        %2434 = vrot.lane.b32.xlu0 %v2430, 2
        %v2435 = vpop.permute.xlu0 %2434
        %2436 = vrot.lane.b32.xlu0 %v2431, 2
        %v2437 = vpop.permute.xlu0 %2436
        %2438 = vrot.lane.b32.xlu0 %v2432, 2
        %v2439 = vpop.permute.xlu0 %2438
        %2440 = vrot.lane.b32.xlu0 %v2433, 2
        %v2441 = vpop.permute.xlu0 %2440
        %v2442 = vlaneseq
        %v2443 = vshrl.u32 %v2442, 7
        %v2444 = vsub.s32 3, %v2443
        %v2445 = vrot.slane %v521, %v2444
        %v2446 = vmul.f32 %v2435, %v2445
        %v2447 = vmul.f32 %v2437, %v2445
        %v2448 = vmul.f32 %v2439, %v2445
        %v2449 = vmul.f32 %v2441, %v2445
        %2451 = vset.pattern.permute.xlu0 0
        %2452 = vperm.xlu0 %2451, %v1951
        %v2453 = vpop.permute.xlu0 %2452
        %2456 = vset.pattern.permute.xlu0 0
        %2457 = vperm.xlu0 %2456, %v1952
        %v2458 = vpop.permute.xlu0 %2457
        %2461 = vset.pattern.permute.xlu0 0
        %2462 = vperm.xlu0 %2461, %v1953
        %v2463 = vpop.permute.xlu0 %2462
        %2466 = vset.pattern.permute.xlu0 0
        %2467 = vperm.xlu0 %2466, %v1954
        %v2468 = vpop.permute.xlu0 %2467
        %v2470 = vmul.f32 %v2453, %v2446
        %v2471 = vmul.f32 %v2458, %v2447
        %v2472 = vmul.f32 %v2463, %v2448
        %v2473 = vmul.f32 %v2468, %v2449
        %2474 = vset.pattern.permute.xlu0 1
        %2475 = vperm.xlu0 %2474, %v1951
        %v2476 = vpop.permute.xlu0 %2475
        %2478 = vset.pattern.permute.xlu0 1
        %2479 = vperm.xlu0 %2478, %v1952
        %v2480 = vpop.permute.xlu0 %2479
        %2482 = vset.pattern.permute.xlu0 1
        %2483 = vperm.xlu0 %2482, %v1953
        %v2484 = vpop.permute.xlu0 %2483
        %2486 = vset.pattern.permute.xlu0 1
        %2487 = vperm.xlu0 %2486, %v1954
        %v2488 = vpop.permute.xlu0 %2487
        %v2490 = vmul.f32 %v2476, %v2430
        %v2491 = vmul.f32 %v2480, %v2431
        %v2492 = vmul.f32 %v2484, %v2432
        %v2493 = vmul.f32 %v2488, %v2433
        %v2494 = vadd.f32 %v2470, %v2490
        %v2495 = vadd.f32 %v2471, %v2491
        %v2496 = vadd.f32 %v2472, %v2492
        %v2497 = vadd.f32 %v2473, %v2493
        %2498 = vrot.lane.b32.xlu0 %v2430, 126
        %v2499 = vpop.permute.xlu0 %2498
        %2500 = vrot.lane.b32.xlu0 %v2431, 126
        %v2501 = vpop.permute.xlu0 %2500
        %2502 = vrot.lane.b32.xlu0 %v2432, 126
        %v2503 = vpop.permute.xlu0 %2502
        %2504 = vrot.lane.b32.xlu0 %v2433, 126
        %v2505 = vpop.permute.xlu0 %2504
        %v2506 = vlaneseq
        %v2507 = vshrl.u32 %v2506, 7
        %v2508 = vsub.s32 5, %v2507
        %v2509 = vrot.slane %v521, %v2508
        %v2510 = vmul.f32 %v2499, %v2509
        %v2511 = vmul.f32 %v2501, %v2509
        %v2512 = vmul.f32 %v2503, %v2509
        %v2513 = vmul.f32 %v2505, %v2509
        %2514 = vset.pattern.permute.xlu0 2
        %2515 = vperm.xlu0 %2514, %v1951
        %v2516 = vpop.permute.xlu0 %2515
        %2518 = vset.pattern.permute.xlu0 2
        %2519 = vperm.xlu0 %2518, %v1952
        %v2520 = vpop.permute.xlu0 %2519
        %2522 = vset.pattern.permute.xlu0 2
        %2523 = vperm.xlu0 %2522, %v1953
        %v2524 = vpop.permute.xlu0 %2523
        %2526 = vset.pattern.permute.xlu0 2
        %2527 = vperm.xlu0 %2526, %v1954
        %v2528 = vpop.permute.xlu0 %2527
        %v2530 = vmul.f32 %v2516, %v2510
        %v2531 = vmul.f32 %v2520, %v2511
        %v2532 = vmul.f32 %v2524, %v2512
        %v2533 = vmul.f32 %v2528, %v2513
        %v2534 = vadd.f32 %v2494, %v2530
        %v2535 = vadd.f32 %v2495, %v2531
        %v2536 = vadd.f32 %v2496, %v2532
        %v2537 = vadd.f32 %v2497, %v2533
        %2538 = vset.pattern.permute.xlu0 3
        %2539 = vperm.xlu0 %2538, %v1946
        %v2540 = vpop.permute.xlu0 %2539
        %2542 = vset.pattern.permute.xlu0 3
        %2543 = vperm.xlu0 %2542, %v1947
        %v2544 = vpop.permute.xlu0 %2543
        %2546 = vset.pattern.permute.xlu0 3
        %2547 = vperm.xlu0 %2546, %v1948
        %v2548 = vpop.permute.xlu0 %2547
        %2550 = vset.pattern.permute.xlu0 3
        %2551 = vperm.xlu0 %2550, %v1949
        %v2552 = vpop.permute.xlu0 %2551
        %v2554 = vadd.f32 %v2534, %v2540
        %v2555 = vadd.f32 %v2535, %v2544
        %v2556 = vadd.f32 %v2536, %v2548
        %v2557 = vadd.f32 %v2537, %v2552
        %vm2558 = vcmp.gt.f32.partialorder %v2554, 0.0
        %vm2559 = vcmp.gt.f32.partialorder %v2555, 0.0
        %vm2560 = vcmp.gt.f32.partialorder %v2556, 0.0
        %vm2561 = vcmp.gt.f32.partialorder %v2557, 0.0
        %v2562 = vstv %s1964
        %v2563 = vmul.f32 %v2562, %v2554
        %v2564 = vmul.f32 %v2562, %v2555
        %v2565 = vmul.f32 %v2562, %v2556
        %v2566 = vmul.f32 %v2562, %v2557
        %v2567 = vsel %vm2558, %v2554, %v2563
        %v2568 = vsel %vm2559, %v2555, %v2564
        %v2569 = vsel %vm2560, %v2556, %v2565
        %v2570 = vsel %vm2561, %v2557, %v2566
        %2571 = vmatprep.subr.mxu0 0.0
        %2572 = vmatpush1.msra.mxu0 %v504
        %2573 = vmatprep.subr.mxu0 0.0
        %2574 = vmatpush1.msra.mxu0 %v505
        %2575 = vmatprep.subr.mxu0 0.0
        %2576 = vmatpush1.msra.mxu0 %v506
        %2577 = vmatprep.subr.mxu0 0.0
        %2578 = vmatpush1.msra.mxu0 %v507
        %2579 = vmatprep.subr.mxu0 0.0
        %2580 = vmatpush1.msra.mxu0 %v508
        %2581 = vmatprep.subr.mxu0 0.0
        %2582 = vmatpush1.msra.mxu0 %v509
        %2583 = vmatprep.subr.mxu0 0.0
        %2584 = vmatpush1.msra.mxu0 %v510
        %2585 = vmatprep.subr.mxu0 0.0
        %2586 = vmatpush1.msra.mxu0 %v511
        %2587 = vmatprep.subr.mxu0 0.0
        %2588 = vmatpush1.msra.mxu0 %v512
        %2589 = vmatprep.subr.mxu0 0.0
        %2590 = vmatpush1.msra.mxu0 %v513
        %2591 = vmatprep.subr.mxu0 0.0
        %2592 = vmatpush1.msra.mxu0 %v514
        %2593 = vmatprep.subr.mxu0 0.0
        %2594 = vmatpush1.msra.mxu0 %v515
        %2595 = vmatprep.subr.mxu0 0.0
        %2596 = vmatpush1.msra.mxu0 %v516
        %2597 = vmatprep.subr.mxu0 0.0
        %2598 = vmatpush1.msra.mxu0 %v517
        %2599 = vmatprep.subr.mxu0 0.0
        %2600 = vmatpush1.msra.mxu0 %v518
        %2601 = vmatprep.subr.mxu0 0.0
        %2602 = vmatpush1.msra.mxu0 %v519
        %2603 = vmatprep.subr.mxu0 0.0
        %2604 = vmatpush1.msra.mxu0 0.0
        %2605 = vmatprep.subr.mxu0 0.0
        %2606 = vmatpush1.msra.mxu0 0.0
        %2607 = vmatprep.subr.mxu0 0.0
        %2608 = vmatpush1.msra.mxu0 0.0
        %2609 = vmatprep.subr.mxu0 0.0
        %2610 = vmatpush1.msra.mxu0 0.0
        %2611 = vmatprep.subr.mxu0 0.0
        %2612 = vmatpush1.msra.mxu0 0.0
        %2613 = vmatprep.subr.mxu0 0.0
        %2614 = vmatpush1.msra.mxu0 0.0
        %2615 = vmatprep.subr.mxu0 0.0
        %2616 = vmatpush1.msra.mxu0 0.0
        %2617 = vmatprep.subr.mxu0 0.0
        %2618 = vmatpush1.msra.mxu0 0.0
        %2619 = vmatprep.subr.mxu0 0.0
        %2620 = vmatpush1.msra.mxu0 0.0
        %2621 = vmatprep.subr.mxu0 0.0
        %2622 = vmatpush1.msra.mxu0 0.0
        %2623 = vmatprep.subr.mxu0 0.0
        %2624 = vmatpush1.msra.mxu0 0.0
        %2625 = vmatprep.subr.mxu0 0.0
        %2626 = vmatpush1.msra.mxu0 0.0
        %2627 = vmatprep.subr.mxu0 0.0
        %2628 = vmatpush1.msra.mxu0 0.0
        %2629 = vmatprep.subr.mxu0 0.0
        %2630 = vmatpush1.msra.mxu0 0.0
        %2631 = vmatprep.subr.mxu0 0.0
        %2632 = vmatpush1.msra.mxu0 0.0
        %2633 = vmatprep.subr.mxu0 0.0
        %2634 = vmatpush1.msra.mxu0 0.0
        %2635 = vmatprep.mubr.f32.mxu0 0.0
        %2636 = vmatmul.mubr.f32.gmra.mrb[0].mxu0 %v2567
        %v2637 = vpop.f32.mrb[0].mxu0
        %v2638 = vadd.f32 0.0, %v2637
        %v2639 = vpop.f32.mrb[0].mxu0
        %2640 = vmatprep.mubr.f32.mxu0 0.0
        %2641 = vmatmul.mubr.f32.gmra.mrb[0].mxu0 %v2568
        %v2642 = vpop.f32.mrb[0].mxu0
        %v2643 = vadd.f32 0.0, %v2642
        %v2644 = vpop.f32.mrb[0].mxu0
        %2645 = vmatprep.mubr.f32.mxu0 0.0
        %2646 = vmatmul.mubr.f32.gmra.mrb[0].mxu0 %v2569
        %v2647 = vpop.f32.mrb[0].mxu0
        %v2648 = vadd.f32 0.0, %v2647
        %v2649 = vpop.f32.mrb[0].mxu0
        %2650 = vmatprep.mubr.f32.mxu0 0.0
        %2651 = vmatmul.mubr.f32.gmra.mrb[0].mxu0 %v2570
        %v2652 = vpop.f32.mrb[0].mxu0
        %v2653 = vadd.f32 0.0, %v2652
        %v2654 = vpop.f32.mrb[0].mxu0
        %2655 = vdwg.mxu0
        %v2656 = vmul.f32 %v2567, %v2567
        %v2657 = vmul.f32 %v2568, %v2568
        %v2658 = vmul.f32 %v2569, %v2569
        %v2659 = vmul.f32 %v2570, %v2570
        %2660 = vmatprep.subr.mxu0 0.0
        %2661 = vmatpush1.msra.mxu0 %v504
        %2662 = vmatprep.subr.mxu0 0.0
        %2663 = vmatpush1.msra.mxu0 %v505
        %2664 = vmatprep.subr.mxu0 0.0
        %2665 = vmatpush1.msra.mxu0 %v506
        %2666 = vmatprep.subr.mxu0 0.0
        %2667 = vmatpush1.msra.mxu0 %v507
        %2668 = vmatprep.subr.mxu0 0.0
        %2669 = vmatpush1.msra.mxu0 %v508
        %2670 = vmatprep.subr.mxu0 0.0
        %2671 = vmatpush1.msra.mxu0 %v509
        %2672 = vmatprep.subr.mxu0 0.0
        %2673 = vmatpush1.msra.mxu0 %v510
        %2674 = vmatprep.subr.mxu0 0.0
        %2675 = vmatpush1.msra.mxu0 %v511
        %2676 = vmatprep.subr.mxu0 0.0
        %2677 = vmatpush1.msra.mxu0 %v512
        %2678 = vmatprep.subr.mxu0 0.0
        %2679 = vmatpush1.msra.mxu0 %v513
        %2680 = vmatprep.subr.mxu0 0.0
        %2681 = vmatpush1.msra.mxu0 %v514
        %2682 = vmatprep.subr.mxu0 0.0
        %2683 = vmatpush1.msra.mxu0 %v515
        %2684 = vmatprep.subr.mxu0 0.0
        %2685 = vmatpush1.msra.mxu0 %v516
        %2686 = vmatprep.subr.mxu0 0.0
        %2687 = vmatpush1.msra.mxu0 %v517
        %2688 = vmatprep.subr.mxu0 0.0
        %2689 = vmatpush1.msra.mxu0 %v518
        %2690 = vmatprep.subr.mxu0 0.0
        %2691 = vmatpush1.msra.mxu0 %v519
        %2692 = vmatprep.subr.mxu0 0.0
        %2693 = vmatpush1.msra.mxu0 0.0
        %2694 = vmatprep.subr.mxu0 0.0
        %2695 = vmatpush1.msra.mxu0 0.0
        %2696 = vmatprep.subr.mxu0 0.0
        %2697 = vmatpush1.msra.mxu0 0.0
        %2698 = vmatprep.subr.mxu0 0.0
        %2699 = vmatpush1.msra.mxu0 0.0
        %2700 = vmatprep.subr.mxu0 0.0
        %2701 = vmatpush1.msra.mxu0 0.0
        %2702 = vmatprep.subr.mxu0 0.0
        %2703 = vmatpush1.msra.mxu0 0.0
        %2704 = vmatprep.subr.mxu0 0.0
        %2705 = vmatpush1.msra.mxu0 0.0
        %2706 = vmatprep.subr.mxu0 0.0
        %2707 = vmatpush1.msra.mxu0 0.0
        %2708 = vmatprep.subr.mxu0 0.0
        %2709 = vmatpush1.msra.mxu0 0.0
        %2710 = vmatprep.subr.mxu0 0.0
        %2711 = vmatpush1.msra.mxu0 0.0
        %2712 = vmatprep.subr.mxu0 0.0
        %2713 = vmatpush1.msra.mxu0 0.0
        %2714 = vmatprep.subr.mxu0 0.0
        %2715 = vmatpush1.msra.mxu0 0.0
        %2716 = vmatprep.subr.mxu0 0.0
        %2717 = vmatpush1.msra.mxu0 0.0
        %2718 = vmatprep.subr.mxu0 0.0
        %2719 = vmatpush1.msra.mxu0 0.0
        %2720 = vmatprep.subr.mxu0 0.0
        %2721 = vmatpush1.msra.mxu0 0.0
        %2722 = vmatprep.subr.mxu0 0.0
        %2723 = vmatpush1.msra.mxu0 0.0
        %2724 = vmatprep.mubr.f32.mxu0 0.0
        %2725 = vmatmul.mubr.f32.gmra.mrb[0].mxu0 %v2656
        %v2726 = vpop.f32.mrb[0].mxu0
        %v2727 = vadd.f32 0.0, %v2726
        %v2728 = vpop.f32.mrb[0].mxu0
        %2729 = vmatprep.mubr.f32.mxu0 0.0
        %2730 = vmatmul.mubr.f32.gmra.mrb[0].mxu0 %v2657
        %v2731 = vpop.f32.mrb[0].mxu0
        %v2732 = vadd.f32 0.0, %v2731
        %v2733 = vpop.f32.mrb[0].mxu0
        %2734 = vmatprep.mubr.f32.mxu0 0.0
        %2735 = vmatmul.mubr.f32.gmra.mrb[0].mxu0 %v2658
        %v2736 = vpop.f32.mrb[0].mxu0
        %v2737 = vadd.f32 0.0, %v2736
        %v2738 = vpop.f32.mrb[0].mxu0
        %2739 = vmatprep.mubr.f32.mxu0 0.0
        %2740 = vmatmul.mubr.f32.gmra.mrb[0].mxu0 %v2659
        %v2741 = vpop.f32.mrb[0].mxu0
        %v2742 = vadd.f32 0.0, %v2741
        %v2743 = vpop.f32.mrb[0].mxu0
        %2744 = vdwg.mxu0
        %v2745 = vsel %vm665, %v2638, 0.0
        %v2746 = vsel %vm665, %v2643, 0.0
        %v2747 = vadd.f32 %v2745, %v2746
        %v2748 = vsel %vm665, %v2648, 0.0
        %v2749 = vadd.f32 %v2747, %v2748
        %v2750 = vsel %vm665, %v2653, 0.0
        %v2751 = vadd.f32 %v2749, %v2750
        %v2752 = vrot.slane %v2751, 4
        %v2753 = vadd.f32 %v2751, %v2752
        %v2754 = vrot.slane %v2753, 2
        %v2755 = vadd.f32 %v2753, %v2754
        %v2756 = vrot.slane %v2755, 1
        %v2757 = vadd.f32 %v2755, %v2756
        %v2758 = vsel %vm665, %v2727, 0.0
        %v2759 = vsel %vm665, %v2732, 0.0
        %v2760 = vadd.f32 %v2758, %v2759
        %v2761 = vsel %vm665, %v2737, 0.0
        %v2762 = vadd.f32 %v2760, %v2761
        %v2763 = vsel %vm665, %v2742, 0.0
        %v2764 = vadd.f32 %v2762, %v2763
        %v2765 = vrot.slane %v2764, 4
        %v2766 = vadd.f32 %v2764, %v2765
        %v2767 = vrot.slane %v2766, 2
        %v2768 = vadd.f32 %v2766, %v2767
        %v2769 = vrot.slane %v2768, 1
        %v2770 = vadd.f32 %v2768, %v2769
        %v2771 = vmul.f32 %v2757, 0.0009765625
        %v2772 = vmul.f32 %v2770, 0.0009765625
        %v2773 = vmul.f32 %v2771, %v2771
        %v2774 = vsub.f32 %v2772, %v2773
        %v2775 = vmax.f32 %v2774, 0.0
        %v2776 = vadd.f32 %v2775, 1e-08
        %v2777 = vrsqrt.pop %v2776
        %v2778 = vsub.f32 0.0, %v2771
        %v2779 = vmul.f32 %v2778, %v2777
        %v2780 = vsel %vm689, %v2777, %v2779
        %v2782 = vsel %vm665, %v2780, 0
        %2784 = vmatprep.subr.mxu0 0.0
        %2785 = vmatpush1.msra.mxu0 %v696
        %2786 = vmatprep.subr.mxu0 0.0
        %2787 = vmatpush1.msra.mxu0 0.0
        %2788 = vmatprep.subr.mxu0 0.0
        %2789 = vmatpush1.msra.mxu0 0.0
        %2790 = vmatprep.subr.mxu0 0.0
        %2791 = vmatpush1.msra.mxu0 0.0
        %2792 = vmatprep.subr.mxu0 0.0
        %2793 = vmatpush1.msra.mxu0 0.0
        %2794 = vmatprep.subr.mxu0 0.0
        %2795 = vmatpush1.msra.mxu0 0.0
        %2796 = vmatprep.subr.mxu0 0.0
        %2797 = vmatpush1.msra.mxu0 0.0
        %2798 = vmatprep.subr.mxu0 0.0
        %2799 = vmatpush1.msra.mxu0 0.0
        %2800 = vmatprep.subr.mxu0 0.0
        %2801 = vmatpush1.msra.mxu0 0.0
        %2802 = vmatprep.subr.mxu0 0.0
        %2803 = vmatpush1.msra.mxu0 0.0
        %2804 = vmatprep.subr.mxu0 0.0
        %2805 = vmatpush1.msra.mxu0 0.0
        %2806 = vmatprep.subr.mxu0 0.0
        %2807 = vmatpush1.msra.mxu0 0.0
        %2808 = vmatprep.subr.mxu0 0.0
        %2809 = vmatpush1.msra.mxu0 0.0
        %2810 = vmatprep.subr.mxu0 0.0
        %2811 = vmatpush1.msra.mxu0 0.0
        %2812 = vmatprep.subr.mxu0 0.0
        %2813 = vmatpush1.msra.mxu0 0.0
        %2814 = vmatprep.subr.mxu0 0.0
        %2815 = vmatpush1.msra.mxu0 0.0
        %2816 = vmatprep.subr.mxu0 0.0
        %2817 = vmatpush1.msra.mxu0 0.0
        %2818 = vmatprep.subr.mxu0 0.0
        %2819 = vmatpush1.msra.mxu0 0.0
        %2820 = vmatprep.subr.mxu0 0.0
        %2821 = vmatpush1.msra.mxu0 0.0
        %2822 = vmatprep.subr.mxu0 0.0
        %2823 = vmatpush1.msra.mxu0 0.0
        %2824 = vmatprep.subr.mxu0 0.0
        %2825 = vmatpush1.msra.mxu0 0.0
        %2826 = vmatprep.subr.mxu0 0.0
        %2827 = vmatpush1.msra.mxu0 0.0
        %2828 = vmatprep.subr.mxu0 0.0
        %2829 = vmatpush1.msra.mxu0 0.0
        %2830 = vmatprep.subr.mxu0 0.0
        %2831 = vmatpush1.msra.mxu0 0.0
        %2832 = vmatprep.subr.mxu0 0.0
        %2833 = vmatpush1.msra.mxu0 0.0
        %2834 = vmatprep.subr.mxu0 0.0
        %2835 = vmatpush1.msra.mxu0 0.0
        %2836 = vmatprep.subr.mxu0 0.0
        %2837 = vmatpush1.msra.mxu0 0.0
        %2838 = vmatprep.subr.mxu0 0.0
        %2839 = vmatpush1.msra.mxu0 0.0
        %2840 = vmatprep.subr.mxu0 0.0
        %2841 = vmatpush1.msra.mxu0 0.0
        %2842 = vmatprep.subr.mxu0 0.0
        %2843 = vmatpush1.msra.mxu0 0.0
        %2844 = vmatprep.subr.mxu0 0.0
        %2845 = vmatpush1.msra.mxu0 0.0
        %2846 = vmatprep.subr.mxu0 0.0
        %2847 = vmatpush1.msra.mxu0 0.0
        %2848 = vmatprep.mubr.f32.mxu0 0.0
        %2849 = vmatmul.mubr.f32.gmra.mrb[0].mxu0 %v2782
        %v2850 = vpop.f32.mrb[0].mxu0
        %v2851 = vadd.f32 0.0, %v2850
        %v2852 = vpop.f32.mrb[0].mxu0
        %2853 = vdwg.mxu0
        %v2854 = vlaneseq
        %v2855 = vshrl.u32 %v2854, 7
        %v2856 = vsub.s32 0, %v2855
        %v2857 = vrot.slane %v2851, %v2856
        %v2858 = vmul.f32 %v2567, %v2857
        %v2859 = vmul.f32 %v2568, %v2857
        %v2860 = vmul.f32 %v2569, %v2857
        %v2861 = vmul.f32 %v2570, %v2857
        %v2862 = vlaneseq
        %v2863 = vshrl.u32 %v2862, 7
        %v2864 = vsub.s32 1, %v2863
        %v2865 = vrot.slane %v2851, %v2864
        %v2866 = vadd.f32 %v2858, %v2865
        %v2867 = vadd.f32 %v2859, %v2865
        %v2868 = vadd.f32 %v2860, %v2865
        %v2869 = vadd.f32 %v2861, %v2865
        %2870 = vset.pattern.permute.xlu0 4
        %2871 = vperm.xlu0 %2870, %v1946
        %v2872 = vpop.permute.xlu0 %2871
        %2874 = vset.pattern.permute.xlu0 4
        %2875 = vperm.xlu0 %2874, %v1947
        %v2876 = vpop.permute.xlu0 %2875
        %2878 = vset.pattern.permute.xlu0 4
        %2879 = vperm.xlu0 %2878, %v1948
        %v2880 = vpop.permute.xlu0 %2879
        %2882 = vset.pattern.permute.xlu0 4
        %2883 = vperm.xlu0 %2882, %v1949
        %v2884 = vpop.permute.xlu0 %2883
        %v2886 = vmul.f32 %v2872, %v2866
        %v2887 = vmul.f32 %v2876, %v2867
        %v2888 = vmul.f32 %v2880, %v2868
        %v2889 = vmul.f32 %v2884, %v2869
        %2890 = vset.pattern.permute.xlu0 5
        %2891 = vperm.xlu0 %2890, %v1946
        %v2892 = vpop.permute.xlu0 %2891
        %2894 = vset.pattern.permute.xlu0 5
        %2895 = vperm.xlu0 %2894, %v1947
        %v2896 = vpop.permute.xlu0 %2895
        %2898 = vset.pattern.permute.xlu0 5
        %2899 = vperm.xlu0 %2898, %v1948
        %v2900 = vpop.permute.xlu0 %2899
        %2902 = vset.pattern.permute.xlu0 5
        %2903 = vperm.xlu0 %2902, %v1949
        %v2904 = vpop.permute.xlu0 %2903
        %v2906 = vadd.f32 %v2886, %v2892
        %v2907 = vadd.f32 %v2887, %v2896
        %v2908 = vadd.f32 %v2888, %v2900
        %v2909 = vadd.f32 %v2889, %v2904
        %v2911 = vsel %vm1847, %v1961, 0
        %v2914 = vsel %vm1847, %v1962, 0
        %2916 = vmatprep.subr.mxu0 0.0
        %2917 = vmatpush1.msra.mxu0 %v2906
        %2918 = vmatprep.subr.mxu0 0.0
        %2919 = vmatpush1.msra.mxu0 %v2907
        %2920 = vmatprep.subr.mxu0 0.0
        %2921 = vmatpush1.msra.mxu0 %v2908
        %2922 = vmatprep.subr.mxu0 0.0
        %2923 = vmatpush1.msra.mxu0 %v2909
        %2924 = vmatprep.subr.mxu0 0.0
        %2925 = vmatpush1.msra.mxu0 0.0
        %2926 = vmatprep.subr.mxu0 0.0
        %2927 = vmatpush1.msra.mxu0 0.0
        %2928 = vmatprep.subr.mxu0 0.0
        %2929 = vmatpush1.msra.mxu0 0.0
        %2930 = vmatprep.subr.mxu0 0.0
        %2931 = vmatpush1.msra.mxu0 0.0
        %2932 = vmatprep.subr.mxu0 0.0
        %2933 = vmatpush1.msra.mxu0 0.0
        %2934 = vmatprep.subr.mxu0 0.0
        %2935 = vmatpush1.msra.mxu0 0.0
        %2936 = vmatprep.subr.mxu0 0.0
        %2937 = vmatpush1.msra.mxu0 0.0
        %2938 = vmatprep.subr.mxu0 0.0
        %2939 = vmatpush1.msra.mxu0 0.0
        %2940 = vmatprep.subr.mxu0 0.0
        %2941 = vmatpush1.msra.mxu0 0.0
        %2942 = vmatprep.subr.mxu0 0.0
        %2943 = vmatpush1.msra.mxu0 0.0
        %2944 = vmatprep.subr.mxu0 0.0
        %2945 = vmatpush1.msra.mxu0 0.0
        %2946 = vmatprep.subr.mxu0 0.0
        %2947 = vmatpush1.msra.mxu0 0.0
        %2948 = vmatprep.subr.mxu0 0.0
        %2949 = vmatpush1.msra.mxu0 0.0
        %2950 = vmatprep.subr.mxu0 0.0
        %2951 = vmatpush1.msra.mxu0 0.0
        %2952 = vmatprep.subr.mxu0 0.0
        %2953 = vmatpush1.msra.mxu0 0.0
        %2954 = vmatprep.subr.mxu0 0.0
        %2955 = vmatpush1.msra.mxu0 0.0
        %2956 = vmatprep.subr.mxu0 0.0
        %2957 = vmatpush1.msra.mxu0 0.0
        %2958 = vmatprep.subr.mxu0 0.0
        %2959 = vmatpush1.msra.mxu0 0.0
        %2960 = vmatprep.subr.mxu0 0.0
        %2961 = vmatpush1.msra.mxu0 0.0
        %2962 = vmatprep.subr.mxu0 0.0
        %2963 = vmatpush1.msra.mxu0 0.0
        %2964 = vmatprep.subr.mxu0 0.0
        %2965 = vmatpush1.msra.mxu0 0.0
        %2966 = vmatprep.subr.mxu0 0.0
        %2967 = vmatpush1.msra.mxu0 0.0
        %2968 = vmatprep.subr.mxu0 0.0
        %2969 = vmatpush1.msra.mxu0 0.0
        %2970 = vmatprep.subr.mxu0 0.0
        %2971 = vmatpush1.msra.mxu0 0.0
        %2972 = vmatprep.subr.mxu0 0.0
        %2973 = vmatpush1.msra.mxu0 0.0
        %2974 = vmatprep.subr.mxu0 0.0
        %2975 = vmatpush1.msra.mxu0 0.0
        %2976 = vmatprep.subr.mxu0 0.0
        %2977 = vmatpush1.msra.mxu0 0.0
        %2978 = vmatprep.subr.mxu0 0.0
        %2979 = vmatpush1.msra.mxu0 0.0
        %2980 = vmatprep.mubr.f32.mxu0 0.0
        %2981 = vmatmul.mubr.f32.gmra.mrb[0].mxu0 %v2911
        %v2982 = vpop.f32.mrb[0].mxu0
        %v2983 = vadd.f32 0.0, %v2982
        %v2984 = vpop.f32.mrb[0].mxu0
        %2985 = vmatprep.mubr.f32.mxu0 0.0
        %2986 = vmatmul.mubr.f32.gmra.mrb[0].mxu0 %v2914
        %v2987 = vpop.f32.mrb[0].mxu0
        %v2988 = vadd.f32 0.0, %v2987
        %v2989 = vpop.f32.mrb[0].mxu0
        %2990 = vdwg.mxu0
        %v2991 = vadd.f32 %v1943, %v2983
        %v2992 = vadd.f32 %v1944, %v2988
        %s2993 = scalar_lea.vmem %s12, 16
        %v2994 = vld [vmem:[%s2993] sm:$0xff]
        %v2995 = vld [vmem:[%s2993 + $0x8] sm:$0xff]
        %2997 = vset.pattern.permute.xlu0 0
        %2998 = vperm.xlu0 %2997, %v2994
        %v2999 = vpop.permute.xlu0 %2998
        %3002 = vset.pattern.permute.xlu0 0
        %3003 = vperm.xlu0 %3002, %v2995
        %v3004 = vpop.permute.xlu0 %3003
        %v3006 = vadd.f32 %v2991, %v2999
        %v3007 = vadd.f32 %v2992, %v3004
        %s3008 = scalar_lea.vmem %s9, 64
        %v3009 = vld [vmem:[%s3008] sm:$0xff]
        %v3010 = vld [vmem:[%s3008 + $0x8] sm:$0xff]
        %v3011 = vld [vmem:[%s3008 + $0x10] sm:$0xff]
        %v3012 = vld [vmem:[%s3008 + $0x18] sm:$0xff]
        %s3013 = scalar_lea.vmem %s10, 64
        %v3014 = vld [vmem:[%s3013] sm:$0xff]
        %v3015 = vld [vmem:[%s3013 + $0x8] sm:$0xff]
        %v3016 = vld [vmem:[%s3013 + $0x10] sm:$0xff]
        %v3017 = vld [vmem:[%s3013 + $0x18] sm:$0xff]
        %s3018 = scalar_lea.vmem %s8, 64
        %v3019 = vld [vmem:[%s3018] sm:$0xff]
        %v3020 = vld [vmem:[%s3018 + $0x8] sm:$0xff]
        %v3021 = vld [vmem:[%s3018 + $0x10] sm:$0xff]
        %v3022 = vld [vmem:[%s3018 + $0x18] sm:$0xff]
        %s3023 = scalar_lea.vmem %s11, 32
        %v3024 = vld [vmem:[%s3023] sm:$0xff]
        %v3025 = vld [vmem:[%s3023 + $0x8] sm:$0xff]
        %s3026 = sld [smem:[#allocation2 + $0x4]]
        %s3027 = sld [smem:[#allocation2 + $0x5]]
        %3029 = vset.pattern.permute.xlu0 0
        %3030 = vperm.xlu0 %3029, %v3009
        %v3031 = vpop.permute.xlu0 %3030
        %3034 = vset.pattern.permute.xlu0 0
        %3035 = vperm.xlu0 %3034, %v3010
        %v3036 = vpop.permute.xlu0 %3035
        %3039 = vset.pattern.permute.xlu0 0
        %3040 = vperm.xlu0 %3039, %v3011
        %v3041 = vpop.permute.xlu0 %3040
        %3044 = vset.pattern.permute.xlu0 0
        %3045 = vperm.xlu0 %3044, %v3012
        %v3046 = vpop.permute.xlu0 %3045
        %v3049 = vsel %vm921, %v3019, 0
        %v3052 = vsel %vm921, %v3020, 0
        %v3055 = vsel %vm921, %v3021, 0
        %v3058 = vsel %vm921, %v3022, 0
        %3060 = vmatprep.subr.mxu0 0.0
        %3061 = vmatpush1.msra.mxu0 %v3006
        %3062 = vmatprep.subr.mxu0 0.0
        %3063 = vmatpush1.msra.mxu0 %v3007
        %3064 = vmatprep.subr.mxu0 0.0
        %3065 = vmatpush1.msra.mxu0 0.0
        %3066 = vmatprep.subr.mxu0 0.0
        %3067 = vmatpush1.msra.mxu0 0.0
        %3068 = vmatprep.subr.mxu0 0.0
        %3069 = vmatpush1.msra.mxu0 0.0
        %3070 = vmatprep.subr.mxu0 0.0
        %3071 = vmatpush1.msra.mxu0 0.0
        %3072 = vmatprep.subr.mxu0 0.0
        %3073 = vmatpush1.msra.mxu0 0.0
        %3074 = vmatprep.subr.mxu0 0.0
        %3075 = vmatpush1.msra.mxu0 0.0
        %3076 = vmatprep.subr.mxu0 0.0
        %3077 = vmatpush1.msra.mxu0 0.0
        %3078 = vmatprep.subr.mxu0 0.0
        %3079 = vmatpush1.msra.mxu0 0.0
        %3080 = vmatprep.subr.mxu0 0.0
        %3081 = vmatpush1.msra.mxu0 0.0
        %3082 = vmatprep.subr.mxu0 0.0
        %3083 = vmatpush1.msra.mxu0 0.0
        %3084 = vmatprep.subr.mxu0 0.0
        %3085 = vmatpush1.msra.mxu0 0.0
        %3086 = vmatprep.subr.mxu0 0.0
        %3087 = vmatpush1.msra.mxu0 0.0
        %3088 = vmatprep.subr.mxu0 0.0
        %3089 = vmatpush1.msra.mxu0 0.0
        %3090 = vmatprep.subr.mxu0 0.0
        %3091 = vmatpush1.msra.mxu0 0.0
        %3092 = vmatprep.subr.mxu0 0.0
        %3093 = vmatpush1.msra.mxu0 0.0
        %3094 = vmatprep.subr.mxu0 0.0
        %3095 = vmatpush1.msra.mxu0 0.0
        %3096 = vmatprep.subr.mxu0 0.0
        %3097 = vmatpush1.msra.mxu0 0.0
        %3098 = vmatprep.subr.mxu0 0.0
        %3099 = vmatpush1.msra.mxu0 0.0
        %3100 = vmatprep.subr.mxu0 0.0
        %3101 = vmatpush1.msra.mxu0 0.0
        %3102 = vmatprep.subr.mxu0 0.0
        %3103 = vmatpush1.msra.mxu0 0.0
        %3104 = vmatprep.subr.mxu0 0.0
        %3105 = vmatpush1.msra.mxu0 0.0
        %3106 = vmatprep.subr.mxu0 0.0
        %3107 = vmatpush1.msra.mxu0 0.0
        %3108 = vmatprep.subr.mxu0 0.0
        %3109 = vmatpush1.msra.mxu0 0.0
        %3110 = vmatprep.subr.mxu0 0.0
        %3111 = vmatpush1.msra.mxu0 0.0
        %3112 = vmatprep.subr.mxu0 0.0
        %3113 = vmatpush1.msra.mxu0 0.0
        %3114 = vmatprep.subr.mxu0 0.0
        %3115 = vmatpush1.msra.mxu0 0.0
        %3116 = vmatprep.subr.mxu0 0.0
        %3117 = vmatpush1.msra.mxu0 0.0
        %3118 = vmatprep.subr.mxu0 0.0
        %3119 = vmatpush1.msra.mxu0 0.0
        %3120 = vmatprep.subr.mxu0 0.0
        %3121 = vmatpush1.msra.mxu0 0.0
        %3122 = vmatprep.subr.mxu0 0.0
        %3123 = vmatpush1.msra.mxu0 0.0
        %3124 = vmatprep.mubr.f32.mxu0 0.0
        %3125 = vmatmul.mubr.f32.gmra.mrb[0].mxu0 %v3049
        %v3126 = vpop.f32.mrb[0].mxu0
        %v3127 = vadd.f32 %v3031, %v3126
        %v3128 = vpop.f32.mrb[0].mxu0
        %3129 = vmatprep.mubr.f32.mxu0 0.0
        %3130 = vmatmul.mubr.f32.gmra.mrb[0].mxu0 %v3052
        %v3131 = vpop.f32.mrb[0].mxu0
        %v3132 = vadd.f32 %v3036, %v3131
        %v3133 = vpop.f32.mrb[0].mxu0
        %3134 = vmatprep.mubr.f32.mxu0 0.0
        %3135 = vmatmul.mubr.f32.gmra.mrb[0].mxu0 %v3055
        %v3136 = vpop.f32.mrb[0].mxu0
        %v3137 = vadd.f32 %v3041, %v3136
        %v3138 = vpop.f32.mrb[0].mxu0
        %3139 = vmatprep.mubr.f32.mxu0 0.0
        %3140 = vmatmul.mubr.f32.gmra.mrb[0].mxu0 %v3058
        %v3141 = vpop.f32.mrb[0].mxu0
        %v3142 = vadd.f32 %v3046, %v3141
        %v3143 = vpop.f32.mrb[0].mxu0
        %3144 = vdwg.mxu0
        %vm3145 = vcmp.gt.f32.partialorder %v3127, 0.0
        %vm3146 = vcmp.gt.f32.partialorder %v3132, 0.0
        %vm3147 = vcmp.gt.f32.partialorder %v3137, 0.0
        %vm3148 = vcmp.gt.f32.partialorder %v3142, 0.0
        %v3149 = vstv %s3026
        %v3150 = vmul.f32 %v3149, %v3127
        %v3151 = vmul.f32 %v3149, %v3132
        %v3152 = vmul.f32 %v3149, %v3137
        %v3153 = vmul.f32 %v3149, %v3142
        %v3154 = vsel %vm3145, %v3127, %v3150
        %v3155 = vsel %vm3146, %v3132, %v3151
        %v3156 = vsel %vm3147, %v3137, %v3152
        %v3157 = vsel %vm3148, %v3142, %v3153
        %3158 = vmatprep.subr.mxu0 0.0
        %3159 = vmatpush1.msra.mxu0 %v504
        %3160 = vmatprep.subr.mxu0 0.0
        %3161 = vmatpush1.msra.mxu0 %v505
        %3162 = vmatprep.subr.mxu0 0.0
        %3163 = vmatpush1.msra.mxu0 %v506
        %3164 = vmatprep.subr.mxu0 0.0
        %3165 = vmatpush1.msra.mxu0 %v507
        %3166 = vmatprep.subr.mxu0 0.0
        %3167 = vmatpush1.msra.mxu0 %v508
        %3168 = vmatprep.subr.mxu0 0.0
        %3169 = vmatpush1.msra.mxu0 %v509
        %3170 = vmatprep.subr.mxu0 0.0
        %3171 = vmatpush1.msra.mxu0 %v510
        %3172 = vmatprep.subr.mxu0 0.0
        %3173 = vmatpush1.msra.mxu0 %v511
        %3174 = vmatprep.subr.mxu0 0.0
        %3175 = vmatpush1.msra.mxu0 %v512
        %3176 = vmatprep.subr.mxu0 0.0
        %3177 = vmatpush1.msra.mxu0 %v513
        %3178 = vmatprep.subr.mxu0 0.0
        %3179 = vmatpush1.msra.mxu0 %v514
        %3180 = vmatprep.subr.mxu0 0.0
        %3181 = vmatpush1.msra.mxu0 %v515
        %3182 = vmatprep.subr.mxu0 0.0
        %3183 = vmatpush1.msra.mxu0 %v516
        %3184 = vmatprep.subr.mxu0 0.0
        %3185 = vmatpush1.msra.mxu0 %v517
        %3186 = vmatprep.subr.mxu0 0.0
        %3187 = vmatpush1.msra.mxu0 %v518
        %3188 = vmatprep.subr.mxu0 0.0
        %3189 = vmatpush1.msra.mxu0 %v519
        %3190 = vmatprep.subr.mxu0 0.0
        %3191 = vmatpush1.msra.mxu0 0.0
        %3192 = vmatprep.subr.mxu0 0.0
        %3193 = vmatpush1.msra.mxu0 0.0
        %3194 = vmatprep.subr.mxu0 0.0
        %3195 = vmatpush1.msra.mxu0 0.0
        %3196 = vmatprep.subr.mxu0 0.0
        %3197 = vmatpush1.msra.mxu0 0.0
        %3198 = vmatprep.subr.mxu0 0.0
        %3199 = vmatpush1.msra.mxu0 0.0
        %3200 = vmatprep.subr.mxu0 0.0
        %3201 = vmatpush1.msra.mxu0 0.0
        %3202 = vmatprep.subr.mxu0 0.0
        %3203 = vmatpush1.msra.mxu0 0.0
        %3204 = vmatprep.subr.mxu0 0.0
        %3205 = vmatpush1.msra.mxu0 0.0
        %3206 = vmatprep.subr.mxu0 0.0
        %3207 = vmatpush1.msra.mxu0 0.0
        %3208 = vmatprep.subr.mxu0 0.0
        %3209 = vmatpush1.msra.mxu0 0.0
        %3210 = vmatprep.subr.mxu0 0.0
        %3211 = vmatpush1.msra.mxu0 0.0
        %3212 = vmatprep.subr.mxu0 0.0
        %3213 = vmatpush1.msra.mxu0 0.0
        %3214 = vmatprep.subr.mxu0 0.0
        %3215 = vmatpush1.msra.mxu0 0.0
        %3216 = vmatprep.subr.mxu0 0.0
        %3217 = vmatpush1.msra.mxu0 0.0
        %3218 = vmatprep.subr.mxu0 0.0
        %3219 = vmatpush1.msra.mxu0 0.0
        %3220 = vmatprep.subr.mxu0 0.0
        %3221 = vmatpush1.msra.mxu0 0.0
        %3222 = vmatprep.mubr.f32.mxu0 0.0
        %3223 = vmatmul.mubr.f32.gmra.mrb[0].mxu0 %v3154
        %v3224 = vpop.f32.mrb[0].mxu0
        %v3225 = vadd.f32 0.0, %v3224
        %v3226 = vpop.f32.mrb[0].mxu0
        %3227 = vmatprep.mubr.f32.mxu0 0.0
        %3228 = vmatmul.mubr.f32.gmra.mrb[0].mxu0 %v3155
        %v3229 = vpop.f32.mrb[0].mxu0
        %v3230 = vadd.f32 0.0, %v3229
        %v3231 = vpop.f32.mrb[0].mxu0
        %3232 = vmatprep.mubr.f32.mxu0 0.0
        %3233 = vmatmul.mubr.f32.gmra.mrb[0].mxu0 %v3156
        %v3234 = vpop.f32.mrb[0].mxu0
        %v3235 = vadd.f32 0.0, %v3234
        %v3236 = vpop.f32.mrb[0].mxu0
        %3237 = vmatprep.mubr.f32.mxu0 0.0
        %3238 = vmatmul.mubr.f32.gmra.mrb[0].mxu0 %v3157
        %v3239 = vpop.f32.mrb[0].mxu0
        %v3240 = vadd.f32 0.0, %v3239
        %v3241 = vpop.f32.mrb[0].mxu0
        %3242 = vdwg.mxu0
        %v3243 = vmul.f32 %v3154, %v3154
        %v3244 = vmul.f32 %v3155, %v3155
        %v3245 = vmul.f32 %v3156, %v3156
        %v3246 = vmul.f32 %v3157, %v3157
        %3247 = vmatprep.subr.mxu0 0.0
        %3248 = vmatpush1.msra.mxu0 %v504
        %3249 = vmatprep.subr.mxu0 0.0
        %3250 = vmatpush1.msra.mxu0 %v505
        %3251 = vmatprep.subr.mxu0 0.0
        %3252 = vmatpush1.msra.mxu0 %v506
        %3253 = vmatprep.subr.mxu0 0.0
        %3254 = vmatpush1.msra.mxu0 %v507
        %3255 = vmatprep.subr.mxu0 0.0
        %3256 = vmatpush1.msra.mxu0 %v508
        %3257 = vmatprep.subr.mxu0 0.0
        %3258 = vmatpush1.msra.mxu0 %v509
        %3259 = vmatprep.subr.mxu0 0.0
        %3260 = vmatpush1.msra.mxu0 %v510
        %3261 = vmatprep.subr.mxu0 0.0
        %3262 = vmatpush1.msra.mxu0 %v511
        %3263 = vmatprep.subr.mxu0 0.0
        %3264 = vmatpush1.msra.mxu0 %v512
        %3265 = vmatprep.subr.mxu0 0.0
        %3266 = vmatpush1.msra.mxu0 %v513
        %3267 = vmatprep.subr.mxu0 0.0
        %3268 = vmatpush1.msra.mxu0 %v514
        %3269 = vmatprep.subr.mxu0 0.0
        %3270 = vmatpush1.msra.mxu0 %v515
        %3271 = vmatprep.subr.mxu0 0.0
        %3272 = vmatpush1.msra.mxu0 %v516
        %3273 = vmatprep.subr.mxu0 0.0
        %3274 = vmatpush1.msra.mxu0 %v517
        %3275 = vmatprep.subr.mxu0 0.0
        %3276 = vmatpush1.msra.mxu0 %v518
        %3277 = vmatprep.subr.mxu0 0.0
        %3278 = vmatpush1.msra.mxu0 %v519
        %3279 = vmatprep.subr.mxu0 0.0
        %3280 = vmatpush1.msra.mxu0 0.0
        %3281 = vmatprep.subr.mxu0 0.0
        %3282 = vmatpush1.msra.mxu0 0.0
        %3283 = vmatprep.subr.mxu0 0.0
        %3284 = vmatpush1.msra.mxu0 0.0
        %3285 = vmatprep.subr.mxu0 0.0
        %3286 = vmatpush1.msra.mxu0 0.0
        %3287 = vmatprep.subr.mxu0 0.0
        %3288 = vmatpush1.msra.mxu0 0.0
        %3289 = vmatprep.subr.mxu0 0.0
        %3290 = vmatpush1.msra.mxu0 0.0
        %3291 = vmatprep.subr.mxu0 0.0
        %3292 = vmatpush1.msra.mxu0 0.0
        %3293 = vmatprep.subr.mxu0 0.0
        %3294 = vmatpush1.msra.mxu0 0.0
        %3295 = vmatprep.subr.mxu0 0.0
        %3296 = vmatpush1.msra.mxu0 0.0
        %3297 = vmatprep.subr.mxu0 0.0
        %3298 = vmatpush1.msra.mxu0 0.0
        %3299 = vmatprep.subr.mxu0 0.0
        %3300 = vmatpush1.msra.mxu0 0.0
        %3301 = vmatprep.subr.mxu0 0.0
        %3302 = vmatpush1.msra.mxu0 0.0
        %3303 = vmatprep.subr.mxu0 0.0
        %3304 = vmatpush1.msra.mxu0 0.0
        %3305 = vmatprep.subr.mxu0 0.0
        %3306 = vmatpush1.msra.mxu0 0.0
        %3307 = vmatprep.subr.mxu0 0.0
        %3308 = vmatpush1.msra.mxu0 0.0
        %3309 = vmatprep.subr.mxu0 0.0
        %3310 = vmatpush1.msra.mxu0 0.0
        %3311 = vmatprep.mubr.f32.mxu0 0.0
        %3312 = vmatmul.mubr.f32.gmra.mrb[0].mxu0 %v3243
        %v3313 = vpop.f32.mrb[0].mxu0
        %v3314 = vadd.f32 0.0, %v3313
        %v3315 = vpop.f32.mrb[0].mxu0
        %3316 = vmatprep.mubr.f32.mxu0 0.0
        %3317 = vmatmul.mubr.f32.gmra.mrb[0].mxu0 %v3244
        %v3318 = vpop.f32.mrb[0].mxu0
        %v3319 = vadd.f32 0.0, %v3318
        %v3320 = vpop.f32.mrb[0].mxu0
        %3321 = vmatprep.mubr.f32.mxu0 0.0
        %3322 = vmatmul.mubr.f32.gmra.mrb[0].mxu0 %v3245
        %v3323 = vpop.f32.mrb[0].mxu0
        %v3324 = vadd.f32 0.0, %v3323
        %v3325 = vpop.f32.mrb[0].mxu0
        %3326 = vmatprep.mubr.f32.mxu0 0.0
        %3327 = vmatmul.mubr.f32.gmra.mrb[0].mxu0 %v3246
        %v3328 = vpop.f32.mrb[0].mxu0
        %v3329 = vadd.f32 0.0, %v3328
        %v3330 = vpop.f32.mrb[0].mxu0
        %3331 = vdwg.mxu0
        %v3332 = vsel %vm665, %v3225, 0.0
        %v3333 = vsel %vm665, %v3230, 0.0
        %v3334 = vadd.f32 %v3332, %v3333
        %v3335 = vsel %vm665, %v3235, 0.0
        %v3336 = vadd.f32 %v3334, %v3335
        %v3337 = vsel %vm665, %v3240, 0.0
        %v3338 = vadd.f32 %v3336, %v3337
        %v3339 = vrot.slane %v3338, 4
        %v3340 = vadd.f32 %v3338, %v3339
        %v3341 = vrot.slane %v3340, 2
        %v3342 = vadd.f32 %v3340, %v3341
        %v3343 = vrot.slane %v3342, 1
        %v3344 = vadd.f32 %v3342, %v3343
        %v3345 = vsel %vm665, %v3314, 0.0
        %v3346 = vsel %vm665, %v3319, 0.0
        %v3347 = vadd.f32 %v3345, %v3346
        %v3348 = vsel %vm665, %v3324, 0.0
        %v3349 = vadd.f32 %v3347, %v3348
        %v3350 = vsel %vm665, %v3329, 0.0
        %v3351 = vadd.f32 %v3349, %v3350
        %v3352 = vrot.slane %v3351, 4
        %v3353 = vadd.f32 %v3351, %v3352
        %v3354 = vrot.slane %v3353, 2
        %v3355 = vadd.f32 %v3353, %v3354
        %v3356 = vrot.slane %v3355, 1
        %v3357 = vadd.f32 %v3355, %v3356
        %v3358 = vmul.f32 %v3344, 0.0009765625
        %v3359 = vmul.f32 %v3357, 0.0009765625
        %v3360 = vmul.f32 %v3358, %v3358
        %v3361 = vsub.f32 %v3359, %v3360
        %v3362 = vmax.f32 %v3361, 0.0
        %v3363 = vadd.f32 %v3362, 1e-08
        %v3364 = vrsqrt.pop %v3363
        %v3365 = vsub.f32 0.0, %v3358
        %v3366 = vmul.f32 %v3365, %v3364
        %v3367 = vsel %vm689, %v3364, %v3366
        %v3369 = vsel %vm665, %v3367, 0
        %3371 = vmatprep.subr.mxu0 0.0
        %3372 = vmatpush1.msra.mxu0 %v696
        %3373 = vmatprep.subr.mxu0 0.0
        %3374 = vmatpush1.msra.mxu0 0.0
        %3375 = vmatprep.subr.mxu0 0.0
        %3376 = vmatpush1.msra.mxu0 0.0
        %3377 = vmatprep.subr.mxu0 0.0
        %3378 = vmatpush1.msra.mxu0 0.0
        %3379 = vmatprep.subr.mxu0 0.0
        %3380 = vmatpush1.msra.mxu0 0.0
        %3381 = vmatprep.subr.mxu0 0.0
        %3382 = vmatpush1.msra.mxu0 0.0
        %3383 = vmatprep.subr.mxu0 0.0
        %3384 = vmatpush1.msra.mxu0 0.0
        %3385 = vmatprep.subr.mxu0 0.0
        %3386 = vmatpush1.msra.mxu0 0.0
        %3387 = vmatprep.subr.mxu0 0.0
        %3388 = vmatpush1.msra.mxu0 0.0
        %3389 = vmatprep.subr.mxu0 0.0
        %3390 = vmatpush1.msra.mxu0 0.0
        %3391 = vmatprep.subr.mxu0 0.0
        %3392 = vmatpush1.msra.mxu0 0.0
        %3393 = vmatprep.subr.mxu0 0.0
        %3394 = vmatpush1.msra.mxu0 0.0
        %3395 = vmatprep.subr.mxu0 0.0
        %3396 = vmatpush1.msra.mxu0 0.0
        %3397 = vmatprep.subr.mxu0 0.0
        %3398 = vmatpush1.msra.mxu0 0.0
        %3399 = vmatprep.subr.mxu0 0.0
        %3400 = vmatpush1.msra.mxu0 0.0
        %3401 = vmatprep.subr.mxu0 0.0
        %3402 = vmatpush1.msra.mxu0 0.0
        %3403 = vmatprep.subr.mxu0 0.0
        %3404 = vmatpush1.msra.mxu0 0.0
        %3405 = vmatprep.subr.mxu0 0.0
        %3406 = vmatpush1.msra.mxu0 0.0
        %3407 = vmatprep.subr.mxu0 0.0
        %3408 = vmatpush1.msra.mxu0 0.0
        %3409 = vmatprep.subr.mxu0 0.0
        %3410 = vmatpush1.msra.mxu0 0.0
        %3411 = vmatprep.subr.mxu0 0.0
        %3412 = vmatpush1.msra.mxu0 0.0
        %3413 = vmatprep.subr.mxu0 0.0
        %3414 = vmatpush1.msra.mxu0 0.0
        %3415 = vmatprep.subr.mxu0 0.0
        %3416 = vmatpush1.msra.mxu0 0.0
        %3417 = vmatprep.subr.mxu0 0.0
        %3418 = vmatpush1.msra.mxu0 0.0
        %3419 = vmatprep.subr.mxu0 0.0
        %3420 = vmatpush1.msra.mxu0 0.0
        %3421 = vmatprep.subr.mxu0 0.0
        %3422 = vmatpush1.msra.mxu0 0.0
        %3423 = vmatprep.subr.mxu0 0.0
        %3424 = vmatpush1.msra.mxu0 0.0
        %3425 = vmatprep.subr.mxu0 0.0
        %3426 = vmatpush1.msra.mxu0 0.0
        %3427 = vmatprep.subr.mxu0 0.0
        %3428 = vmatpush1.msra.mxu0 0.0
        %3429 = vmatprep.subr.mxu0 0.0
        %3430 = vmatpush1.msra.mxu0 0.0
        %3431 = vmatprep.subr.mxu0 0.0
        %3432 = vmatpush1.msra.mxu0 0.0
        %3433 = vmatprep.subr.mxu0 0.0
        %3434 = vmatpush1.msra.mxu0 0.0
        %3435 = vmatprep.mubr.f32.mxu0 0.0
        %3436 = vmatmul.mubr.f32.gmra.mrb[0].mxu0 %v3369
        %v3437 = vpop.f32.mrb[0].mxu0
        %v3438 = vadd.f32 0.0, %v3437
        %v3439 = vpop.f32.mrb[0].mxu0
        %3440 = vdwg.mxu0
        %v3441 = vlaneseq
        %v3442 = vshrl.u32 %v3441, 7
        %v3443 = vsub.s32 0, %v3442
        %v3444 = vrot.slane %v3438, %v3443
        %v3445 = vmul.f32 %v3154, %v3444
        %v3446 = vmul.f32 %v3155, %v3444
        %v3447 = vmul.f32 %v3156, %v3444
        %v3448 = vmul.f32 %v3157, %v3444
        %v3449 = vlaneseq
        %v3450 = vshrl.u32 %v3449, 7
        %v3451 = vsub.s32 1, %v3450
        %v3452 = vrot.slane %v3438, %v3451
        %v3453 = vadd.f32 %v3445, %v3452
        %v3454 = vadd.f32 %v3446, %v3452
        %v3455 = vadd.f32 %v3447, %v3452
        %v3456 = vadd.f32 %v3448, %v3452
        %3457 = vset.pattern.permute.xlu0 1
        %3458 = vperm.xlu0 %3457, %v3009
        %v3459 = vpop.permute.xlu0 %3458
        %3461 = vset.pattern.permute.xlu0 1
        %3462 = vperm.xlu0 %3461, %v3010
        %v3463 = vpop.permute.xlu0 %3462
        %3465 = vset.pattern.permute.xlu0 1
        %3466 = vperm.xlu0 %3465, %v3011
        %v3467 = vpop.permute.xlu0 %3466
        %3469 = vset.pattern.permute.xlu0 1
        %3470 = vperm.xlu0 %3469, %v3012
        %v3471 = vpop.permute.xlu0 %3470
        %v3473 = vmul.f32 %v3459, %v3453
        %v3474 = vmul.f32 %v3463, %v3454
        %v3475 = vmul.f32 %v3467, %v3455
        %v3476 = vmul.f32 %v3471, %v3456
        %3477 = vset.pattern.permute.xlu0 2
        %3478 = vperm.xlu0 %3477, %v3009
        %v3479 = vpop.permute.xlu0 %3478
        %3481 = vset.pattern.permute.xlu0 2
        %3482 = vperm.xlu0 %3481, %v3010
        %v3483 = vpop.permute.xlu0 %3482
        %3485 = vset.pattern.permute.xlu0 2
        %3486 = vperm.xlu0 %3485, %v3011
        %v3487 = vpop.permute.xlu0 %3486
        %3489 = vset.pattern.permute.xlu0 2
        %3490 = vperm.xlu0 %3489, %v3012
        %v3491 = vpop.permute.xlu0 %3490
        %v3493 = vadd.f32 %v3473, %v3479
        %v3494 = vadd.f32 %v3474, %v3483
        %v3495 = vadd.f32 %v3475, %v3487
        %v3496 = vadd.f32 %v3476, %v3491
        %3497 = vrot.lane.b32.xlu0 %v3493, 1
        %v3498 = vpop.permute.xlu0 %3497
        %3499 = vrot.lane.b32.xlu0 %v3494, 1
        %v3500 = vpop.permute.xlu0 %3499
        %3501 = vrot.lane.b32.xlu0 %v3495, 1
        %v3502 = vpop.permute.xlu0 %3501
        %3503 = vrot.lane.b32.xlu0 %v3496, 1
        %v3504 = vpop.permute.xlu0 %3503
        %v3505 = vmul.f32 %v3498, %v1382
        %v3506 = vmul.f32 %v3500, %v1382
        %v3507 = vmul.f32 %v3502, %v1382
        %v3508 = vmul.f32 %v3504, %v1382
        %3510 = vset.pattern.permute.xlu0 0
        %3511 = vperm.xlu0 %3510, %v3014
        %v3512 = vpop.permute.xlu0 %3511
        %3515 = vset.pattern.permute.xlu0 0
        %3516 = vperm.xlu0 %3515, %v3015
        %v3517 = vpop.permute.xlu0 %3516
        %3520 = vset.pattern.permute.xlu0 0
        %3521 = vperm.xlu0 %3520, %v3016
        %v3522 = vpop.permute.xlu0 %3521
        %3525 = vset.pattern.permute.xlu0 0
        %3526 = vperm.xlu0 %3525, %v3017
        %v3527 = vpop.permute.xlu0 %3526
        %v3529 = vmul.f32 %v3512, %v3505
        %v3530 = vmul.f32 %v3517, %v3506
        %v3531 = vmul.f32 %v3522, %v3507
        %v3532 = vmul.f32 %v3527, %v3508
        %3533 = vset.pattern.permute.xlu0 1
        %3534 = vperm.xlu0 %3533, %v3014
        %v3535 = vpop.permute.xlu0 %3534
        %3537 = vset.pattern.permute.xlu0 1
        %3538 = vperm.xlu0 %3537, %v3015
        %v3539 = vpop.permute.xlu0 %3538
        %3541 = vset.pattern.permute.xlu0 1
        %3542 = vperm.xlu0 %3541, %v3016
        %v3543 = vpop.permute.xlu0 %3542
        %3545 = vset.pattern.permute.xlu0 1
        %3546 = vperm.xlu0 %3545, %v3017
        %v3547 = vpop.permute.xlu0 %3546
        %v3549 = vmul.f32 %v3535, %v3493
        %v3550 = vmul.f32 %v3539, %v3494
        %v3551 = vmul.f32 %v3543, %v3495
        %v3552 = vmul.f32 %v3547, %v3496
        %v3553 = vadd.f32 %v3529, %v3549
        %v3554 = vadd.f32 %v3530, %v3550
        %v3555 = vadd.f32 %v3531, %v3551
        %v3556 = vadd.f32 %v3532, %v3552
        %3557 = vrot.lane.b32.xlu0 %v3493, 127
        %v3558 = vpop.permute.xlu0 %3557
        %3559 = vrot.lane.b32.xlu0 %v3494, 127
        %v3560 = vpop.permute.xlu0 %3559
        %3561 = vrot.lane.b32.xlu0 %v3495, 127
        %v3562 = vpop.permute.xlu0 %3561
        %3563 = vrot.lane.b32.xlu0 %v3496, 127
        %v3564 = vpop.permute.xlu0 %3563
        %v3565 = vmul.f32 %v3558, %v1446
        %v3566 = vmul.f32 %v3560, %v1446
        %v3567 = vmul.f32 %v3562, %v1446
        %v3568 = vmul.f32 %v3564, %v1446
        %3569 = vset.pattern.permute.xlu0 2
        %3570 = vperm.xlu0 %3569, %v3014
        %v3571 = vpop.permute.xlu0 %3570
        %3573 = vset.pattern.permute.xlu0 2
        %3574 = vperm.xlu0 %3573, %v3015
        %v3575 = vpop.permute.xlu0 %3574
        %3577 = vset.pattern.permute.xlu0 2
        %3578 = vperm.xlu0 %3577, %v3016
        %v3579 = vpop.permute.xlu0 %3578
        %3581 = vset.pattern.permute.xlu0 2
        %3582 = vperm.xlu0 %3581, %v3017
        %v3583 = vpop.permute.xlu0 %3582
        %v3585 = vmul.f32 %v3571, %v3565
        %v3586 = vmul.f32 %v3575, %v3566
        %v3587 = vmul.f32 %v3579, %v3567
        %v3588 = vmul.f32 %v3583, %v3568
        %v3589 = vadd.f32 %v3553, %v3585
        %v3590 = vadd.f32 %v3554, %v3586
        %v3591 = vadd.f32 %v3555, %v3587
        %v3592 = vadd.f32 %v3556, %v3588
        %3593 = vset.pattern.permute.xlu0 3
        %3594 = vperm.xlu0 %3593, %v3009
        %v3595 = vpop.permute.xlu0 %3594
        %3597 = vset.pattern.permute.xlu0 3
        %3598 = vperm.xlu0 %3597, %v3010
        %v3599 = vpop.permute.xlu0 %3598
        %3601 = vset.pattern.permute.xlu0 3
        %3602 = vperm.xlu0 %3601, %v3011
        %v3603 = vpop.permute.xlu0 %3602
        %3605 = vset.pattern.permute.xlu0 3
        %3606 = vperm.xlu0 %3605, %v3012
        %v3607 = vpop.permute.xlu0 %3606
        %v3609 = vadd.f32 %v3589, %v3595
        %v3610 = vadd.f32 %v3590, %v3599
        %v3611 = vadd.f32 %v3591, %v3603
        %v3612 = vadd.f32 %v3592, %v3607
        %vm3613 = vcmp.gt.f32.partialorder %v3609, 0.0
        %vm3614 = vcmp.gt.f32.partialorder %v3610, 0.0
        %vm3615 = vcmp.gt.f32.partialorder %v3611, 0.0
        %vm3616 = vcmp.gt.f32.partialorder %v3612, 0.0
        %v3617 = vstv %s3027
        %v3618 = vmul.f32 %v3617, %v3609
        %v3619 = vmul.f32 %v3617, %v3610
        %v3620 = vmul.f32 %v3617, %v3611
        %v3621 = vmul.f32 %v3617, %v3612
        %v3622 = vsel %vm3613, %v3609, %v3618
        %v3623 = vsel %vm3614, %v3610, %v3619
        %v3624 = vsel %vm3615, %v3611, %v3620
        %v3625 = vsel %vm3616, %v3612, %v3621
        %3626 = vmatprep.subr.mxu0 0.0
        %3627 = vmatpush1.msra.mxu0 %v504
        %3628 = vmatprep.subr.mxu0 0.0
        %3629 = vmatpush1.msra.mxu0 %v505
        %3630 = vmatprep.subr.mxu0 0.0
        %3631 = vmatpush1.msra.mxu0 %v506
        %3632 = vmatprep.subr.mxu0 0.0
        %3633 = vmatpush1.msra.mxu0 %v507
        %3634 = vmatprep.subr.mxu0 0.0
        %3635 = vmatpush1.msra.mxu0 %v508
        %3636 = vmatprep.subr.mxu0 0.0
        %3637 = vmatpush1.msra.mxu0 %v509
        %3638 = vmatprep.subr.mxu0 0.0
        %3639 = vmatpush1.msra.mxu0 %v510
        %3640 = vmatprep.subr.mxu0 0.0
        %3641 = vmatpush1.msra.mxu0 %v511
        %3642 = vmatprep.subr.mxu0 0.0
        %3643 = vmatpush1.msra.mxu0 %v512
        %3644 = vmatprep.subr.mxu0 0.0
        %3645 = vmatpush1.msra.mxu0 %v513
        %3646 = vmatprep.subr.mxu0 0.0
        %3647 = vmatpush1.msra.mxu0 %v514
        %3648 = vmatprep.subr.mxu0 0.0
        %3649 = vmatpush1.msra.mxu0 %v515
        %3650 = vmatprep.subr.mxu0 0.0
        %3651 = vmatpush1.msra.mxu0 %v516
        %3652 = vmatprep.subr.mxu0 0.0
        %3653 = vmatpush1.msra.mxu0 %v517
        %3654 = vmatprep.subr.mxu0 0.0
        %3655 = vmatpush1.msra.mxu0 %v518
        %3656 = vmatprep.subr.mxu0 0.0
        %3657 = vmatpush1.msra.mxu0 %v519
        %3658 = vmatprep.subr.mxu0 0.0
        %3659 = vmatpush1.msra.mxu0 0.0
        %3660 = vmatprep.subr.mxu0 0.0
        %3661 = vmatpush1.msra.mxu0 0.0
        %3662 = vmatprep.subr.mxu0 0.0
        %3663 = vmatpush1.msra.mxu0 0.0
        %3664 = vmatprep.subr.mxu0 0.0
        %3665 = vmatpush1.msra.mxu0 0.0
        %3666 = vmatprep.subr.mxu0 0.0
        %3667 = vmatpush1.msra.mxu0 0.0
        %3668 = vmatprep.subr.mxu0 0.0
        %3669 = vmatpush1.msra.mxu0 0.0
        %3670 = vmatprep.subr.mxu0 0.0
        %3671 = vmatpush1.msra.mxu0 0.0
        %3672 = vmatprep.subr.mxu0 0.0
        %3673 = vmatpush1.msra.mxu0 0.0
        %3674 = vmatprep.subr.mxu0 0.0
        %3675 = vmatpush1.msra.mxu0 0.0
        %3676 = vmatprep.subr.mxu0 0.0
        %3677 = vmatpush1.msra.mxu0 0.0
        %3678 = vmatprep.subr.mxu0 0.0
        %3679 = vmatpush1.msra.mxu0 0.0
        %3680 = vmatprep.subr.mxu0 0.0
        %3681 = vmatpush1.msra.mxu0 0.0
        %3682 = vmatprep.subr.mxu0 0.0
        %3683 = vmatpush1.msra.mxu0 0.0
        %3684 = vmatprep.subr.mxu0 0.0
        %3685 = vmatpush1.msra.mxu0 0.0
        %3686 = vmatprep.subr.mxu0 0.0
        %3687 = vmatpush1.msra.mxu0 0.0
        %3688 = vmatprep.subr.mxu0 0.0
        %3689 = vmatpush1.msra.mxu0 0.0
        %3690 = vmatprep.mubr.f32.mxu0 0.0
        %3691 = vmatmul.mubr.f32.gmra.mrb[0].mxu0 %v3622
        %v3692 = vpop.f32.mrb[0].mxu0
        %v3693 = vadd.f32 0.0, %v3692
        %v3694 = vpop.f32.mrb[0].mxu0
        %3695 = vmatprep.mubr.f32.mxu0 0.0
        %3696 = vmatmul.mubr.f32.gmra.mrb[0].mxu0 %v3623
        %v3697 = vpop.f32.mrb[0].mxu0
        %v3698 = vadd.f32 0.0, %v3697
        %v3699 = vpop.f32.mrb[0].mxu0
        %3700 = vmatprep.mubr.f32.mxu0 0.0
        %3701 = vmatmul.mubr.f32.gmra.mrb[0].mxu0 %v3624
        %v3702 = vpop.f32.mrb[0].mxu0
        %v3703 = vadd.f32 0.0, %v3702
        %v3704 = vpop.f32.mrb[0].mxu0
        %3705 = vmatprep.mubr.f32.mxu0 0.0
        %3706 = vmatmul.mubr.f32.gmra.mrb[0].mxu0 %v3625
        %v3707 = vpop.f32.mrb[0].mxu0
        %v3708 = vadd.f32 0.0, %v3707
        %v3709 = vpop.f32.mrb[0].mxu0
        %3710 = vdwg.mxu0
        %v3711 = vmul.f32 %v3622, %v3622
        %v3712 = vmul.f32 %v3623, %v3623
        %v3713 = vmul.f32 %v3624, %v3624
        %v3714 = vmul.f32 %v3625, %v3625
        %3715 = vmatprep.subr.mxu0 0.0
        %3716 = vmatpush1.msra.mxu0 %v504
        %3717 = vmatprep.subr.mxu0 0.0
        %3718 = vmatpush1.msra.mxu0 %v505
        %3719 = vmatprep.subr.mxu0 0.0
        %3720 = vmatpush1.msra.mxu0 %v506
        %3721 = vmatprep.subr.mxu0 0.0
        %3722 = vmatpush1.msra.mxu0 %v507
        %3723 = vmatprep.subr.mxu0 0.0
        %3724 = vmatpush1.msra.mxu0 %v508
        %3725 = vmatprep.subr.mxu0 0.0
        %3726 = vmatpush1.msra.mxu0 %v509
        %3727 = vmatprep.subr.mxu0 0.0
        %3728 = vmatpush1.msra.mxu0 %v510
        %3729 = vmatprep.subr.mxu0 0.0
        %3730 = vmatpush1.msra.mxu0 %v511
        %3731 = vmatprep.subr.mxu0 0.0
        %3732 = vmatpush1.msra.mxu0 %v512
        %3733 = vmatprep.subr.mxu0 0.0
        %3734 = vmatpush1.msra.mxu0 %v513
        %3735 = vmatprep.subr.mxu0 0.0
        %3736 = vmatpush1.msra.mxu0 %v514
        %3737 = vmatprep.subr.mxu0 0.0
        %3738 = vmatpush1.msra.mxu0 %v515
        %3739 = vmatprep.subr.mxu0 0.0
        %3740 = vmatpush1.msra.mxu0 %v516
        %3741 = vmatprep.subr.mxu0 0.0
        %3742 = vmatpush1.msra.mxu0 %v517
        %3743 = vmatprep.subr.mxu0 0.0
        %3744 = vmatpush1.msra.mxu0 %v518
        %3745 = vmatprep.subr.mxu0 0.0
        %3746 = vmatpush1.msra.mxu0 %v519
        %3747 = vmatprep.subr.mxu0 0.0
        %3748 = vmatpush1.msra.mxu0 0.0
        %3749 = vmatprep.subr.mxu0 0.0
        %3750 = vmatpush1.msra.mxu0 0.0
        %3751 = vmatprep.subr.mxu0 0.0
        %3752 = vmatpush1.msra.mxu0 0.0
        %3753 = vmatprep.subr.mxu0 0.0
        %3754 = vmatpush1.msra.mxu0 0.0
        %3755 = vmatprep.subr.mxu0 0.0
        %3756 = vmatpush1.msra.mxu0 0.0
        %3757 = vmatprep.subr.mxu0 0.0
        %3758 = vmatpush1.msra.mxu0 0.0
        %3759 = vmatprep.subr.mxu0 0.0
        %3760 = vmatpush1.msra.mxu0 0.0
        %3761 = vmatprep.subr.mxu0 0.0
        %3762 = vmatpush1.msra.mxu0 0.0
        %3763 = vmatprep.subr.mxu0 0.0
        %3764 = vmatpush1.msra.mxu0 0.0
        %3765 = vmatprep.subr.mxu0 0.0
        %3766 = vmatpush1.msra.mxu0 0.0
        %3767 = vmatprep.subr.mxu0 0.0
        %3768 = vmatpush1.msra.mxu0 0.0
        %3769 = vmatprep.subr.mxu0 0.0
        %3770 = vmatpush1.msra.mxu0 0.0
        %3771 = vmatprep.subr.mxu0 0.0
        %3772 = vmatpush1.msra.mxu0 0.0
        %3773 = vmatprep.subr.mxu0 0.0
        %3774 = vmatpush1.msra.mxu0 0.0
        %3775 = vmatprep.subr.mxu0 0.0
        %3776 = vmatpush1.msra.mxu0 0.0
        %3777 = vmatprep.subr.mxu0 0.0
        %3778 = vmatpush1.msra.mxu0 0.0
        %3779 = vmatprep.mubr.f32.mxu0 0.0
        %3780 = vmatmul.mubr.f32.gmra.mrb[0].mxu0 %v3711
        %v3781 = vpop.f32.mrb[0].mxu0
        %v3782 = vadd.f32 0.0, %v3781
        %v3783 = vpop.f32.mrb[0].mxu0
        %3784 = vmatprep.mubr.f32.mxu0 0.0
        %3785 = vmatmul.mubr.f32.gmra.mrb[0].mxu0 %v3712
        %v3786 = vpop.f32.mrb[0].mxu0
        %v3787 = vadd.f32 0.0, %v3786
        %v3788 = vpop.f32.mrb[0].mxu0
        %3789 = vmatprep.mubr.f32.mxu0 0.0
        %3790 = vmatmul.mubr.f32.gmra.mrb[0].mxu0 %v3713
        %v3791 = vpop.f32.mrb[0].mxu0
        %v3792 = vadd.f32 0.0, %v3791
        %v3793 = vpop.f32.mrb[0].mxu0
        %3794 = vmatprep.mubr.f32.mxu0 0.0
        %3795 = vmatmul.mubr.f32.gmra.mrb[0].mxu0 %v3714
        %v3796 = vpop.f32.mrb[0].mxu0
        %v3797 = vadd.f32 0.0, %v3796
        %v3798 = vpop.f32.mrb[0].mxu0
        %3799 = vdwg.mxu0
        %v3800 = vsel %vm665, %v3693, 0.0
        %v3801 = vsel %vm665, %v3698, 0.0
        %v3802 = vadd.f32 %v3800, %v3801
        %v3803 = vsel %vm665, %v3703, 0.0
        %v3804 = vadd.f32 %v3802, %v3803
        %v3805 = vsel %vm665, %v3708, 0.0
        %v3806 = vadd.f32 %v3804, %v3805
        %v3807 = vrot.slane %v3806, 4
        %v3808 = vadd.f32 %v3806, %v3807
        %v3809 = vrot.slane %v3808, 2
        %v3810 = vadd.f32 %v3808, %v3809
        %v3811 = vrot.slane %v3810, 1
        %v3812 = vadd.f32 %v3810, %v3811
        %v3813 = vsel %vm665, %v3782, 0.0
        %v3814 = vsel %vm665, %v3787, 0.0
        %v3815 = vadd.f32 %v3813, %v3814
        %v3816 = vsel %vm665, %v3792, 0.0
        %v3817 = vadd.f32 %v3815, %v3816
        %v3818 = vsel %vm665, %v3797, 0.0
        %v3819 = vadd.f32 %v3817, %v3818
        %v3820 = vrot.slane %v3819, 4
        %v3821 = vadd.f32 %v3819, %v3820
        %v3822 = vrot.slane %v3821, 2
        %v3823 = vadd.f32 %v3821, %v3822
        %v3824 = vrot.slane %v3823, 1
        %v3825 = vadd.f32 %v3823, %v3824
        %v3826 = vmul.f32 %v3812, 0.0009765625
        %v3827 = vmul.f32 %v3825, 0.0009765625
        %v3828 = vmul.f32 %v3826, %v3826
        %v3829 = vsub.f32 %v3827, %v3828
        %v3830 = vmax.f32 %v3829, 0.0
        %v3831 = vadd.f32 %v3830, 1e-08
        %v3832 = vrsqrt.pop %v3831
        %v3833 = vsub.f32 0.0, %v3826
        %v3834 = vmul.f32 %v3833, %v3832
        %v3835 = vsel %vm689, %v3832, %v3834
        %v3837 = vsel %vm665, %v3835, 0
        %3839 = vmatprep.subr.mxu0 0.0
        %3840 = vmatpush1.msra.mxu0 %v696
        %3841 = vmatprep.subr.mxu0 0.0
        %3842 = vmatpush1.msra.mxu0 0.0
        %3843 = vmatprep.subr.mxu0 0.0
        %3844 = vmatpush1.msra.mxu0 0.0
        %3845 = vmatprep.subr.mxu0 0.0
        %3846 = vmatpush1.msra.mxu0 0.0
        %3847 = vmatprep.subr.mxu0 0.0
        %3848 = vmatpush1.msra.mxu0 0.0
        %3849 = vmatprep.subr.mxu0 0.0
        %3850 = vmatpush1.msra.mxu0 0.0
        %3851 = vmatprep.subr.mxu0 0.0
        %3852 = vmatpush1.msra.mxu0 0.0
        %3853 = vmatprep.subr.mxu0 0.0
        %3854 = vmatpush1.msra.mxu0 0.0
        %3855 = vmatprep.subr.mxu0 0.0
        %3856 = vmatpush1.msra.mxu0 0.0
        %3857 = vmatprep.subr.mxu0 0.0
        %3858 = vmatpush1.msra.mxu0 0.0
        %3859 = vmatprep.subr.mxu0 0.0
        %3860 = vmatpush1.msra.mxu0 0.0
        %3861 = vmatprep.subr.mxu0 0.0
        %3862 = vmatpush1.msra.mxu0 0.0
        %3863 = vmatprep.subr.mxu0 0.0
        %3864 = vmatpush1.msra.mxu0 0.0
        %3865 = vmatprep.subr.mxu0 0.0
        %3866 = vmatpush1.msra.mxu0 0.0
        %3867 = vmatprep.subr.mxu0 0.0
        %3868 = vmatpush1.msra.mxu0 0.0
        %3869 = vmatprep.subr.mxu0 0.0
        %3870 = vmatpush1.msra.mxu0 0.0
        %3871 = vmatprep.subr.mxu0 0.0
        %3872 = vmatpush1.msra.mxu0 0.0
        %3873 = vmatprep.subr.mxu0 0.0
        %3874 = vmatpush1.msra.mxu0 0.0
        %3875 = vmatprep.subr.mxu0 0.0
        %3876 = vmatpush1.msra.mxu0 0.0
        %3877 = vmatprep.subr.mxu0 0.0
        %3878 = vmatpush1.msra.mxu0 0.0
        %3879 = vmatprep.subr.mxu0 0.0
        %3880 = vmatpush1.msra.mxu0 0.0
        %3881 = vmatprep.subr.mxu0 0.0
        %3882 = vmatpush1.msra.mxu0 0.0
        %3883 = vmatprep.subr.mxu0 0.0
        %3884 = vmatpush1.msra.mxu0 0.0
        %3885 = vmatprep.subr.mxu0 0.0
        %3886 = vmatpush1.msra.mxu0 0.0
        %3887 = vmatprep.subr.mxu0 0.0
        %3888 = vmatpush1.msra.mxu0 0.0
        %3889 = vmatprep.subr.mxu0 0.0
        %3890 = vmatpush1.msra.mxu0 0.0
        %3891 = vmatprep.subr.mxu0 0.0
        %3892 = vmatpush1.msra.mxu0 0.0
        %3893 = vmatprep.subr.mxu0 0.0
        %3894 = vmatpush1.msra.mxu0 0.0
        %3895 = vmatprep.subr.mxu0 0.0
        %3896 = vmatpush1.msra.mxu0 0.0
        %3897 = vmatprep.subr.mxu0 0.0
        %3898 = vmatpush1.msra.mxu0 0.0
        %3899 = vmatprep.subr.mxu0 0.0
        %3900 = vmatpush1.msra.mxu0 0.0
        %3901 = vmatprep.subr.mxu0 0.0
        %3902 = vmatpush1.msra.mxu0 0.0
        %3903 = vmatprep.mubr.f32.mxu0 0.0
        %3904 = vmatmul.mubr.f32.gmra.mrb[0].mxu0 %v3837
        %v3905 = vpop.f32.mrb[0].mxu0
        %v3906 = vadd.f32 0.0, %v3905
        %v3907 = vpop.f32.mrb[0].mxu0
        %3908 = vdwg.mxu0
        %v3909 = vlaneseq
        %v3910 = vshrl.u32 %v3909, 7
        %v3911 = vsub.s32 0, %v3910
        %v3912 = vrot.slane %v3906, %v3911
        %v3913 = vmul.f32 %v3622, %v3912
        %v3914 = vmul.f32 %v3623, %v3912
        %v3915 = vmul.f32 %v3624, %v3912
        %v3916 = vmul.f32 %v3625, %v3912
        %v3917 = vlaneseq
        %v3918 = vshrl.u32 %v3917, 7
        %v3919 = vsub.s32 1, %v3918
        %v3920 = vrot.slane %v3906, %v3919
        %v3921 = vadd.f32 %v3913, %v3920
        %v3922 = vadd.f32 %v3914, %v3920
        %v3923 = vadd.f32 %v3915, %v3920
        %v3924 = vadd.f32 %v3916, %v3920
        %3925 = vset.pattern.permute.xlu0 4
        %3926 = vperm.xlu0 %3925, %v3009
        %v3927 = vpop.permute.xlu0 %3926
        %3929 = vset.pattern.permute.xlu0 4
        %3930 = vperm.xlu0 %3929, %v3010
        %v3931 = vpop.permute.xlu0 %3930
        %3933 = vset.pattern.permute.xlu0 4
        %3934 = vperm.xlu0 %3933, %v3011
        %v3935 = vpop.permute.xlu0 %3934
        %3937 = vset.pattern.permute.xlu0 4
        %3938 = vperm.xlu0 %3937, %v3012
        %v3939 = vpop.permute.xlu0 %3938
        %v3941 = vmul.f32 %v3927, %v3921
        %v3942 = vmul.f32 %v3931, %v3922
        %v3943 = vmul.f32 %v3935, %v3923
        %v3944 = vmul.f32 %v3939, %v3924
        %3945 = vset.pattern.permute.xlu0 5
        %3946 = vperm.xlu0 %3945, %v3009
        %v3947 = vpop.permute.xlu0 %3946
        %3949 = vset.pattern.permute.xlu0 5
        %3950 = vperm.xlu0 %3949, %v3010
        %v3951 = vpop.permute.xlu0 %3950
        %3953 = vset.pattern.permute.xlu0 5
        %3954 = vperm.xlu0 %3953, %v3011
        %v3955 = vpop.permute.xlu0 %3954
        %3957 = vset.pattern.permute.xlu0 5
        %3958 = vperm.xlu0 %3957, %v3012
        %v3959 = vpop.permute.xlu0 %3958
        %v3961 = vadd.f32 %v3941, %v3947
        %v3962 = vadd.f32 %v3942, %v3951
        %v3963 = vadd.f32 %v3943, %v3955
        %v3964 = vadd.f32 %v3944, %v3959
        %v3966 = vsel %vm1847, %v3024, 0
        %v3969 = vsel %vm1847, %v3025, 0
        %3971 = vmatprep.subr.mxu0 0.0
        %3972 = vmatpush1.msra.mxu0 %v3961
        %3973 = vmatprep.subr.mxu0 0.0
        %3974 = vmatpush1.msra.mxu0 %v3962
        %3975 = vmatprep.subr.mxu0 0.0
        %3976 = vmatpush1.msra.mxu0 %v3963
        %3977 = vmatprep.subr.mxu0 0.0
        %3978 = vmatpush1.msra.mxu0 %v3964
        %3979 = vmatprep.subr.mxu0 0.0
        %3980 = vmatpush1.msra.mxu0 0.0
        %3981 = vmatprep.subr.mxu0 0.0
        %3982 = vmatpush1.msra.mxu0 0.0
        %3983 = vmatprep.subr.mxu0 0.0
        %3984 = vmatpush1.msra.mxu0 0.0
        %3985 = vmatprep.subr.mxu0 0.0
        %3986 = vmatpush1.msra.mxu0 0.0
        %3987 = vmatprep.subr.mxu0 0.0
        %3988 = vmatpush1.msra.mxu0 0.0
        %3989 = vmatprep.subr.mxu0 0.0
        %3990 = vmatpush1.msra.mxu0 0.0
        %3991 = vmatprep.subr.mxu0 0.0
        %3992 = vmatpush1.msra.mxu0 0.0
        %3993 = vmatprep.subr.mxu0 0.0
        %3994 = vmatpush1.msra.mxu0 0.0
        %3995 = vmatprep.subr.mxu0 0.0
        %3996 = vmatpush1.msra.mxu0 0.0
        %3997 = vmatprep.subr.mxu0 0.0
        %3998 = vmatpush1.msra.mxu0 0.0
        %3999 = vmatprep.subr.mxu0 0.0
        %4000 = vmatpush1.msra.mxu0 0.0
        %4001 = vmatprep.subr.mxu0 0.0
        %4002 = vmatpush1.msra.mxu0 0.0
        %4003 = vmatprep.subr.mxu0 0.0
        %4004 = vmatpush1.msra.mxu0 0.0
        %4005 = vmatprep.subr.mxu0 0.0
        %4006 = vmatpush1.msra.mxu0 0.0
        %4007 = vmatprep.subr.mxu0 0.0
        %4008 = vmatpush1.msra.mxu0 0.0
        %4009 = vmatprep.subr.mxu0 0.0
        %4010 = vmatpush1.msra.mxu0 0.0
        %4011 = vmatprep.subr.mxu0 0.0
        %4012 = vmatpush1.msra.mxu0 0.0
        %4013 = vmatprep.subr.mxu0 0.0
        %4014 = vmatpush1.msra.mxu0 0.0
        %4015 = vmatprep.subr.mxu0 0.0
        %4016 = vmatpush1.msra.mxu0 0.0
        %4017 = vmatprep.subr.mxu0 0.0
        %4018 = vmatpush1.msra.mxu0 0.0
        %4019 = vmatprep.subr.mxu0 0.0
        %4020 = vmatpush1.msra.mxu0 0.0
        %4021 = vmatprep.subr.mxu0 0.0
        %4022 = vmatpush1.msra.mxu0 0.0
        %4023 = vmatprep.subr.mxu0 0.0
        %4024 = vmatpush1.msra.mxu0 0.0
        %4025 = vmatprep.subr.mxu0 0.0
        %4026 = vmatpush1.msra.mxu0 0.0
        %4027 = vmatprep.subr.mxu0 0.0
        %4028 = vmatpush1.msra.mxu0 0.0
        %4029 = vmatprep.subr.mxu0 0.0
        %4030 = vmatpush1.msra.mxu0 0.0
        %4031 = vmatprep.subr.mxu0 0.0
        %4032 = vmatpush1.msra.mxu0 0.0
        %4033 = vmatprep.subr.mxu0 0.0
        %4034 = vmatpush1.msra.mxu0 0.0
        %4035 = vmatprep.mubr.f32.mxu0 0.0
        %4036 = vmatmul.mubr.f32.gmra.mrb[0].mxu0 %v3966
        %v4037 = vpop.f32.mrb[0].mxu0
        %v4038 = vadd.f32 0.0, %v4037
        %v4039 = vpop.f32.mrb[0].mxu0
        %4040 = vmatprep.mubr.f32.mxu0 0.0
        %4041 = vmatmul.mubr.f32.gmra.mrb[0].mxu0 %v3969
        %v4042 = vpop.f32.mrb[0].mxu0
        %v4043 = vadd.f32 0.0, %v4042
        %v4044 = vpop.f32.mrb[0].mxu0
        %4045 = vdwg.mxu0
        %v4046 = vadd.f32 %v3006, %v4038
        %v4047 = vadd.f32 %v3007, %v4043
        %s4048 = scalar_lea.vmem %s12, 32
        %v4049 = vld [vmem:[%s4048] sm:$0xff]
        %v4050 = vld [vmem:[%s4048 + $0x8] sm:$0xff]
        %4052 = vset.pattern.permute.xlu0 0
        %4053 = vperm.xlu0 %4052, %v4049
        %v4054 = vpop.permute.xlu0 %4053
        %4057 = vset.pattern.permute.xlu0 0
        %4058 = vperm.xlu0 %4057, %v4050
        %v4059 = vpop.permute.xlu0 %4058
        %v4061 = vadd.f32 %v4046, %v4054
        %v4062 = vadd.f32 %v4047, %v4059
        %s4063 = scalar_lea.vmem %s9, 96
        %v4064 = vld [vmem:[%s4063] sm:$0xff]
        %v4065 = vld [vmem:[%s4063 + $0x8] sm:$0xff]
        %v4066 = vld [vmem:[%s4063 + $0x10] sm:$0xff]
        %v4067 = vld [vmem:[%s4063 + $0x18] sm:$0xff]
        %s4068 = scalar_lea.vmem %s10, 96
        %v4069 = vld [vmem:[%s4068] sm:$0xff]
        %v4070 = vld [vmem:[%s4068 + $0x8] sm:$0xff]
        %v4071 = vld [vmem:[%s4068 + $0x10] sm:$0xff]
        %v4072 = vld [vmem:[%s4068 + $0x18] sm:$0xff]
        %s4073 = scalar_lea.vmem %s8, 96
        %v4074 = vld [vmem:[%s4073] sm:$0xff]
        %v4075 = vld [vmem:[%s4073 + $0x8] sm:$0xff]
        %v4076 = vld [vmem:[%s4073 + $0x10] sm:$0xff]
        %v4077 = vld [vmem:[%s4073 + $0x18] sm:$0xff]
        %s4078 = scalar_lea.vmem %s11, 48
        %v4079 = vld [vmem:[%s4078] sm:$0xff]
        %v4080 = vld [vmem:[%s4078 + $0x8] sm:$0xff]
        %s4081 = sld [smem:[#allocation2 + $0x6]]
        %s4082 = sld [smem:[#allocation2 + $0x7]]
        %4084 = vset.pattern.permute.xlu0 0
        %4085 = vperm.xlu0 %4084, %v4064
        %v4086 = vpop.permute.xlu0 %4085
        %4089 = vset.pattern.permute.xlu0 0
        %4090 = vperm.xlu0 %4089, %v4065
        %v4091 = vpop.permute.xlu0 %4090
        %4094 = vset.pattern.permute.xlu0 0
        %4095 = vperm.xlu0 %4094, %v4066
        %v4096 = vpop.permute.xlu0 %4095
        %4099 = vset.pattern.permute.xlu0 0
        %4100 = vperm.xlu0 %4099, %v4067
        %v4101 = vpop.permute.xlu0 %4100
        %v4104 = vsel %vm921, %v4074, 0
        %v4107 = vsel %vm921, %v4075, 0
        %v4110 = vsel %vm921, %v4076, 0
        %v4113 = vsel %vm921, %v4077, 0
        %4115 = vmatprep.subr.mxu0 0.0
        %4116 = vmatpush1.msra.mxu0 %v4061
        %4117 = vmatprep.subr.mxu0 0.0
        %4118 = vmatpush1.msra.mxu0 %v4062
        %4119 = vmatprep.subr.mxu0 0.0
        %4120 = vmatpush1.msra.mxu0 0.0
        %4121 = vmatprep.subr.mxu0 0.0
        %4122 = vmatpush1.msra.mxu0 0.0
        %4123 = vmatprep.subr.mxu0 0.0
        %4124 = vmatpush1.msra.mxu0 0.0
        %4125 = vmatprep.subr.mxu0 0.0
        %4126 = vmatpush1.msra.mxu0 0.0
        %4127 = vmatprep.subr.mxu0 0.0
        %4128 = vmatpush1.msra.mxu0 0.0
        %4129 = vmatprep.subr.mxu0 0.0
        %4130 = vmatpush1.msra.mxu0 0.0
        %4131 = vmatprep.subr.mxu0 0.0
        %4132 = vmatpush1.msra.mxu0 0.0
        %4133 = vmatprep.subr.mxu0 0.0
        %4134 = vmatpush1.msra.mxu0 0.0
        %4135 = vmatprep.subr.mxu0 0.0
        %4136 = vmatpush1.msra.mxu0 0.0
        %4137 = vmatprep.subr.mxu0 0.0
        %4138 = vmatpush1.msra.mxu0 0.0
        %4139 = vmatprep.subr.mxu0 0.0
        %4140 = vmatpush1.msra.mxu0 0.0
        %4141 = vmatprep.subr.mxu0 0.0
        %4142 = vmatpush1.msra.mxu0 0.0
        %4143 = vmatprep.subr.mxu0 0.0
        %4144 = vmatpush1.msra.mxu0 0.0
        %4145 = vmatprep.subr.mxu0 0.0
        %4146 = vmatpush1.msra.mxu0 0.0
        %4147 = vmatprep.subr.mxu0 0.0
        %4148 = vmatpush1.msra.mxu0 0.0
        %4149 = vmatprep.subr.mxu0 0.0
        %4150 = vmatpush1.msra.mxu0 0.0
        %4151 = vmatprep.subr.mxu0 0.0
        %4152 = vmatpush1.msra.mxu0 0.0
        %4153 = vmatprep.subr.mxu0 0.0
        %4154 = vmatpush1.msra.mxu0 0.0
        %4155 = vmatprep.subr.mxu0 0.0
        %4156 = vmatpush1.msra.mxu0 0.0
        %4157 = vmatprep.subr.mxu0 0.0
        %4158 = vmatpush1.msra.mxu0 0.0
        %4159 = vmatprep.subr.mxu0 0.0
        %4160 = vmatpush1.msra.mxu0 0.0
        %4161 = vmatprep.subr.mxu0 0.0
        %4162 = vmatpush1.msra.mxu0 0.0
        %4163 = vmatprep.subr.mxu0 0.0
        %4164 = vmatpush1.msra.mxu0 0.0
        %4165 = vmatprep.subr.mxu0 0.0
        %4166 = vmatpush1.msra.mxu0 0.0
        %4167 = vmatprep.subr.mxu0 0.0
        %4168 = vmatpush1.msra.mxu0 0.0
        %4169 = vmatprep.subr.mxu0 0.0
        %4170 = vmatpush1.msra.mxu0 0.0
        %4171 = vmatprep.subr.mxu0 0.0
        %4172 = vmatpush1.msra.mxu0 0.0
        %4173 = vmatprep.subr.mxu0 0.0
        %4174 = vmatpush1.msra.mxu0 0.0
        %4175 = vmatprep.subr.mxu0 0.0
        %4176 = vmatpush1.msra.mxu0 0.0
        %4177 = vmatprep.subr.mxu0 0.0
        %4178 = vmatpush1.msra.mxu0 0.0
        %4179 = vmatprep.mubr.f32.mxu0 0.0
        %4180 = vmatmul.mubr.f32.gmra.mrb[0].mxu0 %v4104
        %v4181 = vpop.f32.mrb[0].mxu0
        %v4182 = vadd.f32 %v4086, %v4181
        %v4183 = vpop.f32.mrb[0].mxu0
        %4184 = vmatprep.mubr.f32.mxu0 0.0
        %4185 = vmatmul.mubr.f32.gmra.mrb[0].mxu0 %v4107
        %v4186 = vpop.f32.mrb[0].mxu0
        %v4187 = vadd.f32 %v4091, %v4186
        %v4188 = vpop.f32.mrb[0].mxu0
        %4189 = vmatprep.mubr.f32.mxu0 0.0
        %4190 = vmatmul.mubr.f32.gmra.mrb[0].mxu0 %v4110
        %v4191 = vpop.f32.mrb[0].mxu0
        %v4192 = vadd.f32 %v4096, %v4191
        %v4193 = vpop.f32.mrb[0].mxu0
        %4194 = vmatprep.mubr.f32.mxu0 0.0
        %4195 = vmatmul.mubr.f32.gmra.mrb[0].mxu0 %v4113
        %v4196 = vpop.f32.mrb[0].mxu0
        %v4197 = vadd.f32 %v4101, %v4196
        %v4198 = vpop.f32.mrb[0].mxu0
        %4199 = vdwg.mxu0
        %vm4200 = vcmp.gt.f32.partialorder %v4182, 0.0
        %vm4201 = vcmp.gt.f32.partialorder %v4187, 0.0
        %vm4202 = vcmp.gt.f32.partialorder %v4192, 0.0
        %vm4203 = vcmp.gt.f32.partialorder %v4197, 0.0
        %v4204 = vstv %s4081
        %v4205 = vmul.f32 %v4204, %v4182
        %v4206 = vmul.f32 %v4204, %v4187
        %v4207 = vmul.f32 %v4204, %v4192
        %v4208 = vmul.f32 %v4204, %v4197
        %v4209 = vsel %vm4200, %v4182, %v4205
        %v4210 = vsel %vm4201, %v4187, %v4206
        %v4211 = vsel %vm4202, %v4192, %v4207
        %v4212 = vsel %vm4203, %v4197, %v4208
        %4213 = vmatprep.subr.mxu0 0.0
        %4214 = vmatpush1.msra.mxu0 %v504
        %4215 = vmatprep.subr.mxu0 0.0
        %4216 = vmatpush1.msra.mxu0 %v505
        %4217 = vmatprep.subr.mxu0 0.0
        %4218 = vmatpush1.msra.mxu0 %v506
        %4219 = vmatprep.subr.mxu0 0.0
        %4220 = vmatpush1.msra.mxu0 %v507
        %4221 = vmatprep.subr.mxu0 0.0
        %4222 = vmatpush1.msra.mxu0 %v508
        %4223 = vmatprep.subr.mxu0 0.0
        %4224 = vmatpush1.msra.mxu0 %v509
        %4225 = vmatprep.subr.mxu0 0.0
        %4226 = vmatpush1.msra.mxu0 %v510
        %4227 = vmatprep.subr.mxu0 0.0
        %4228 = vmatpush1.msra.mxu0 %v511
        %4229 = vmatprep.subr.mxu0 0.0
        %4230 = vmatpush1.msra.mxu0 %v512
        %4231 = vmatprep.subr.mxu0 0.0
        %4232 = vmatpush1.msra.mxu0 %v513
        %4233 = vmatprep.subr.mxu0 0.0
        %4234 = vmatpush1.msra.mxu0 %v514
        %4235 = vmatprep.subr.mxu0 0.0
        %4236 = vmatpush1.msra.mxu0 %v515
        %4237 = vmatprep.subr.mxu0 0.0
        %4238 = vmatpush1.msra.mxu0 %v516
        %4239 = vmatprep.subr.mxu0 0.0
        %4240 = vmatpush1.msra.mxu0 %v517
        %4241 = vmatprep.subr.mxu0 0.0
        %4242 = vmatpush1.msra.mxu0 %v518
        %4243 = vmatprep.subr.mxu0 0.0
        %4244 = vmatpush1.msra.mxu0 %v519
        %4245 = vmatprep.subr.mxu0 0.0
        %4246 = vmatpush1.msra.mxu0 0.0
        %4247 = vmatprep.subr.mxu0 0.0
        %4248 = vmatpush1.msra.mxu0 0.0
        %4249 = vmatprep.subr.mxu0 0.0
        %4250 = vmatpush1.msra.mxu0 0.0
        %4251 = vmatprep.subr.mxu0 0.0
        %4252 = vmatpush1.msra.mxu0 0.0
        %4253 = vmatprep.subr.mxu0 0.0
        %4254 = vmatpush1.msra.mxu0 0.0
        %4255 = vmatprep.subr.mxu0 0.0
        %4256 = vmatpush1.msra.mxu0 0.0
        %4257 = vmatprep.subr.mxu0 0.0
        %4258 = vmatpush1.msra.mxu0 0.0
        %4259 = vmatprep.subr.mxu0 0.0
        %4260 = vmatpush1.msra.mxu0 0.0
        %4261 = vmatprep.subr.mxu0 0.0
        %4262 = vmatpush1.msra.mxu0 0.0
        %4263 = vmatprep.subr.mxu0 0.0
        %4264 = vmatpush1.msra.mxu0 0.0
        %4265 = vmatprep.subr.mxu0 0.0
        %4266 = vmatpush1.msra.mxu0 0.0
        %4267 = vmatprep.subr.mxu0 0.0
        %4268 = vmatpush1.msra.mxu0 0.0
        %4269 = vmatprep.subr.mxu0 0.0
        %4270 = vmatpush1.msra.mxu0 0.0
        %4271 = vmatprep.subr.mxu0 0.0
        %4272 = vmatpush1.msra.mxu0 0.0
        %4273 = vmatprep.subr.mxu0 0.0
        %4274 = vmatpush1.msra.mxu0 0.0
        %4275 = vmatprep.subr.mxu0 0.0
        %4276 = vmatpush1.msra.mxu0 0.0
        %4277 = vmatprep.mubr.f32.mxu0 0.0
        %4278 = vmatmul.mubr.f32.gmra.mrb[0].mxu0 %v4209
        %v4279 = vpop.f32.mrb[0].mxu0
        %v4280 = vadd.f32 0.0, %v4279
        %v4281 = vpop.f32.mrb[0].mxu0
        %4282 = vmatprep.mubr.f32.mxu0 0.0
        %4283 = vmatmul.mubr.f32.gmra.mrb[0].mxu0 %v4210
        %v4284 = vpop.f32.mrb[0].mxu0
        %v4285 = vadd.f32 0.0, %v4284
        %v4286 = vpop.f32.mrb[0].mxu0
        %4287 = vmatprep.mubr.f32.mxu0 0.0
        %4288 = vmatmul.mubr.f32.gmra.mrb[0].mxu0 %v4211
        %v4289 = vpop.f32.mrb[0].mxu0
        %v4290 = vadd.f32 0.0, %v4289
        %v4291 = vpop.f32.mrb[0].mxu0
        %4292 = vmatprep.mubr.f32.mxu0 0.0
        %4293 = vmatmul.mubr.f32.gmra.mrb[0].mxu0 %v4212
        %v4294 = vpop.f32.mrb[0].mxu0
        %v4295 = vadd.f32 0.0, %v4294
        %v4296 = vpop.f32.mrb[0].mxu0
        %4297 = vdwg.mxu0
        %v4298 = vmul.f32 %v4209, %v4209
        %v4299 = vmul.f32 %v4210, %v4210
        %v4300 = vmul.f32 %v4211, %v4211
        %v4301 = vmul.f32 %v4212, %v4212
        %4302 = vmatprep.subr.mxu0 0.0
        %4303 = vmatpush1.msra.mxu0 %v504
        %4304 = vmatprep.subr.mxu0 0.0
        %4305 = vmatpush1.msra.mxu0 %v505
        %4306 = vmatprep.subr.mxu0 0.0
        %4307 = vmatpush1.msra.mxu0 %v506
        %4308 = vmatprep.subr.mxu0 0.0
        %4309 = vmatpush1.msra.mxu0 %v507
        %4310 = vmatprep.subr.mxu0 0.0
        %4311 = vmatpush1.msra.mxu0 %v508
        %4312 = vmatprep.subr.mxu0 0.0
        %4313 = vmatpush1.msra.mxu0 %v509
        %4314 = vmatprep.subr.mxu0 0.0
        %4315 = vmatpush1.msra.mxu0 %v510
        %4316 = vmatprep.subr.mxu0 0.0
        %4317 = vmatpush1.msra.mxu0 %v511
        %4318 = vmatprep.subr.mxu0 0.0
        %4319 = vmatpush1.msra.mxu0 %v512
        %4320 = vmatprep.subr.mxu0 0.0
        %4321 = vmatpush1.msra.mxu0 %v513
        %4322 = vmatprep.subr.mxu0 0.0
        %4323 = vmatpush1.msra.mxu0 %v514
        %4324 = vmatprep.subr.mxu0 0.0
        %4325 = vmatpush1.msra.mxu0 %v515
        %4326 = vmatprep.subr.mxu0 0.0
        %4327 = vmatpush1.msra.mxu0 %v516
        %4328 = vmatprep.subr.mxu0 0.0
        %4329 = vmatpush1.msra.mxu0 %v517
        %4330 = vmatprep.subr.mxu0 0.0
        %4331 = vmatpush1.msra.mxu0 %v518
        %4332 = vmatprep.subr.mxu0 0.0
        %4333 = vmatpush1.msra.mxu0 %v519
        %4334 = vmatprep.subr.mxu0 0.0
        %4335 = vmatpush1.msra.mxu0 0.0
        %4336 = vmatprep.subr.mxu0 0.0
        %4337 = vmatpush1.msra.mxu0 0.0
        %4338 = vmatprep.subr.mxu0 0.0
        %4339 = vmatpush1.msra.mxu0 0.0
        %4340 = vmatprep.subr.mxu0 0.0
        %4341 = vmatpush1.msra.mxu0 0.0
        %4342 = vmatprep.subr.mxu0 0.0
        %4343 = vmatpush1.msra.mxu0 0.0
        %4344 = vmatprep.subr.mxu0 0.0
        %4345 = vmatpush1.msra.mxu0 0.0
        %4346 = vmatprep.subr.mxu0 0.0
        %4347 = vmatpush1.msra.mxu0 0.0
        %4348 = vmatprep.subr.mxu0 0.0
        %4349 = vmatpush1.msra.mxu0 0.0
        %4350 = vmatprep.subr.mxu0 0.0
        %4351 = vmatpush1.msra.mxu0 0.0
        %4352 = vmatprep.subr.mxu0 0.0
        %4353 = vmatpush1.msra.mxu0 0.0
        %4354 = vmatprep.subr.mxu0 0.0
        %4355 = vmatpush1.msra.mxu0 0.0
        %4356 = vmatprep.subr.mxu0 0.0
        %4357 = vmatpush1.msra.mxu0 0.0
        %4358 = vmatprep.subr.mxu0 0.0
        %4359 = vmatpush1.msra.mxu0 0.0
        %4360 = vmatprep.subr.mxu0 0.0
        %4361 = vmatpush1.msra.mxu0 0.0
        %4362 = vmatprep.subr.mxu0 0.0
        %4363 = vmatpush1.msra.mxu0 0.0
        %4364 = vmatprep.subr.mxu0 0.0
        %4365 = vmatpush1.msra.mxu0 0.0
        %4366 = vmatprep.mubr.f32.mxu0 0.0
        %4367 = vmatmul.mubr.f32.gmra.mrb[0].mxu0 %v4298
        %v4368 = vpop.f32.mrb[0].mxu0
        %v4369 = vadd.f32 0.0, %v4368
        %v4370 = vpop.f32.mrb[0].mxu0
        %4371 = vmatprep.mubr.f32.mxu0 0.0
        %4372 = vmatmul.mubr.f32.gmra.mrb[0].mxu0 %v4299
        %v4373 = vpop.f32.mrb[0].mxu0
        %v4374 = vadd.f32 0.0, %v4373
        %v4375 = vpop.f32.mrb[0].mxu0
        %4376 = vmatprep.mubr.f32.mxu0 0.0
        %4377 = vmatmul.mubr.f32.gmra.mrb[0].mxu0 %v4300
        %v4378 = vpop.f32.mrb[0].mxu0
        %v4379 = vadd.f32 0.0, %v4378
        %v4380 = vpop.f32.mrb[0].mxu0
        %4381 = vmatprep.mubr.f32.mxu0 0.0
        %4382 = vmatmul.mubr.f32.gmra.mrb[0].mxu0 %v4301
        %v4383 = vpop.f32.mrb[0].mxu0
        %v4384 = vadd.f32 0.0, %v4383
        %v4385 = vpop.f32.mrb[0].mxu0
        %4386 = vdwg.mxu0
        %v4387 = vsel %vm665, %v4280, 0.0
        %v4388 = vsel %vm665, %v4285, 0.0
        %v4389 = vadd.f32 %v4387, %v4388
        %v4390 = vsel %vm665, %v4290, 0.0
        %v4391 = vadd.f32 %v4389, %v4390
        %v4392 = vsel %vm665, %v4295, 0.0
        %v4393 = vadd.f32 %v4391, %v4392
        %v4394 = vrot.slane %v4393, 4
        %v4395 = vadd.f32 %v4393, %v4394
        %v4396 = vrot.slane %v4395, 2
        %v4397 = vadd.f32 %v4395, %v4396
        %v4398 = vrot.slane %v4397, 1
        %v4399 = vadd.f32 %v4397, %v4398
        %v4400 = vsel %vm665, %v4369, 0.0
        %v4401 = vsel %vm665, %v4374, 0.0
        %v4402 = vadd.f32 %v4400, %v4401
        %v4403 = vsel %vm665, %v4379, 0.0
        %v4404 = vadd.f32 %v4402, %v4403
        %v4405 = vsel %vm665, %v4384, 0.0
        %v4406 = vadd.f32 %v4404, %v4405
        %v4407 = vrot.slane %v4406, 4
        %v4408 = vadd.f32 %v4406, %v4407
        %v4409 = vrot.slane %v4408, 2
        %v4410 = vadd.f32 %v4408, %v4409
        %v4411 = vrot.slane %v4410, 1
        %v4412 = vadd.f32 %v4410, %v4411
        %v4413 = vmul.f32 %v4399, 0.0009765625
        %v4414 = vmul.f32 %v4412, 0.0009765625
        %v4415 = vmul.f32 %v4413, %v4413
        %v4416 = vsub.f32 %v4414, %v4415
        %v4417 = vmax.f32 %v4416, 0.0
        %v4418 = vadd.f32 %v4417, 1e-08
        %v4419 = vrsqrt.pop %v4418
        %v4420 = vsub.f32 0.0, %v4413
        %v4421 = vmul.f32 %v4420, %v4419
        %v4422 = vsel %vm689, %v4419, %v4421
        %v4424 = vsel %vm665, %v4422, 0
        %4426 = vmatprep.subr.mxu0 0.0
        %4427 = vmatpush1.msra.mxu0 %v696
        %4428 = vmatprep.subr.mxu0 0.0
        %4429 = vmatpush1.msra.mxu0 0.0
        %4430 = vmatprep.subr.mxu0 0.0
        %4431 = vmatpush1.msra.mxu0 0.0
        %4432 = vmatprep.subr.mxu0 0.0
        %4433 = vmatpush1.msra.mxu0 0.0
        %4434 = vmatprep.subr.mxu0 0.0
        %4435 = vmatpush1.msra.mxu0 0.0
        %4436 = vmatprep.subr.mxu0 0.0
        %4437 = vmatpush1.msra.mxu0 0.0
        %4438 = vmatprep.subr.mxu0 0.0
        %4439 = vmatpush1.msra.mxu0 0.0
        %4440 = vmatprep.subr.mxu0 0.0
        %4441 = vmatpush1.msra.mxu0 0.0
        %4442 = vmatprep.subr.mxu0 0.0
        %4443 = vmatpush1.msra.mxu0 0.0
        %4444 = vmatprep.subr.mxu0 0.0
        %4445 = vmatpush1.msra.mxu0 0.0
        %4446 = vmatprep.subr.mxu0 0.0
        %4447 = vmatpush1.msra.mxu0 0.0
        %4448 = vmatprep.subr.mxu0 0.0
        %4449 = vmatpush1.msra.mxu0 0.0
        %4450 = vmatprep.subr.mxu0 0.0
        %4451 = vmatpush1.msra.mxu0 0.0
        %4452 = vmatprep.subr.mxu0 0.0
        %4453 = vmatpush1.msra.mxu0 0.0
        %4454 = vmatprep.subr.mxu0 0.0
        %4455 = vmatpush1.msra.mxu0 0.0
        %4456 = vmatprep.subr.mxu0 0.0
        %4457 = vmatpush1.msra.mxu0 0.0
        %4458 = vmatprep.subr.mxu0 0.0
        %4459 = vmatpush1.msra.mxu0 0.0
        %4460 = vmatprep.subr.mxu0 0.0
        %4461 = vmatpush1.msra.mxu0 0.0
        %4462 = vmatprep.subr.mxu0 0.0
        %4463 = vmatpush1.msra.mxu0 0.0
        %4464 = vmatprep.subr.mxu0 0.0
        %4465 = vmatpush1.msra.mxu0 0.0
        %4466 = vmatprep.subr.mxu0 0.0
        %4467 = vmatpush1.msra.mxu0 0.0
        %4468 = vmatprep.subr.mxu0 0.0
        %4469 = vmatpush1.msra.mxu0 0.0
        %4470 = vmatprep.subr.mxu0 0.0
        %4471 = vmatpush1.msra.mxu0 0.0
        %4472 = vmatprep.subr.mxu0 0.0
        %4473 = vmatpush1.msra.mxu0 0.0
        %4474 = vmatprep.subr.mxu0 0.0
        %4475 = vmatpush1.msra.mxu0 0.0
        %4476 = vmatprep.subr.mxu0 0.0
        %4477 = vmatpush1.msra.mxu0 0.0
        %4478 = vmatprep.subr.mxu0 0.0
        %4479 = vmatpush1.msra.mxu0 0.0
        %4480 = vmatprep.subr.mxu0 0.0
        %4481 = vmatpush1.msra.mxu0 0.0
        %4482 = vmatprep.subr.mxu0 0.0
        %4483 = vmatpush1.msra.mxu0 0.0
        %4484 = vmatprep.subr.mxu0 0.0
        %4485 = vmatpush1.msra.mxu0 0.0
        %4486 = vmatprep.subr.mxu0 0.0
        %4487 = vmatpush1.msra.mxu0 0.0
        %4488 = vmatprep.subr.mxu0 0.0
        %4489 = vmatpush1.msra.mxu0 0.0
        %4490 = vmatprep.mubr.f32.mxu0 0.0
        %4491 = vmatmul.mubr.f32.gmra.mrb[0].mxu0 %v4424
        %v4492 = vpop.f32.mrb[0].mxu0
        %v4493 = vadd.f32 0.0, %v4492
        %v4494 = vpop.f32.mrb[0].mxu0
        %4495 = vdwg.mxu0
        %v4496 = vlaneseq
        %v4497 = vshrl.u32 %v4496, 7
        %v4498 = vsub.s32 0, %v4497
        %v4499 = vrot.slane %v4493, %v4498
        %v4500 = vmul.f32 %v4209, %v4499
        %v4501 = vmul.f32 %v4210, %v4499
        %v4502 = vmul.f32 %v4211, %v4499
        %v4503 = vmul.f32 %v4212, %v4499
        %v4504 = vlaneseq
        %v4505 = vshrl.u32 %v4504, 7
        %v4506 = vsub.s32 1, %v4505
        %v4507 = vrot.slane %v4493, %v4506
        %v4508 = vadd.f32 %v4500, %v4507
        %v4509 = vadd.f32 %v4501, %v4507
        %v4510 = vadd.f32 %v4502, %v4507
        %v4511 = vadd.f32 %v4503, %v4507
        %4512 = vset.pattern.permute.xlu0 1
        %4513 = vperm.xlu0 %4512, %v4064
        %v4514 = vpop.permute.xlu0 %4513
        %4516 = vset.pattern.permute.xlu0 1
        %4517 = vperm.xlu0 %4516, %v4065
        %v4518 = vpop.permute.xlu0 %4517
        %4520 = vset.pattern.permute.xlu0 1
        %4521 = vperm.xlu0 %4520, %v4066
        %v4522 = vpop.permute.xlu0 %4521
        %4524 = vset.pattern.permute.xlu0 1
        %4525 = vperm.xlu0 %4524, %v4067
        %v4526 = vpop.permute.xlu0 %4525
        %v4528 = vmul.f32 %v4514, %v4508
        %v4529 = vmul.f32 %v4518, %v4509
        %v4530 = vmul.f32 %v4522, %v4510
        %v4531 = vmul.f32 %v4526, %v4511
        %4532 = vset.pattern.permute.xlu0 2
        %4533 = vperm.xlu0 %4532, %v4064
        %v4534 = vpop.permute.xlu0 %4533
        %4536 = vset.pattern.permute.xlu0 2
        %4537 = vperm.xlu0 %4536, %v4065
        %v4538 = vpop.permute.xlu0 %4537
        %4540 = vset.pattern.permute.xlu0 2
        %4541 = vperm.xlu0 %4540, %v4066
        %v4542 = vpop.permute.xlu0 %4541
        %4544 = vset.pattern.permute.xlu0 2
        %4545 = vperm.xlu0 %4544, %v4067
        %v4546 = vpop.permute.xlu0 %4545
        %v4548 = vadd.f32 %v4528, %v4534
        %v4549 = vadd.f32 %v4529, %v4538
        %v4550 = vadd.f32 %v4530, %v4542
        %v4551 = vadd.f32 %v4531, %v4546
        %4552 = vrot.lane.b32.xlu0 %v4548, 2
        %v4553 = vpop.permute.xlu0 %4552
        %4554 = vrot.lane.b32.xlu0 %v4549, 2
        %v4555 = vpop.permute.xlu0 %4554
        %4556 = vrot.lane.b32.xlu0 %v4550, 2
        %v4557 = vpop.permute.xlu0 %4556
        %4558 = vrot.lane.b32.xlu0 %v4551, 2
        %v4559 = vpop.permute.xlu0 %4558
        %v4560 = vmul.f32 %v4553, %v2445
        %v4561 = vmul.f32 %v4555, %v2445
        %v4562 = vmul.f32 %v4557, %v2445
        %v4563 = vmul.f32 %v4559, %v2445
        %4565 = vset.pattern.permute.xlu0 0
        %4566 = vperm.xlu0 %4565, %v4069
        %v4567 = vpop.permute.xlu0 %4566
        %4570 = vset.pattern.permute.xlu0 0
        %4571 = vperm.xlu0 %4570, %v4070
        %v4572 = vpop.permute.xlu0 %4571
        %4575 = vset.pattern.permute.xlu0 0
        %4576 = vperm.xlu0 %4575, %v4071
        %v4577 = vpop.permute.xlu0 %4576
        %4580 = vset.pattern.permute.xlu0 0
        %4581 = vperm.xlu0 %4580, %v4072
        %v4582 = vpop.permute.xlu0 %4581
        %v4584 = vmul.f32 %v4567, %v4560
        %v4585 = vmul.f32 %v4572, %v4561
        %v4586 = vmul.f32 %v4577, %v4562
        %v4587 = vmul.f32 %v4582, %v4563
        %4588 = vset.pattern.permute.xlu0 1
        %4589 = vperm.xlu0 %4588, %v4069
        %v4590 = vpop.permute.xlu0 %4589
        %4592 = vset.pattern.permute.xlu0 1
        %4593 = vperm.xlu0 %4592, %v4070
        %v4594 = vpop.permute.xlu0 %4593
        %4596 = vset.pattern.permute.xlu0 1
        %4597 = vperm.xlu0 %4596, %v4071
        %v4598 = vpop.permute.xlu0 %4597
        %4600 = vset.pattern.permute.xlu0 1
        %4601 = vperm.xlu0 %4600, %v4072
        %v4602 = vpop.permute.xlu0 %4601
        %v4604 = vmul.f32 %v4590, %v4548
        %v4605 = vmul.f32 %v4594, %v4549
        %v4606 = vmul.f32 %v4598, %v4550
        %v4607 = vmul.f32 %v4602, %v4551
        %v4608 = vadd.f32 %v4584, %v4604
        %v4609 = vadd.f32 %v4585, %v4605
        %v4610 = vadd.f32 %v4586, %v4606
        %v4611 = vadd.f32 %v4587, %v4607
        %4612 = vrot.lane.b32.xlu0 %v4548, 126
        %v4613 = vpop.permute.xlu0 %4612
        %4614 = vrot.lane.b32.xlu0 %v4549, 126
        %v4615 = vpop.permute.xlu0 %4614
        %4616 = vrot.lane.b32.xlu0 %v4550, 126
        %v4617 = vpop.permute.xlu0 %4616
        %4618 = vrot.lane.b32.xlu0 %v4551, 126
        %v4619 = vpop.permute.xlu0 %4618
        %v4620 = vmul.f32 %v4613, %v2509
        %v4621 = vmul.f32 %v4615, %v2509
        %v4622 = vmul.f32 %v4617, %v2509
        %v4623 = vmul.f32 %v4619, %v2509
        %4624 = vset.pattern.permute.xlu0 2
        %4625 = vperm.xlu0 %4624, %v4069
        %v4626 = vpop.permute.xlu0 %4625
        %4628 = vset.pattern.permute.xlu0 2
        %4629 = vperm.xlu0 %4628, %v4070
        %v4630 = vpop.permute.xlu0 %4629
        %4632 = vset.pattern.permute.xlu0 2
        %4633 = vperm.xlu0 %4632, %v4071
        %v4634 = vpop.permute.xlu0 %4633
        %4636 = vset.pattern.permute.xlu0 2
        %4637 = vperm.xlu0 %4636, %v4072
        %v4638 = vpop.permute.xlu0 %4637
        %v4640 = vmul.f32 %v4626, %v4620
        %v4641 = vmul.f32 %v4630, %v4621
        %v4642 = vmul.f32 %v4634, %v4622
        %v4643 = vmul.f32 %v4638, %v4623
        %v4644 = vadd.f32 %v4608, %v4640
        %v4645 = vadd.f32 %v4609, %v4641
        %v4646 = vadd.f32 %v4610, %v4642
        %v4647 = vadd.f32 %v4611, %v4643
        %4648 = vset.pattern.permute.xlu0 3
        %4649 = vperm.xlu0 %4648, %v4064
        %v4650 = vpop.permute.xlu0 %4649
        %4652 = vset.pattern.permute.xlu0 3
        %4653 = vperm.xlu0 %4652, %v4065
        %v4654 = vpop.permute.xlu0 %4653
        %4656 = vset.pattern.permute.xlu0 3
        %4657 = vperm.xlu0 %4656, %v4066
        %v4658 = vpop.permute.xlu0 %4657
        %4660 = vset.pattern.permute.xlu0 3
        %4661 = vperm.xlu0 %4660, %v4067
        %v4662 = vpop.permute.xlu0 %4661
        %v4664 = vadd.f32 %v4644, %v4650
        %v4665 = vadd.f32 %v4645, %v4654
        %v4666 = vadd.f32 %v4646, %v4658
        %v4667 = vadd.f32 %v4647, %v4662
        %vm4668 = vcmp.gt.f32.partialorder %v4664, 0.0
        %vm4669 = vcmp.gt.f32.partialorder %v4665, 0.0
        %vm4670 = vcmp.gt.f32.partialorder %v4666, 0.0
        %vm4671 = vcmp.gt.f32.partialorder %v4667, 0.0
        %v4672 = vstv %s4082
        %v4673 = vmul.f32 %v4672, %v4664
        %v4674 = vmul.f32 %v4672, %v4665
        %v4675 = vmul.f32 %v4672, %v4666
        %v4676 = vmul.f32 %v4672, %v4667
        %v4677 = vsel %vm4668, %v4664, %v4673
        %v4678 = vsel %vm4669, %v4665, %v4674
        %v4679 = vsel %vm4670, %v4666, %v4675
        %v4680 = vsel %vm4671, %v4667, %v4676
        %4681 = vmatprep.subr.mxu0 0.0
        %4682 = vmatpush1.msra.mxu0 %v504
        %4683 = vmatprep.subr.mxu0 0.0
        %4684 = vmatpush1.msra.mxu0 %v505
        %4685 = vmatprep.subr.mxu0 0.0
        %4686 = vmatpush1.msra.mxu0 %v506
        %4687 = vmatprep.subr.mxu0 0.0
        %4688 = vmatpush1.msra.mxu0 %v507
        %4689 = vmatprep.subr.mxu0 0.0
        %4690 = vmatpush1.msra.mxu0 %v508
        %4691 = vmatprep.subr.mxu0 0.0
        %4692 = vmatpush1.msra.mxu0 %v509
        %4693 = vmatprep.subr.mxu0 0.0
        %4694 = vmatpush1.msra.mxu0 %v510
        %4695 = vmatprep.subr.mxu0 0.0
        %4696 = vmatpush1.msra.mxu0 %v511
        %4697 = vmatprep.subr.mxu0 0.0
        %4698 = vmatpush1.msra.mxu0 %v512
        %4699 = vmatprep.subr.mxu0 0.0
        %4700 = vmatpush1.msra.mxu0 %v513
        %4701 = vmatprep.subr.mxu0 0.0
        %4702 = vmatpush1.msra.mxu0 %v514
        %4703 = vmatprep.subr.mxu0 0.0
        %4704 = vmatpush1.msra.mxu0 %v515
        %4705 = vmatprep.subr.mxu0 0.0
        %4706 = vmatpush1.msra.mxu0 %v516
        %4707 = vmatprep.subr.mxu0 0.0
        %4708 = vmatpush1.msra.mxu0 %v517
        %4709 = vmatprep.subr.mxu0 0.0
        %4710 = vmatpush1.msra.mxu0 %v518
        %4711 = vmatprep.subr.mxu0 0.0
        %4712 = vmatpush1.msra.mxu0 %v519
        %4713 = vmatprep.subr.mxu0 0.0
        %4714 = vmatpush1.msra.mxu0 0.0
        %4715 = vmatprep.subr.mxu0 0.0
        %4716 = vmatpush1.msra.mxu0 0.0
        %4717 = vmatprep.subr.mxu0 0.0
        %4718 = vmatpush1.msra.mxu0 0.0
        %4719 = vmatprep.subr.mxu0 0.0
        %4720 = vmatpush1.msra.mxu0 0.0
        %4721 = vmatprep.subr.mxu0 0.0
        %4722 = vmatpush1.msra.mxu0 0.0
        %4723 = vmatprep.subr.mxu0 0.0
        %4724 = vmatpush1.msra.mxu0 0.0
        %4725 = vmatprep.subr.mxu0 0.0
        %4726 = vmatpush1.msra.mxu0 0.0
        %4727 = vmatprep.subr.mxu0 0.0
        %4728 = vmatpush1.msra.mxu0 0.0
        %4729 = vmatprep.subr.mxu0 0.0
        %4730 = vmatpush1.msra.mxu0 0.0
        %4731 = vmatprep.subr.mxu0 0.0
        %4732 = vmatpush1.msra.mxu0 0.0
        %4733 = vmatprep.subr.mxu0 0.0
        %4734 = vmatpush1.msra.mxu0 0.0
        %4735 = vmatprep.subr.mxu0 0.0
        %4736 = vmatpush1.msra.mxu0 0.0
        %4737 = vmatprep.subr.mxu0 0.0
        %4738 = vmatpush1.msra.mxu0 0.0
        %4739 = vmatprep.subr.mxu0 0.0
        %4740 = vmatpush1.msra.mxu0 0.0
        %4741 = vmatprep.subr.mxu0 0.0
        %4742 = vmatpush1.msra.mxu0 0.0
        %4743 = vmatprep.subr.mxu0 0.0
        %4744 = vmatpush1.msra.mxu0 0.0
        %4745 = vmatprep.mubr.f32.mxu0 0.0
        %4746 = vmatmul.mubr.f32.gmra.mrb[0].mxu0 %v4677
        %v4747 = vpop.f32.mrb[0].mxu0
        %v4748 = vadd.f32 0.0, %v4747
        %v4749 = vpop.f32.mrb[0].mxu0
        %4750 = vmatprep.mubr.f32.mxu0 0.0
        %4751 = vmatmul.mubr.f32.gmra.mrb[0].mxu0 %v4678
        %v4752 = vpop.f32.mrb[0].mxu0
        %v4753 = vadd.f32 0.0, %v4752
        %v4754 = vpop.f32.mrb[0].mxu0
        %4755 = vmatprep.mubr.f32.mxu0 0.0
        %4756 = vmatmul.mubr.f32.gmra.mrb[0].mxu0 %v4679
        %v4757 = vpop.f32.mrb[0].mxu0
        %v4758 = vadd.f32 0.0, %v4757
        %v4759 = vpop.f32.mrb[0].mxu0
        %4760 = vmatprep.mubr.f32.mxu0 0.0
        %4761 = vmatmul.mubr.f32.gmra.mrb[0].mxu0 %v4680
        %v4762 = vpop.f32.mrb[0].mxu0
        %v4763 = vadd.f32 0.0, %v4762
        %v4764 = vpop.f32.mrb[0].mxu0
        %4765 = vdwg.mxu0
        %v4766 = vmul.f32 %v4677, %v4677
        %v4767 = vmul.f32 %v4678, %v4678
        %v4768 = vmul.f32 %v4679, %v4679
        %v4769 = vmul.f32 %v4680, %v4680
        %4770 = vmatprep.subr.mxu0 0.0
        %4771 = vmatpush1.msra.mxu0 %v504
        %4772 = vmatprep.subr.mxu0 0.0
        %4773 = vmatpush1.msra.mxu0 %v505
        %4774 = vmatprep.subr.mxu0 0.0
        %4775 = vmatpush1.msra.mxu0 %v506
        %4776 = vmatprep.subr.mxu0 0.0
        %4777 = vmatpush1.msra.mxu0 %v507
        %4778 = vmatprep.subr.mxu0 0.0
        %4779 = vmatpush1.msra.mxu0 %v508
        %4780 = vmatprep.subr.mxu0 0.0
        %4781 = vmatpush1.msra.mxu0 %v509
        %4782 = vmatprep.subr.mxu0 0.0
        %4783 = vmatpush1.msra.mxu0 %v510
        %4784 = vmatprep.subr.mxu0 0.0
        %4785 = vmatpush1.msra.mxu0 %v511
        %4786 = vmatprep.subr.mxu0 0.0
        %4787 = vmatpush1.msra.mxu0 %v512
        %4788 = vmatprep.subr.mxu0 0.0
        %4789 = vmatpush1.msra.mxu0 %v513
        %4790 = vmatprep.subr.mxu0 0.0
        %4791 = vmatpush1.msra.mxu0 %v514
        %4792 = vmatprep.subr.mxu0 0.0
        %4793 = vmatpush1.msra.mxu0 %v515
        %4794 = vmatprep.subr.mxu0 0.0
        %4795 = vmatpush1.msra.mxu0 %v516
        %4796 = vmatprep.subr.mxu0 0.0
        %4797 = vmatpush1.msra.mxu0 %v517
        %4798 = vmatprep.subr.mxu0 0.0
        %4799 = vmatpush1.msra.mxu0 %v518
        %4800 = vmatprep.subr.mxu0 0.0
        %4801 = vmatpush1.msra.mxu0 %v519
        %4802 = vmatprep.subr.mxu0 0.0
        %4803 = vmatpush1.msra.mxu0 0.0
        %4804 = vmatprep.subr.mxu0 0.0
        %4805 = vmatpush1.msra.mxu0 0.0
        %4806 = vmatprep.subr.mxu0 0.0
        %4807 = vmatpush1.msra.mxu0 0.0
        %4808 = vmatprep.subr.mxu0 0.0
        %4809 = vmatpush1.msra.mxu0 0.0
        %4810 = vmatprep.subr.mxu0 0.0
        %4811 = vmatpush1.msra.mxu0 0.0
        %4812 = vmatprep.subr.mxu0 0.0
        %4813 = vmatpush1.msra.mxu0 0.0
        %4814 = vmatprep.subr.mxu0 0.0
        %4815 = vmatpush1.msra.mxu0 0.0
        %4816 = vmatprep.subr.mxu0 0.0
        %4817 = vmatpush1.msra.mxu0 0.0
        %4818 = vmatprep.subr.mxu0 0.0
        %4819 = vmatpush1.msra.mxu0 0.0
        %4820 = vmatprep.subr.mxu0 0.0
        %4821 = vmatpush1.msra.mxu0 0.0
        %4822 = vmatprep.subr.mxu0 0.0
        %4823 = vmatpush1.msra.mxu0 0.0
        %4824 = vmatprep.subr.mxu0 0.0
        %4825 = vmatpush1.msra.mxu0 0.0
        %4826 = vmatprep.subr.mxu0 0.0
        %4827 = vmatpush1.msra.mxu0 0.0
        %4828 = vmatprep.subr.mxu0 0.0
        %4829 = vmatpush1.msra.mxu0 0.0
        %4830 = vmatprep.subr.mxu0 0.0
        %4831 = vmatpush1.msra.mxu0 0.0
        %4832 = vmatprep.subr.mxu0 0.0
        %4833 = vmatpush1.msra.mxu0 0.0
        %4834 = vmatprep.mubr.f32.mxu0 0.0
        %4835 = vmatmul.mubr.f32.gmra.mrb[0].mxu0 %v4766
        %v4836 = vpop.f32.mrb[0].mxu0
        %v4837 = vadd.f32 0.0, %v4836
        %v4838 = vpop.f32.mrb[0].mxu0
        %4839 = vmatprep.mubr.f32.mxu0 0.0
        %4840 = vmatmul.mubr.f32.gmra.mrb[0].mxu0 %v4767
        %v4841 = vpop.f32.mrb[0].mxu0
        %v4842 = vadd.f32 0.0, %v4841
        %v4843 = vpop.f32.mrb[0].mxu0
        %4844 = vmatprep.mubr.f32.mxu0 0.0
        %4845 = vmatmul.mubr.f32.gmra.mrb[0].mxu0 %v4768
        %v4846 = vpop.f32.mrb[0].mxu0
        %v4847 = vadd.f32 0.0, %v4846
        %v4848 = vpop.f32.mrb[0].mxu0
        %4849 = vmatprep.mubr.f32.mxu0 0.0
        %4850 = vmatmul.mubr.f32.gmra.mrb[0].mxu0 %v4769
        %v4851 = vpop.f32.mrb[0].mxu0
        %v4852 = vadd.f32 0.0, %v4851
        %v4853 = vpop.f32.mrb[0].mxu0
        %4854 = vdwg.mxu0
        %v4855 = vsel %vm665, %v4748, 0.0
        %v4856 = vsel %vm665, %v4753, 0.0
        %v4857 = vadd.f32 %v4855, %v4856
        %v4858 = vsel %vm665, %v4758, 0.0
        %v4859 = vadd.f32 %v4857, %v4858
        %v4860 = vsel %vm665, %v4763, 0.0
        %v4861 = vadd.f32 %v4859, %v4860
        %v4862 = vrot.slane %v4861, 4
        %v4863 = vadd.f32 %v4861, %v4862
        %v4864 = vrot.slane %v4863, 2
        %v4865 = vadd.f32 %v4863, %v4864
        %v4866 = vrot.slane %v4865, 1
        %v4867 = vadd.f32 %v4865, %v4866
        %v4868 = vsel %vm665, %v4837, 0.0
        %v4869 = vsel %vm665, %v4842, 0.0
        %v4870 = vadd.f32 %v4868, %v4869
        %v4871 = vsel %vm665, %v4847, 0.0
        %v4872 = vadd.f32 %v4870, %v4871
        %v4873 = vsel %vm665, %v4852, 0.0
        %v4874 = vadd.f32 %v4872, %v4873
        %v4875 = vrot.slane %v4874, 4
        %v4876 = vadd.f32 %v4874, %v4875
        %v4877 = vrot.slane %v4876, 2
        %v4878 = vadd.f32 %v4876, %v4877
        %v4879 = vrot.slane %v4878, 1
        %v4880 = vadd.f32 %v4878, %v4879
        %v4881 = vmul.f32 %v4867, 0.0009765625
        %v4882 = vmul.f32 %v4880, 0.0009765625
        %v4883 = vmul.f32 %v4881, %v4881
        %v4884 = vsub.f32 %v4882, %v4883
        %v4885 = vmax.f32 %v4884, 0.0
        %v4886 = vadd.f32 %v4885, 1e-08
        %v4887 = vrsqrt.pop %v4886
        %v4888 = vsub.f32 0.0, %v4881
        %v4889 = vmul.f32 %v4888, %v4887
        %v4890 = vsel %vm689, %v4887, %v4889
        %v4892 = vsel %vm665, %v4890, 0
        %4894 = vmatprep.subr.mxu0 0.0
        %4895 = vmatpush1.msra.mxu0 %v696
        %4896 = vmatprep.subr.mxu0 0.0
        %4897 = vmatpush1.msra.mxu0 0.0
        %4898 = vmatprep.subr.mxu0 0.0
        %4899 = vmatpush1.msra.mxu0 0.0
        %4900 = vmatprep.subr.mxu0 0.0
        %4901 = vmatpush1.msra.mxu0 0.0
        %4902 = vmatprep.subr.mxu0 0.0
        %4903 = vmatpush1.msra.mxu0 0.0
        %4904 = vmatprep.subr.mxu0 0.0
        %4905 = vmatpush1.msra.mxu0 0.0
        %4906 = vmatprep.subr.mxu0 0.0
        %4907 = vmatpush1.msra.mxu0 0.0
        %4908 = vmatprep.subr.mxu0 0.0
        %4909 = vmatpush1.msra.mxu0 0.0
        %4910 = vmatprep.subr.mxu0 0.0
        %4911 = vmatpush1.msra.mxu0 0.0
        %4912 = vmatprep.subr.mxu0 0.0
        %4913 = vmatpush1.msra.mxu0 0.0
        %4914 = vmatprep.subr.mxu0 0.0
        %4915 = vmatpush1.msra.mxu0 0.0
        %4916 = vmatprep.subr.mxu0 0.0
        %4917 = vmatpush1.msra.mxu0 0.0
        %4918 = vmatprep.subr.mxu0 0.0
        %4919 = vmatpush1.msra.mxu0 0.0
        %4920 = vmatprep.subr.mxu0 0.0
        %4921 = vmatpush1.msra.mxu0 0.0
        %4922 = vmatprep.subr.mxu0 0.0
        %4923 = vmatpush1.msra.mxu0 0.0
        %4924 = vmatprep.subr.mxu0 0.0
        %4925 = vmatpush1.msra.mxu0 0.0
        %4926 = vmatprep.subr.mxu0 0.0
        %4927 = vmatpush1.msra.mxu0 0.0
        %4928 = vmatprep.subr.mxu0 0.0
        %4929 = vmatpush1.msra.mxu0 0.0
        %4930 = vmatprep.subr.mxu0 0.0
        %4931 = vmatpush1.msra.mxu0 0.0
        %4932 = vmatprep.subr.mxu0 0.0
        %4933 = vmatpush1.msra.mxu0 0.0
        %4934 = vmatprep.subr.mxu0 0.0
        %4935 = vmatpush1.msra.mxu0 0.0
        %4936 = vmatprep.subr.mxu0 0.0
        %4937 = vmatpush1.msra.mxu0 0.0
        %4938 = vmatprep.subr.mxu0 0.0
        %4939 = vmatpush1.msra.mxu0 0.0
        %4940 = vmatprep.subr.mxu0 0.0
        %4941 = vmatpush1.msra.mxu0 0.0
        %4942 = vmatprep.subr.mxu0 0.0
        %4943 = vmatpush1.msra.mxu0 0.0
        %4944 = vmatprep.subr.mxu0 0.0
        %4945 = vmatpush1.msra.mxu0 0.0
        %4946 = vmatprep.subr.mxu0 0.0
        %4947 = vmatpush1.msra.mxu0 0.0
        %4948 = vmatprep.subr.mxu0 0.0
        %4949 = vmatpush1.msra.mxu0 0.0
        %4950 = vmatprep.subr.mxu0 0.0
        %4951 = vmatpush1.msra.mxu0 0.0
        %4952 = vmatprep.subr.mxu0 0.0
        %4953 = vmatpush1.msra.mxu0 0.0
        %4954 = vmatprep.subr.mxu0 0.0
        %4955 = vmatpush1.msra.mxu0 0.0
        %4956 = vmatprep.subr.mxu0 0.0
        %4957 = vmatpush1.msra.mxu0 0.0
        %4958 = vmatprep.mubr.f32.mxu0 0.0
        %4959 = vmatmul.mubr.f32.gmra.mrb[0].mxu0 %v4892
        %v4960 = vpop.f32.mrb[0].mxu0
        %v4961 = vadd.f32 0.0, %v4960
        %v4962 = vpop.f32.mrb[0].mxu0
        %4963 = vdwg.mxu0
        %v4964 = vlaneseq
        %v4965 = vshrl.u32 %v4964, 7
        %v4966 = vsub.s32 0, %v4965
        %v4967 = vrot.slane %v4961, %v4966
        %v4968 = vmul.f32 %v4677, %v4967
        %v4969 = vmul.f32 %v4678, %v4967
        %v4970 = vmul.f32 %v4679, %v4967
        %v4971 = vmul.f32 %v4680, %v4967
        %v4972 = vlaneseq
        %v4973 = vshrl.u32 %v4972, 7
        %v4974 = vsub.s32 1, %v4973
        %v4975 = vrot.slane %v4961, %v4974
        %v4976 = vadd.f32 %v4968, %v4975
        %v4977 = vadd.f32 %v4969, %v4975
        %v4978 = vadd.f32 %v4970, %v4975
        %v4979 = vadd.f32 %v4971, %v4975
        %4980 = vset.pattern.permute.xlu0 4
        %4981 = vperm.xlu0 %4980, %v4064
        %v4982 = vpop.permute.xlu0 %4981
        %4984 = vset.pattern.permute.xlu0 4
        %4985 = vperm.xlu0 %4984, %v4065
        %v4986 = vpop.permute.xlu0 %4985
        %4988 = vset.pattern.permute.xlu0 4
        %4989 = vperm.xlu0 %4988, %v4066
        %v4990 = vpop.permute.xlu0 %4989
        %4992 = vset.pattern.permute.xlu0 4
        %4993 = vperm.xlu0 %4992, %v4067
        %v4994 = vpop.permute.xlu0 %4993
        %v4996 = vmul.f32 %v4982, %v4976
        %v4997 = vmul.f32 %v4986, %v4977
        %v4998 = vmul.f32 %v4990, %v4978
        %v4999 = vmul.f32 %v4994, %v4979
        %5000 = vset.pattern.permute.xlu0 5
        %5001 = vperm.xlu0 %5000, %v4064
        %v5002 = vpop.permute.xlu0 %5001
        %5004 = vset.pattern.permute.xlu0 5
        %5005 = vperm.xlu0 %5004, %v4065
        %v5006 = vpop.permute.xlu0 %5005
        %5008 = vset.pattern.permute.xlu0 5
        %5009 = vperm.xlu0 %5008, %v4066
        %v5010 = vpop.permute.xlu0 %5009
        %5012 = vset.pattern.permute.xlu0 5
        %5013 = vperm.xlu0 %5012, %v4067
        %v5014 = vpop.permute.xlu0 %5013
        %v5016 = vadd.f32 %v4996, %v5002
        %v5017 = vadd.f32 %v4997, %v5006
        %v5018 = vadd.f32 %v4998, %v5010
        %v5019 = vadd.f32 %v4999, %v5014
        %v5021 = vsel %vm1847, %v4079, 0
        %v5024 = vsel %vm1847, %v4080, 0
        %5026 = vmatprep.subr.mxu0 0.0
        %5027 = vmatpush1.msra.mxu0 %v5016
        %5028 = vmatprep.subr.mxu0 0.0
        %5029 = vmatpush1.msra.mxu0 %v5017
        %5030 = vmatprep.subr.mxu0 0.0
        %5031 = vmatpush1.msra.mxu0 %v5018
        %5032 = vmatprep.subr.mxu0 0.0
        %5033 = vmatpush1.msra.mxu0 %v5019
        %5034 = vmatprep.subr.mxu0 0.0
        %5035 = vmatpush1.msra.mxu0 0.0
        %5036 = vmatprep.subr.mxu0 0.0
        %5037 = vmatpush1.msra.mxu0 0.0
        %5038 = vmatprep.subr.mxu0 0.0
        %5039 = vmatpush1.msra.mxu0 0.0
        %5040 = vmatprep.subr.mxu0 0.0
        %5041 = vmatpush1.msra.mxu0 0.0
        %5042 = vmatprep.subr.mxu0 0.0
        %5043 = vmatpush1.msra.mxu0 0.0
        %5044 = vmatprep.subr.mxu0 0.0
        %5045 = vmatpush1.msra.mxu0 0.0
        %5046 = vmatprep.subr.mxu0 0.0
        %5047 = vmatpush1.msra.mxu0 0.0
        %5048 = vmatprep.subr.mxu0 0.0
        %5049 = vmatpush1.msra.mxu0 0.0
        %5050 = vmatprep.subr.mxu0 0.0
        %5051 = vmatpush1.msra.mxu0 0.0
        %5052 = vmatprep.subr.mxu0 0.0
        %5053 = vmatpush1.msra.mxu0 0.0
        %5054 = vmatprep.subr.mxu0 0.0
        %5055 = vmatpush1.msra.mxu0 0.0
        %5056 = vmatprep.subr.mxu0 0.0
        %5057 = vmatpush1.msra.mxu0 0.0
        %5058 = vmatprep.subr.mxu0 0.0
        %5059 = vmatpush1.msra.mxu0 0.0
        %5060 = vmatprep.subr.mxu0 0.0
        %5061 = vmatpush1.msra.mxu0 0.0
        %5062 = vmatprep.subr.mxu0 0.0
        %5063 = vmatpush1.msra.mxu0 0.0
        %5064 = vmatprep.subr.mxu0 0.0
        %5065 = vmatpush1.msra.mxu0 0.0
        %5066 = vmatprep.subr.mxu0 0.0
        %5067 = vmatpush1.msra.mxu0 0.0
        %5068 = vmatprep.subr.mxu0 0.0
        %5069 = vmatpush1.msra.mxu0 0.0
        %5070 = vmatprep.subr.mxu0 0.0
        %5071 = vmatpush1.msra.mxu0 0.0
        %5072 = vmatprep.subr.mxu0 0.0
        %5073 = vmatpush1.msra.mxu0 0.0
        %5074 = vmatprep.subr.mxu0 0.0
        %5075 = vmatpush1.msra.mxu0 0.0
        %5076 = vmatprep.subr.mxu0 0.0
        %5077 = vmatpush1.msra.mxu0 0.0
        %5078 = vmatprep.subr.mxu0 0.0
        %5079 = vmatpush1.msra.mxu0 0.0
        %5080 = vmatprep.subr.mxu0 0.0
        %5081 = vmatpush1.msra.mxu0 0.0
        %5082 = vmatprep.subr.mxu0 0.0
        %5083 = vmatpush1.msra.mxu0 0.0
        %5084 = vmatprep.subr.mxu0 0.0
        %5085 = vmatpush1.msra.mxu0 0.0
        %5086 = vmatprep.subr.mxu0 0.0
        %5087 = vmatpush1.msra.mxu0 0.0
        %5088 = vmatprep.subr.mxu0 0.0
        %5089 = vmatpush1.msra.mxu0 0.0
        %5090 = vmatprep.mubr.f32.mxu0 0.0
        %5091 = vmatmul.mubr.f32.gmra.mrb[0].mxu0 %v5021
        %v5092 = vpop.f32.mrb[0].mxu0
        %v5093 = vadd.f32 0.0, %v5092
        %v5094 = vpop.f32.mrb[0].mxu0
        %5095 = vmatprep.mubr.f32.mxu0 0.0
        %5096 = vmatmul.mubr.f32.gmra.mrb[0].mxu0 %v5024
        %v5097 = vpop.f32.mrb[0].mxu0
        %v5098 = vadd.f32 0.0, %v5097
        %v5099 = vpop.f32.mrb[0].mxu0
        %5100 = vdwg.mxu0
        %v5101 = vadd.f32 %v4061, %v5093
        %v5102 = vadd.f32 %v4062, %v5098
        %s5103 = scalar_lea.vmem %s12, 48
        %v5104 = vld [vmem:[%s5103] sm:$0xff]
        %v5105 = vld [vmem:[%s5103 + $0x8] sm:$0xff]
        %5107 = vset.pattern.permute.xlu0 0
        %5108 = vperm.xlu0 %5107, %v5104
        %v5109 = vpop.permute.xlu0 %5108
        %5112 = vset.pattern.permute.xlu0 0
        %5113 = vperm.xlu0 %5112, %v5105
        %v5114 = vpop.permute.xlu0 %5113
        %v5116 = vadd.f32 %v5101, %v5109
        %v5117 = vadd.f32 %v5102, %v5114
        %5118 = vmatprep.subr.mxu0 0.0
        %5119 = vmatpush1.msra.mxu0 %v504
        %5120 = vmatprep.subr.mxu0 0.0
        %5121 = vmatpush1.msra.mxu0 %v505
        %5122 = vmatprep.subr.mxu0 0.0
        %5123 = vmatpush1.msra.mxu0 %v506
        %5124 = vmatprep.subr.mxu0 0.0
        %5125 = vmatpush1.msra.mxu0 %v507
        %5126 = vmatprep.subr.mxu0 0.0
        %5127 = vmatpush1.msra.mxu0 %v508
        %5128 = vmatprep.subr.mxu0 0.0
        %5129 = vmatpush1.msra.mxu0 %v509
        %5130 = vmatprep.subr.mxu0 0.0
        %5131 = vmatpush1.msra.mxu0 %v510
        %5132 = vmatprep.subr.mxu0 0.0
        %5133 = vmatpush1.msra.mxu0 %v511
        %5134 = vmatprep.subr.mxu0 0.0
        %5135 = vmatpush1.msra.mxu0 %v512
        %5136 = vmatprep.subr.mxu0 0.0
        %5137 = vmatpush1.msra.mxu0 %v513
        %5138 = vmatprep.subr.mxu0 0.0
        %5139 = vmatpush1.msra.mxu0 %v514
        %5140 = vmatprep.subr.mxu0 0.0
        %5141 = vmatpush1.msra.mxu0 %v515
        %5142 = vmatprep.subr.mxu0 0.0
        %5143 = vmatpush1.msra.mxu0 %v516
        %5144 = vmatprep.subr.mxu0 0.0
        %5145 = vmatpush1.msra.mxu0 %v517
        %5146 = vmatprep.subr.mxu0 0.0
        %5147 = vmatpush1.msra.mxu0 %v518
        %5148 = vmatprep.subr.mxu0 0.0
        %5149 = vmatpush1.msra.mxu0 %v519
        %5150 = vmatprep.subr.mxu0 0.0
        %5151 = vmatpush1.msra.mxu0 0.0
        %5152 = vmatprep.subr.mxu0 0.0
        %5153 = vmatpush1.msra.mxu0 0.0
        %5154 = vmatprep.subr.mxu0 0.0
        %5155 = vmatpush1.msra.mxu0 0.0
        %5156 = vmatprep.subr.mxu0 0.0
        %5157 = vmatpush1.msra.mxu0 0.0
        %5158 = vmatprep.subr.mxu0 0.0
        %5159 = vmatpush1.msra.mxu0 0.0
        %5160 = vmatprep.subr.mxu0 0.0
        %5161 = vmatpush1.msra.mxu0 0.0
        %5162 = vmatprep.subr.mxu0 0.0
        %5163 = vmatpush1.msra.mxu0 0.0
        %5164 = vmatprep.subr.mxu0 0.0
        %5165 = vmatpush1.msra.mxu0 0.0
        %5166 = vmatprep.subr.mxu0 0.0
        %5167 = vmatpush1.msra.mxu0 0.0
        %5168 = vmatprep.subr.mxu0 0.0
        %5169 = vmatpush1.msra.mxu0 0.0
        %5170 = vmatprep.subr.mxu0 0.0
        %5171 = vmatpush1.msra.mxu0 0.0
        %5172 = vmatprep.subr.mxu0 0.0
        %5173 = vmatpush1.msra.mxu0 0.0
        %5174 = vmatprep.subr.mxu0 0.0
        %5175 = vmatpush1.msra.mxu0 0.0
        %5176 = vmatprep.subr.mxu0 0.0
        %5177 = vmatpush1.msra.mxu0 0.0
        %5178 = vmatprep.subr.mxu0 0.0
        %5179 = vmatpush1.msra.mxu0 0.0
        %5180 = vmatprep.subr.mxu0 0.0
        %5181 = vmatpush1.msra.mxu0 0.0
        %5182 = vmatprep.mubr.f32.mxu0 0.0
        %5183 = vmatmul.mubr.f32.gmra.mrb[0].mxu0 %v5116
        %v5184 = vpop.f32.mrb[0].mxu0
        %v5185 = vadd.f32 0.0, %v5184
        %v5186 = vpop.f32.mrb[0].mxu0
        %5187 = vmatprep.mubr.f32.mxu0 0.0
        %5188 = vmatmul.mubr.f32.gmra.mrb[0].mxu0 %v5117
        %v5189 = vpop.f32.mrb[0].mxu0
        %v5190 = vadd.f32 0.0, %v5189
        %v5191 = vpop.f32.mrb[0].mxu0
        %5192 = vdwg.mxu0
        %v5193 = vmul.f32 %v5185, 0.03125
        %v5194 = vmul.f32 %v5190, 0.03125
        %s5195 = sld [smem:[#allocation2 + $0x8]]
        %vm5196 = vcmp.gt.f32.partialorder %v5193, 0.0
        %vm5197 = vcmp.gt.f32.partialorder %v5194, 0.0
        %v5198 = vstv %s5195
        %v5199 = vmul.f32 %v5198, %v5193
        %v5200 = vmul.f32 %v5198, %v5194
        %v5201 = vsel %vm5196, %v5193, %v5199
        %v5202 = vsel %vm5197, %v5194, %v5200
        %v5203 = vld [vmem:[%s13] sm:$0xff]
        %v5204 = vld [vmem:[%s13 + $0x8] sm:$0xff]
        %v5205 = vld [vmem:[%s14] sm:$0x1]
        %v5207 = vlaneseq
        %v5208 = vshrl.u32 %v5207, 7
        %v5209 = vsub.s32 0, %v5208
        %v5210 = vrot.slane %v5205, %v5209
        %5212 = vxpose.xlu0.b32.start [1/16] %v5201, 128
        %5213 = vxpose.xlu0.b32.cont [2/16] %v5202, 128
        %5214 = vxpose.xlu0.b32.cont [3/16] 0.0, 128
        %5215 = vxpose.xlu0.b32.cont [4/16] 0.0, 128
        %5216 = vxpose.xlu0.b32.cont [5/16] 0.0, 128
        %5217 = vxpose.xlu0.b32.cont [6/16] 0.0, 128
        %5218 = vxpose.xlu0.b32.cont [7/16] 0.0, 128
        %5219 = vxpose.xlu0.b32.cont [8/16] 0.0, 128
        %5220 = vxpose.xlu0.b32.cont [9/16] 0.0, 128
        %5221 = vxpose.xlu0.b32.cont [10/16] 0.0, 128
        %5222 = vxpose.xlu0.b32.cont [11/16] 0.0, 128
        %5223 = vxpose.xlu0.b32.cont [12/16] 0.0, 128
        %5224 = vxpose.xlu0.b32.cont [13/16] 0.0, 128
        %5225 = vxpose.xlu0.b32.cont [14/16] 0.0, 128
        %5226 = vxpose.xlu0.b32.cont [15/16] 0.0, 128
        %5227 = vxpose.xlu0.b32.end [16/16] 0.0, 128
        %v5228 = vpop.trf.xlu0
        %v5229 = vpop.trf.xlu0
        %v5230 = vpop.trf.xlu0
        %v5231 = vpop.trf.xlu0
        %v5232 = vpop.trf.xlu0
        %v5233 = vpop.trf.xlu0
        %v5234 = vpop.trf.xlu0
        %v5235 = vpop.trf.xlu0
        %v5236 = vpop.trf.xlu0
        %v5237 = vpop.trf.xlu0
        %v5238 = vpop.trf.xlu0
        %v5239 = vpop.trf.xlu0
        %v5240 = vpop.trf.xlu0
        %v5241 = vpop.trf.xlu0
        %v5242 = vpop.trf.xlu0
        %v5243 = vpop.trf.xlu0
        %v5245 = vsel %vm921, %v5228, 0
        %5247 = vmatprep.subr.mxu0 0.0
        %5248 = vmatpush1.msra.mxu0 %v5203
        %5249 = vmatprep.subr.mxu0 0.0
        %5250 = vmatpush1.msra.mxu0 %v5204
        %5251 = vmatprep.subr.mxu0 0.0
        %5252 = vmatpush1.msra.mxu0 0.0
        %5253 = vmatprep.subr.mxu0 0.0
        %5254 = vmatpush1.msra.mxu0 0.0
        %5255 = vmatprep.subr.mxu0 0.0
        %5256 = vmatpush1.msra.mxu0 0.0
        %5257 = vmatprep.subr.mxu0 0.0
        %5258 = vmatpush1.msra.mxu0 0.0
        %5259 = vmatprep.subr.mxu0 0.0
        %5260 = vmatpush1.msra.mxu0 0.0
        %5261 = vmatprep.subr.mxu0 0.0
        %5262 = vmatpush1.msra.mxu0 0.0
        %5263 = vmatprep.subr.mxu0 0.0
        %5264 = vmatpush1.msra.mxu0 0.0
        %5265 = vmatprep.subr.mxu0 0.0
        %5266 = vmatpush1.msra.mxu0 0.0
        %5267 = vmatprep.subr.mxu0 0.0
        %5268 = vmatpush1.msra.mxu0 0.0
        %5269 = vmatprep.subr.mxu0 0.0
        %5270 = vmatpush1.msra.mxu0 0.0
        %5271 = vmatprep.subr.mxu0 0.0
        %5272 = vmatpush1.msra.mxu0 0.0
        %5273 = vmatprep.subr.mxu0 0.0
        %5274 = vmatpush1.msra.mxu0 0.0
        %5275 = vmatprep.subr.mxu0 0.0
        %5276 = vmatpush1.msra.mxu0 0.0
        %5277 = vmatprep.subr.mxu0 0.0
        %5278 = vmatpush1.msra.mxu0 0.0
        %5279 = vmatprep.subr.mxu0 0.0
        %5280 = vmatpush1.msra.mxu0 0.0
        %5281 = vmatprep.subr.mxu0 0.0
        %5282 = vmatpush1.msra.mxu0 0.0
        %5283 = vmatprep.subr.mxu0 0.0
        %5284 = vmatpush1.msra.mxu0 0.0
        %5285 = vmatprep.subr.mxu0 0.0
        %5286 = vmatpush1.msra.mxu0 0.0
        %5287 = vmatprep.subr.mxu0 0.0
        %5288 = vmatpush1.msra.mxu0 0.0
        %5289 = vmatprep.subr.mxu0 0.0
        %5290 = vmatpush1.msra.mxu0 0.0
        %5291 = vmatprep.subr.mxu0 0.0
        %5292 = vmatpush1.msra.mxu0 0.0
        %5293 = vmatprep.subr.mxu0 0.0
        %5294 = vmatpush1.msra.mxu0 0.0
        %5295 = vmatprep.subr.mxu0 0.0
        %5296 = vmatpush1.msra.mxu0 0.0
        %5297 = vmatprep.subr.mxu0 0.0
        %5298 = vmatpush1.msra.mxu0 0.0
        %5299 = vmatprep.subr.mxu0 0.0
        %5300 = vmatpush1.msra.mxu0 0.0
        %5301 = vmatprep.subr.mxu0 0.0
        %5302 = vmatpush1.msra.mxu0 0.0
        %5303 = vmatprep.subr.mxu0 0.0
        %5304 = vmatpush1.msra.mxu0 0.0
        %5305 = vmatprep.subr.mxu0 0.0
        %5306 = vmatpush1.msra.mxu0 0.0
        %5307 = vmatprep.subr.mxu0 0.0
        %5308 = vmatpush1.msra.mxu0 0.0
        %5309 = vmatprep.subr.mxu0 0.0
        %5310 = vmatpush1.msra.mxu0 0.0
        %5311 = vmatprep.mubr.f32.mxu0 0.0
        %5312 = vmatmul.mubr.f32.gmra.mrb[0].mxu0 %v5245
        %v5313 = vpop.f32.mrb[0].mxu0
        %v5314 = vadd.f32 %v5210, %v5313
        %v5315 = vpop.f32.mrb[0].mxu0
        %5316 = vdwg.mxu0
        %5317 = vst [vmem:[%s499] sm:$0xf] %v5314
        %s5318 = sand.u32 %s358, 1
        %s5319 = scalar_lea.sflag [#allocation3], %s5318
        %s5320 = sand.u32 %s358, 1
        %s5321 = smul.addr %s5320, 4
        %s5322 = scalar_lea.vmem [#allocation5], %s5321
        // Predicated region
        $region85: #{tpu_custom_call.1} parent=79 // pred_check
          %p5323 = pneg %p368
        $region86: #{tpu_custom_call.1} parent=79 // pred_check_branch
          %5325 = sbr.rel (%p5323) target = $region88
        $region87: #{tpu_custom_call.1} parent=79 // pred_region
          %s5327 = ssub.s32 64, 64
          %5328 = vsyncadd %s5319, %s5327
          %s5329 = smul.addr %s30, 64
          %s5330 = scalar_lea.hbm %s15, %s5329
          %s5332 = sshll.u32 %s5322, 4
          %s5333 = int_to_ptr.vmem [resolvable:$true] %s5332
          %5335 = dma.vmem_to_hbm [thread:$0]  %s5333, 64, %s5330, %s5319
        $region88: #{tpu_custom_call.1} parent=79 // pred_fallthru
          _
      $region80: #{tpu_custom_call.1} parent=5 // pred_fallthru
        _
      %p5336 = scmp.le.s32.totalorder 2, %s25
      // Predicated region
      $region89: #{tpu_custom_call.1} parent=5 // pred_check
        %p5337 = pneg %p5336
      $region90: #{tpu_custom_call.1} parent=5 // pred_check_branch
        %5339 = sbr.rel (%p5337) target = $region92
      $region91: #{tpu_custom_call.1} parent=5 // pred_region
        %s5340 = ssub.s32 %s25, 2
        // Predicated region
        $region93: #{tpu_custom_call.1} parent=91 // pred_check
          %p5341 = pneg %p374
        $region94: #{tpu_custom_call.1} parent=91 // pred_check_branch
          %5343 = sbr.rel (%p5341) target = $region96
        $region95: #{tpu_custom_call.1} parent=91 // pred_region
          %s5344 = sand.u32 %s359, 1
          %s5345 = scalar_lea.sflag [#allocation3], %s5344
          %s5346 = sand.u32 %s359, 1
          %s5347 = smul.addr %s5346, 4
          %s5348 = scalar_lea.vmem [#allocation5], %s5347
          %5349 = dma.done %s5345, 64
        $region96: #{tpu_custom_call.1} parent=91 // pred_fallthru
          _
      $region92: #{tpu_custom_call.1} parent=5 // pred_fallthru
        _
    $region6: #{tpu_custom_call.1} parent=1 // loop_footer
      %s29 = sadd.s32 1, %s25
    $region7: #{tpu_custom_call.1} parent=1 // loop_footer_branch
      %24 = sbr.rel target = $region3
    $region8: #{tpu_custom_call.1} parent=1 // loop_exit
      _
    %5350 = vsyncpa [#allocation3], 1
    %s5351 = scalar_lea.sflag [#allocation3], 1
    %5352 = vsyncpa %s5351, 1
    %5353 = vsyncpa [#allocation4], 1
    %s5354 = scalar_lea.sflag [#allocation4], 1
    %5355 = vsyncpa %s5354, 1

</llo_original>
